<compile_context>
chip_gen: v7x
topology: tpu7x:2x2x1
jax: 0.10.0
libtpu: 0.0.40
codegen_flags: <defaults>
</compile_context>

<pallas_src>
import math

import jax
import jax.numpy as jnp
from jax.experimental import pallas as pl
from jax.experimental.pallas import tpu as pltpu

MODEL_DIM = 32
NUM_HEADS = 4
HEAD_DIM = MODEL_DIM // NUM_HEADS
FFN_DIM = 4 * MODEL_DIM
VOCAB_SIZE = 50
SEQ = 8
BATCH = 2
LN_EPS = 1e-5
ATTN_SCALE = 1.0 / math.sqrt(HEAD_DIM)
NUM_LAYERS = 2

# packed-slab layout constants (everything 128-lane aligned)
LANE = 128
LAYER_W_COLS = 3 * LANE   # [Wqkv(96->128) | Wo(32->128) | W1(128)] per layer
LAYER_B_ROWS = 8          # bqkv, bo, g1, be1, bf1, bf2, g2, be2


# ---------------------------------------------------------------------------
# shared math helper (used inside the Pallas kernel and in the pure-JAX ref)
# ---------------------------------------------------------------------------
def _ln(x, gamma, beta):
    mean = jnp.mean(x, axis=-1, keepdims=True)
    var = jnp.mean((x - mean) ** 2, axis=-1, keepdims=True)
    return (x - mean) * jax.lax.rsqrt(var + LN_EPS) * gamma + beta


# ---------------------------------------------------------------------------
# Pallas kernel: single invocation, whole batch, packed parameter slabs
# ---------------------------------------------------------------------------
def encoder_kernel(lens_ref, x_ref, w_ref, w2_ref, b_ref, o_ref):
    BS = BATCH * SEQ

    # ---- build padding mask in-kernel from SMEM lengths (no mask input DMA) ----
    bidx = jax.lax.broadcasted_iota(jnp.int32, (BATCH, SEQ, MODEL_DIM), 0)
    spos = jax.lax.broadcasted_iota(jnp.int32, (BATCH, SEQ, MODEL_DIM), 1)
    limit = jnp.zeros((BATCH, SEQ, MODEL_DIM), jnp.int32)
    for b in range(BATCH):
        limit = jnp.where(bidx == b, lens_ref[b], limit)
    m = (spos < limit).astype(jnp.float32).reshape(BS, MODEL_DIM)   # (B*S, D)

    h = x_ref[...] * m                     # apply_mask(pos_encoded)

    def split_heads(t3):                   # (B, S, D) -> (H*B, S, Hd), no lane-split reshape
        return jnp.concatenate(
            [t3[:, :, hd * HEAD_DIM:(hd + 1) * HEAD_DIM][None] for hd in range(NUM_HEADS)],
            axis=0).reshape(NUM_HEADS * BATCH, SEQ, HEAD_DIM)

    for l in range(NUM_LAYERS):
        base = l * LAYER_W_COLS
        row = l * LAYER_B_ROWS

        # 128-lane-aligned static weight slices
        Wqkv = w_ref[:, base + 0 * LANE: base + 1 * LANE]          # (32, 128) zero-padded
        Wo = w_ref[:, base + 1 * LANE: base + 1 * LANE + MODEL_DIM]  # (32, 32) @ aligned start
        W1 = w_ref[:, base + 2 * LANE: base + 3 * LANE]            # (32, 128)
        W2 = w2_ref[:, l * LANE: l * LANE + MODEL_DIM]             # (128, 32) @ aligned start

        bqkv = b_ref[row + 0:row + 1, :]                           # (1, 128) zero-padded
        bo = b_ref[row + 1:row + 2, 0:MODEL_DIM]
        g1 = b_ref[row + 2:row + 3, 0:MODEL_DIM]
        be1 = b_ref[row + 3:row + 4, 0:MODEL_DIM]
        bf1 = b_ref[row + 4:row + 5, :]                            # (1, 128)
        bf2 = b_ref[row + 5:row + 6, 0:MODEL_DIM]
        g2 = b_ref[row + 6:row + 7, 0:MODEL_DIM]
        be2 = b_ref[row + 7:row + 8, 0:MODEL_DIM]

        # ---- multi-head self-attention: fused QKV (single 128-wide MXU push) ----
        # ATTN_SCALE is already folded into the Wq/bq columns at pack time.
        qkv = jnp.dot(h, Wqkv, preferred_element_type=jnp.float32) + bqkv   # (B*S, 128)
        q3 = qkv[:, 0:MODEL_DIM].reshape(BATCH, SEQ, MODEL_DIM)
        k3 = qkv[:, MODEL_DIM:2 * MODEL_DIM].reshape(BATCH, SEQ, MODEL_DIM)
        v3 = qkv[:, 2 * MODEL_DIM:3 * MODEL_DIM].reshape(BATCH, SEQ, MODEL_DIM)

        # head-batched attention: one score einsum + one PV einsum per layer
        qh, kh, vh = split_heads(q3), split_heads(k3), split_heads(v3)      # (H*B, S, Hd)
        s = jnp.einsum('bqd,bkd->bqk', qh, kh, preferred_element_type=jnp.float32)
        s = s - jnp.max(s, axis=-1, keepdims=True)
        p = jnp.exp(s)
        p = p * pl.reciprocal(jnp.sum(p, axis=-1, keepdims=True), approx=True)
        oh = jnp.einsum('bqk,bkd->bqd', p, vh, preferred_element_type=jnp.float32)

        # concat the head outputs along lanes -> one (B*S, 32) slab, ONE Wo dot
        oh = oh.reshape(NUM_HEADS, BATCH, SEQ, HEAD_DIM)
        o = jnp.concatenate([oh[hd] for hd in range(NUM_HEADS)], axis=-1)   # (B, S, D)
        attn = jnp.dot(o.reshape(BS, MODEL_DIM), Wo,
                       preferred_element_type=jnp.float32) + bo

        # ---- residual + LN, FFN, residual + LN, padding mask ----
        h = _ln(h + attn, g1, be1)
        ff = jnp.maximum(jnp.dot(h, W1, preferred_element_type=jnp.float32) + bf1, 0.0)
        ff = jnp.dot(ff, W2, preferred_element_type=jnp.float32) + bf2
        h = _ln(h + ff, g2, be2)
        h = h * m                                                           # apply_mask

    Wl = w_ref[:, NUM_LAYERS * LAYER_W_COLS: NUM_LAYERS * LAYER_W_COLS + MODEL_DIM]
    bl = b_ref[NUM_LAYERS * LAYER_B_ROWS: NUM_LAYERS * LAYER_B_ROWS + 1, 0:MODEL_DIM]
    o_ref[...] = (jnp.dot(h, Wl, preferred_element_type=jnp.float32) + bl) * m


def encoder_forward(x2d, len_list, w_slab, w2_slab, b_slab):
    vmem = pl.BlockSpec(memory_space=pltpu.MemorySpace.VMEM)
    smem = pl.BlockSpec(memory_space=pltpu.MemorySpace.SMEM)
    return pl.pallas_call(
        encoder_kernel,
        out_shape=jax.ShapeDtypeStruct(x2d.shape, jnp.float32),
        in_specs=[smem, vmem, vmem, vmem, vmem],
        out_specs=vmem,
    )(len_list, x2d, w_slab, w2_slab, b_slab)


# ---------------------------------------------------------------------------
# parameter construction, packing, and plain-JAX glue
# ---------------------------------------------------------------------------
def init_linear(key, fan_in, fan_out):
    kw, kb = jax.random.split(key)
    bound = 1.0 / math.sqrt(fan_in)
    W = jax.random.uniform(kw, (fan_in, fan_out), jnp.float32, -bound, bound)
    b = jax.random.uniform(kb, (1, fan_out), jnp.float32, -bound, bound)
    return W, b


def init_encoding_layer(key):
    ks = jax.random.split(key, 6)
    Wq, bq = init_linear(ks[0], MODEL_DIM, MODEL_DIM)
    Wk, bk = init_linear(ks[1], MODEL_DIM, MODEL_DIM)
    Wv, bv = init_linear(ks[2], MODEL_DIM, MODEL_DIM)
    Wo, bo = init_linear(ks[3], MODEL_DIM, MODEL_DIM)
    g1 = jnp.ones((1, MODEL_DIM), jnp.float32)
    be1 = jnp.zeros((1, MODEL_DIM), jnp.float32)
    W1, bf1 = init_linear(ks[4], MODEL_DIM, FFN_DIM)
    W2, bf2 = init_linear(ks[5], FFN_DIM, MODEL_DIM)
    g2 = jnp.ones((1, MODEL_DIM), jnp.float32)
    be2 = jnp.zeros((1, MODEL_DIM), jnp.float32)
    return [Wq, bq, Wk, bk, Wv, bv, Wo, bo, g1, be1, W1, bf1, W2, bf2, g2, be2]


def _pad_cols(x, width):
    return jnp.pad(x, ((0, 0), (0, width - x.shape[1])))


def pack_params(layer_params, Wl, bl):
    """Pack parameters into 3 slabs; every weight block starts on a 128-lane boundary.
       ATTN_SCALE is folded into Wq / bq here (free at pack time)."""
    w_cols, w2_cols, b_rows = [], [], []
    for (Wq, bq, Wk, bk, Wv, bv, Wo, bo, g1, be1, W1, bf1, W2, bf2, g2, be2) in layer_params:
        Wqkv = jnp.concatenate([Wq * ATTN_SCALE, Wk, Wv], axis=1)      # (32, 96), scale folded
        w_cols += [_pad_cols(Wqkv, LANE), _pad_cols(Wo, LANE), W1]     # 128 + 128 + 128 lanes
        w2_cols.append(_pad_cols(W2, LANE))                            # (128, 128)
        bqkv = jnp.concatenate([bq * ATTN_SCALE, bk, bv], axis=1)      # (1, 96)
        b_rows += [_pad_cols(r, LANE) for r in (bqkv, bo, g1, be1, bf1, bf2, g2, be2)]
    w_cols.append(_pad_cols(Wl, LANE))
    b_rows.append(_pad_cols(bl, LANE))
    w_slab = jnp.concatenate(w_cols, axis=1)    # (32, 2*384 + 128) = (32, 896)
    w2_slab = jnp.concatenate(w2_cols, axis=1)  # (128, 256) lane-concatenated per layer
    b_slab = jnp.concatenate(b_rows, axis=0)    # (17, 128)
    return w_slab, w2_slab, b_slab


def sinusoidal_pos_encoding(seq_len, d):
    pos = jnp.arange(seq_len, dtype=jnp.float32)[:, None]
    i = jnp.arange(0, d, 2, dtype=jnp.float32)
    angle = pos / jnp.power(10000.0, i / d)
    pe = jnp.zeros((seq_len, d), jnp.float32)
    pe = pe.at[:, 0::2].set(jnp.sin(angle))
    pe = pe.at[:, 1::2].set(jnp.cos(angle))
    return pe


# ---------------------------------------------------------------------------
# pure-JAX reference (uses the raw, unpacked parameters — independent of kernel)
# ---------------------------------------------------------------------------
def _mha_ref(x, Wq, bq, Wk, bk, Wv, bv, Wo, bo):
    q = x @ Wq + bq
    k = x @ Wk + bk
    v = x @ Wv + bv
    heads = []
    for h in range(NUM_HEADS):
        sl = slice(h * HEAD_DIM, (h + 1) * HEAD_DIM)
        s = (q[:, sl] @ k[:, sl].T) * ATTN_SCALE
        s = s - jnp.max(s, axis=-1, keepdims=True)
        p = jnp.exp(s)
        p = p / jnp.sum(p, axis=-1, keepdims=True)
        heads.append(p @ v[:, sl])
    return jnp.concatenate(heads, axis=-1) @ Wo + bo


def _encoding_layer_ref(h, params):
    (Wq, bq, Wk, bk, Wv, bv, Wo, bo, g1, be1, W1, bf1, W2, bf2, g2, be2) = params
    attn = _mha_ref(h, Wq, bq, Wk, bk, Wv, bv, Wo, bo)
    h = _ln(h + attn, g1, be1)
    ff = jnp.maximum(h @ W1 + bf1, 0.0)
    ff = ff @ W2 + bf2
    return _ln(h + ff, g2, be2)


def reference_forward(pos_encoded, mask, layer_params, Wl, bl):
    def per_batch(x, m):
        h = x * m
        for lp in layer_params:
            h = _encoding_layer_ref(h, lp) * m
        return (h @ Wl + bl) * m
    return jax.vmap(per_batch)(pos_encoded, mask)


if __name__ == "__main__":
    key = jax.random.PRNGKey(0)
    k_emb, k_tok, k_l1, k_l2, k_lin = jax.random.split(key, 5)

    # parameters (Encoder.__init__ shapes: Embedding(V,D), 2x EncodingLayer, Linear(D,D))
    emb_table = jax.random.normal(k_emb, (VOCAB_SIZE, MODEL_DIM), jnp.float32)
    layer_params = [init_encoding_layer(k_l1), init_encoding_layer(k_l2)]
    Wl, bl = init_linear(k_lin, MODEL_DIM, MODEL_DIM)

    # inputs: token ids (B, S) and per-sequence valid lengths
    tokens = jax.random.randint(k_tok, (BATCH, SEQ), 0, VOCAB_SIZE)
    len_list = jnp.array([SEQ, SEQ - 3], dtype=jnp.int32)

    # glue: embedding lookup + positional encoding (host-side JAX)
    embedded = jnp.take(emb_table, tokens, axis=0)                        # (B, S, D)
    pos_encoded = embedded + sinusoidal_pos_encoding(SEQ, MODEL_DIM)[None]

    # fold batch into the sublane axis; mask is built inside the kernel from len_list
    x2d = pos_encoded.reshape(BATCH * SEQ, MODEL_DIM)
    w_slab, w2_slab, b_slab = pack_params(layer_params, Wl, bl)

    out2d = encoder_forward(x2d, len_list, w_slab, w2_slab, b_slab)
    out2d = jax.block_until_ready(out2d)
    out = out2d.reshape(BATCH, SEQ, MODEL_DIM)

    mask = (jnp.arange(SEQ)[None, :] < len_list[:, None]).astype(jnp.float32)[:, :, None]
    ref = reference_forward(pos_encoded, mask, layer_params, Wl, bl)
    assert out.shape == (BATCH, SEQ, MODEL_DIM)
    # tolerance slightly loosened vs exact-divide reference because the kernel uses
    # the EUP approximate reciprocal for the softmax normalization
    assert jnp.allclose(out, ref, atol=2e-3, rtol=2e-3), "kernel output mismatch vs JAX reference"
    print("KERNEL_OK")
</pallas_src>

<mosaic_0001>
module attributes {stable_mosaic.version = 11 : i64} {
  func.func @encoder_kernel(%arg0: memref<2xi32, #tpu.memory_space<smem>>, %arg1: memref<16x32xf32, #tpu.memory_space<vmem>>, %arg2: memref<32x896xf32, #tpu.memory_space<vmem>>, %arg3: memref<128x256xf32, #tpu.memory_space<vmem>>, %arg4: memref<17x128xf32, #tpu.memory_space<vmem>>, %arg5: memref<16x32xf32, #tpu.memory_space<vmem>>) attributes {dimension_semantics = [], scalar_prefetch = 0 : i64, scratch_operands = 0 : i64, tpu.core_type = #tpu.core_type<tc>} {
    %0 = tpu.iota {dimensions = array<i32: 0>} : vector<2x8x32xi32>
    %1 = tpu.iota {dimensions = array<i32: 1>} : vector<2x8x32xi32>
    %c0_i32 = arith.constant 0 : i32
    %2 = vector.broadcast %c0_i32 : i32 to vector<2x8x32xi32>
    %c0_i32_0 = arith.constant 0 : i32
    %3 = vector.broadcast %c0_i32_0 : i32 to vector<2x8x32xi32>
    %4 = arith.cmpi eq, %0, %3 : vector<2x8x32xi32>
    %c0 = arith.constant 0 : index
    %5 = memref.load %arg0[%c0] : memref<2xi32, #tpu.memory_space<smem>>
    %6 = vector.broadcast %5 : i32 to vector<2x8x32xi32>
    %7 = arith.select %4, %6, %2 : vector<2x8x32xi1>, vector<2x8x32xi32>
    %c1_i32 = arith.constant 1 : i32
    %8 = vector.broadcast %c1_i32 : i32 to vector<2x8x32xi32>
    %9 = arith.cmpi eq, %0, %8 : vector<2x8x32xi32>
    %c1 = arith.constant 1 : index
    %10 = memref.load %arg0[%c1] : memref<2xi32, #tpu.memory_space<smem>>
    %11 = vector.broadcast %10 : i32 to vector<2x8x32xi32>
    %12 = arith.select %9, %11, %7 : vector<2x8x32xi1>, vector<2x8x32xi32>
    %13 = arith.cmpi slt, %1, %12 : vector<2x8x32xi32>
    %14 = arith.extui %13 : vector<2x8x32xi1> to vector<2x8x32xi32>
    %15 = arith.sitofp %14 : vector<2x8x32xi32> to vector<2x8x32xf32>
    %16 = vector.shape_cast %15 : vector<2x8x32xf32> to vector<16x32xf32>
    %c0_1 = arith.constant 0 : index
    %c0_2 = arith.constant 0 : index
    %17 = vector.load %arg1[%c0_1, %c0_2] : memref<16x32xf32, #tpu.memory_space<vmem>>, vector<16x32xf32>
    %18 = arith.mulf %17, %16 : vector<16x32xf32>
    %c0_3 = arith.constant 0 : index
    %c0_4 = arith.constant 0 : index
    %19 = vector.load %arg2[%c0_3, %c0_4] : memref<32x896xf32, #tpu.memory_space<vmem>>, vector<32x128xf32>
    %c0_5 = arith.constant 0 : index
    %c128 = arith.constant 128 : index
    %20 = vector.load %arg2[%c0_5, %c128] : memref<32x896xf32, #tpu.memory_space<vmem>>, vector<32x32xf32>
    %c0_6 = arith.constant 0 : index
    %c256 = arith.constant 256 : index
    %21 = vector.load %arg2[%c0_6, %c256] : memref<32x896xf32, #tpu.memory_space<vmem>>, vector<32x128xf32>
    %c0_7 = arith.constant 0 : index
    %c0_8 = arith.constant 0 : index
    %22 = vector.load %arg3[%c0_7, %c0_8] : memref<128x256xf32, #tpu.memory_space<vmem>>, vector<128x32xf32>
    %c0_9 = arith.constant 0 : index
    %c0_10 = arith.constant 0 : index
    %23 = vector.load %arg4[%c0_9, %c0_10] : memref<17x128xf32, #tpu.memory_space<vmem>>, vector<1x128xf32>
    %c1_11 = arith.constant 1 : index
    %c0_12 = arith.constant 0 : index
    %24 = vector.load %arg4[%c1_11, %c0_12] : memref<17x128xf32, #tpu.memory_space<vmem>>, vector<1x32xf32>
    %c2 = arith.constant 2 : index
    %c0_13 = arith.constant 0 : index
    %25 = vector.load %arg4[%c2, %c0_13] : memref<17x128xf32, #tpu.memory_space<vmem>>, vector<1x32xf32>
    %c3 = arith.constant 3 : index
    %c0_14 = arith.constant 0 : index
    %26 = vector.load %arg4[%c3, %c0_14] : memref<17x128xf32, #tpu.memory_space<vmem>>, vector<1x32xf32>
    %c4 = arith.constant 4 : index
    %c0_15 = arith.constant 0 : index
    %27 = vector.load %arg4[%c4, %c0_15] : memref<17x128xf32, #tpu.memory_space<vmem>>, vector<1x128xf32>
    %c5 = arith.constant 5 : index
    %c0_16 = arith.constant 0 : index
    %28 = vector.load %arg4[%c5, %c0_16] : memref<17x128xf32, #tpu.memory_space<vmem>>, vector<1x32xf32>
    %c6 = arith.constant 6 : index
    %c0_17 = arith.constant 0 : index
    %29 = vector.load %arg4[%c6, %c0_17] : memref<17x128xf32, #tpu.memory_space<vmem>>, vector<1x32xf32>
    %c7 = arith.constant 7 : index
    %c0_18 = arith.constant 0 : index
    %30 = vector.load %arg4[%c7, %c0_18] : memref<17x128xf32, #tpu.memory_space<vmem>>, vector<1x32xf32>
    %cst = arith.constant dense<0.000000e+00> : vector<16x128xf32>
    %31 = tpu.matmul %18, %19, %cst {dimension_numbers = #tpu.dot_dimension_numbers<[1], [0], [0], [1], [0, 0, 1, 1], [], []>} : vector<16x32xf32>, vector<32x128xf32>, vector<16x128xf32> -> vector<16x128xf32>
    %32 = vector.broadcast %23 : vector<1x128xf32> to vector<16x128xf32>
    %33 = arith.addf %31, %32 : vector<16x128xf32>
    %34 = vector.extract_strided_slice %33 {offsets = [0, 0], sizes = [16, 32], strides = [1, 1]} : vector<16x128xf32> to vector<16x32xf32>
    %35 = vector.shape_cast %34 : vector<16x32xf32> to vector<2x8x32xf32>
    %36 = vector.extract_strided_slice %33 {offsets = [0, 32], sizes = [16, 32], strides = [1, 1]} : vector<16x128xf32> to vector<16x32xf32>
    %37 = vector.shape_cast %36 : vector<16x32xf32> to vector<2x8x32xf32>
    %38 = vector.extract_strided_slice %33 {offsets = [0, 64], sizes = [16, 32], strides = [1, 1]} : vector<16x128xf32> to vector<16x32xf32>
    %39 = vector.shape_cast %38 : vector<16x32xf32> to vector<2x8x32xf32>
    %40 = vector.extract_strided_slice %35 {offsets = [0, 0, 0], sizes = [2, 8, 8], strides = [1, 1, 1]} : vector<2x8x32xf32> to vector<2x8x8xf32>
    %41 = vector.shape_cast %40 : vector<2x8x8xf32> to vector<1x2x8x8xf32>
    %42 = vector.extract_strided_slice %35 {offsets = [0, 0, 8], sizes = [2, 8, 8], strides = [1, 1, 1]} : vector<2x8x32xf32> to vector<2x8x8xf32>
    %43 = vector.shape_cast %42 : vector<2x8x8xf32> to vector<1x2x8x8xf32>
    %44 = vector.extract_strided_slice %35 {offsets = [0, 0, 16], sizes = [2, 8, 8], strides = [1, 1, 1]} : vector<2x8x32xf32> to vector<2x8x8xf32>
    %45 = vector.shape_cast %44 : vector<2x8x8xf32> to vector<1x2x8x8xf32>
    %46 = vector.extract_strided_slice %35 {offsets = [0, 0, 24], sizes = [2, 8, 8], strides = [1, 1, 1]} : vector<2x8x32xf32> to vector<2x8x8xf32>
    %47 = vector.shape_cast %46 : vector<2x8x8xf32> to vector<1x2x8x8xf32>
    %48 = tpu.concatenate %41, %43, %45, %47 in 0 : vector<1x2x8x8xf32>, vector<1x2x8x8xf32>, vector<1x2x8x8xf32>, vector<1x2x8x8xf32> -> vector<4x2x8x8xf32>
    %49 = vector.shape_cast %48 : vector<4x2x8x8xf32> to vector<8x8x8xf32>
    %50 = vector.extract_strided_slice %37 {offsets = [0, 0, 0], sizes = [2, 8, 8], strides = [1, 1, 1]} : vector<2x8x32xf32> to vector<2x8x8xf32>
    %51 = vector.shape_cast %50 : vector<2x8x8xf32> to vector<1x2x8x8xf32>
    %52 = vector.extract_strided_slice %37 {offsets = [0, 0, 8], sizes = [2, 8, 8], strides = [1, 1, 1]} : vector<2x8x32xf32> to vector<2x8x8xf32>
    %53 = vector.shape_cast %52 : vector<2x8x8xf32> to vector<1x2x8x8xf32>
    %54 = vector.extract_strided_slice %37 {offsets = [0, 0, 16], sizes = [2, 8, 8], strides = [1, 1, 1]} : vector<2x8x32xf32> to vector<2x8x8xf32>
    %55 = vector.shape_cast %54 : vector<2x8x8xf32> to vector<1x2x8x8xf32>
    %56 = vector.extract_strided_slice %37 {offsets = [0, 0, 24], sizes = [2, 8, 8], strides = [1, 1, 1]} : vector<2x8x32xf32> to vector<2x8x8xf32>
    %57 = vector.shape_cast %56 : vector<2x8x8xf32> to vector<1x2x8x8xf32>
    %58 = tpu.concatenate %51, %53, %55, %57 in 0 : vector<1x2x8x8xf32>, vector<1x2x8x8xf32>, vector<1x2x8x8xf32>, vector<1x2x8x8xf32> -> vector<4x2x8x8xf32>
    %59 = vector.shape_cast %58 : vector<4x2x8x8xf32> to vector<8x8x8xf32>
    %60 = vector.extract_strided_slice %39 {offsets = [0, 0, 0], sizes = [2, 8, 8], strides = [1, 1, 1]} : vector<2x8x32xf32> to vector<2x8x8xf32>
    %61 = vector.shape_cast %60 : vector<2x8x8xf32> to vector<1x2x8x8xf32>
    %62 = vector.extract_strided_slice %39 {offsets = [0, 0, 8], sizes = [2, 8, 8], strides = [1, 1, 1]} : vector<2x8x32xf32> to vector<2x8x8xf32>
    %63 = vector.shape_cast %62 : vector<2x8x8xf32> to vector<1x2x8x8xf32>
    %64 = vector.extract_strided_slice %39 {offsets = [0, 0, 16], sizes = [2, 8, 8], strides = [1, 1, 1]} : vector<2x8x32xf32> to vector<2x8x8xf32>
    %65 = vector.shape_cast %64 : vector<2x8x8xf32> to vector<1x2x8x8xf32>
    %66 = vector.extract_strided_slice %39 {offsets = [0, 0, 24], sizes = [2, 8, 8], strides = [1, 1, 1]} : vector<2x8x32xf32> to vector<2x8x8xf32>
    %67 = vector.shape_cast %66 : vector<2x8x8xf32> to vector<1x2x8x8xf32>
    %68 = tpu.concatenate %61, %63, %65, %67 in 0 : vector<1x2x8x8xf32>, vector<1x2x8x8xf32>, vector<1x2x8x8xf32>, vector<1x2x8x8xf32> -> vector<4x2x8x8xf32>
    %69 = vector.shape_cast %68 : vector<4x2x8x8xf32> to vector<8x8x8xf32>
    "tpu.trace_start"() <{level = 10 : i32, message = "bqd,bkd->bqk"}> : () -> ()
    %cst_19 = arith.constant dense<0.000000e+00> : vector<8x8x8xf32>
    %70 = tpu.matmul %49, %59, %cst_19 {dimension_numbers = #tpu.dot_dimension_numbers<[2], [2], [1], [1], [0, 0, 0, 1, 1, 1], [0], [0]>} : vector<8x8x8xf32>, vector<8x8x8xf32>, vector<8x8x8xf32> -> vector<8x8x8xf32>
    "tpu.trace_stop"() : () -> ()
    %cst_20 = arith.constant dense<0xFF800000> : vector<8x8xf32>
    %71 = vector.multi_reduction <maximumf>, %70, %cst_20 [2] : vector<8x8x8xf32> to vector<8x8xf32>
    %72 = vector.shape_cast %71 : vector<8x8xf32> to vector<8x8x1xf32>
    %73 = vector.broadcast %72 : vector<8x8x1xf32> to vector<8x8x8xf32>
    %74 = arith.subf %70, %73 : vector<8x8x8xf32>
    %75 = math.exp %74 : vector<8x8x8xf32>
    %cst_21 = arith.constant dense<0.000000e+00> : vector<8x8xf32>
    %76 = vector.multi_reduction <add>, %75, %cst_21 [2] : vector<8x8x8xf32> to vector<8x8xf32>
    %77 = vector.shape_cast %76 : vector<8x8xf32> to vector<8x8x1xf32>
    %78 = tpu.reciprocal %77 {approx = true} : vector<8x8x1xf32> -> vector<8x8x1xf32>
    %79 = vector.broadcast %78 : vector<8x8x1xf32> to vector<8x8x8xf32>
    %80 = arith.mulf %75, %79 : vector<8x8x8xf32>
    "tpu.trace_start"() <{level = 10 : i32, message = "bqk,bkd->bqd"}> : () -> ()
    %cst_22 = arith.constant dense<0.000000e+00> : vector<8x8x8xf32>
    %81 = tpu.matmul %80, %69, %cst_22 {dimension_numbers = #tpu.dot_dimension_numbers<[2], [1], [1], [2], [0, 0, 0, 1, 1, 2], [0], [0]>} : vector<8x8x8xf32>, vector<8x8x8xf32>, vector<8x8x8xf32> -> vector<8x8x8xf32>
    "tpu.trace_stop"() : () -> ()
    %82 = vector.shape_cast %81 : vector<8x8x8xf32> to vector<4x2x8x8xf32>
    %83 = vector.extract_strided_slice %82 {offsets = [0, 0, 0, 0], sizes = [1, 2, 8, 8], strides = [1, 1, 1, 1]} : vector<4x2x8x8xf32> to vector<1x2x8x8xf32>
    %84 = vector.shape_cast %83 : vector<1x2x8x8xf32> to vector<2x8x8xf32>
    %85 = vector.extract_strided_slice %82 {offsets = [1, 0, 0, 0], sizes = [1, 2, 8, 8], strides = [1, 1, 1, 1]} : vector<4x2x8x8xf32> to vector<1x2x8x8xf32>
    %86 = vector.shape_cast %85 : vector<1x2x8x8xf32> to vector<2x8x8xf32>
    %87 = vector.extract_strided_slice %82 {offsets = [2, 0, 0, 0], sizes = [1, 2, 8, 8], strides = [1, 1, 1, 1]} : vector<4x2x8x8xf32> to vector<1x2x8x8xf32>
    %88 = vector.shape_cast %87 : vector<1x2x8x8xf32> to vector<2x8x8xf32>
    %89 = vector.extract_strided_slice %82 {offsets = [3, 0, 0, 0], sizes = [1, 2, 8, 8], strides = [1, 1, 1, 1]} : vector<4x2x8x8xf32> to vector<1x2x8x8xf32>
    %90 = vector.shape_cast %89 : vector<1x2x8x8xf32> to vector<2x8x8xf32>
    %91 = tpu.concatenate %84, %86, %88, %90 in 2 : vector<2x8x8xf32>, vector<2x8x8xf32>, vector<2x8x8xf32>, vector<2x8x8xf32> -> vector<2x8x32xf32>
    %92 = vector.shape_cast %91 : vector<2x8x32xf32> to vector<16x32xf32>
    %cst_23 = arith.constant dense<0.000000e+00> : vector<16x32xf32>
    %93 = tpu.matmul %92, %20, %cst_23 {dimension_numbers = #tpu.dot_dimension_numbers<[1], [0], [0], [1], [0, 0, 1, 1], [], []>} : vector<16x32xf32>, vector<32x32xf32>, vector<16x32xf32> -> vector<16x32xf32>
    %94 = vector.broadcast %24 : vector<1x32xf32> to vector<16x32xf32>
    %95 = arith.addf %93, %94 : vector<16x32xf32>
    %96 = arith.addf %18, %95 : vector<16x32xf32>
    %cst_24 = arith.constant dense<0.000000e+00> : vector<16xf32>
    %97 = vector.multi_reduction <add>, %96, %cst_24 [1] : vector<16x32xf32> to vector<16xf32>
    %98 = vector.shape_cast %97 : vector<16xf32> to vector<16x1xf32>
    %cst_25 = arith.constant 3.200000e+01 : f32
    %99 = vector.broadcast %cst_25 : f32 to vector<16x1xf32>
    %100 = arith.divf %98, %99 : vector<16x1xf32>
    %101 = vector.broadcast %100 : vector<16x1xf32> to vector<16x32xf32>
    %102 = arith.subf %96, %101 : vector<16x32xf32>
    %103 = arith.mulf %102, %102 : vector<16x32xf32>
    %cst_26 = arith.constant dense<0.000000e+00> : vector<16xf32>
    %104 = vector.multi_reduction <add>, %103, %cst_26 [1] : vector<16x32xf32> to vector<16xf32>
    %105 = vector.shape_cast %104 : vector<16xf32> to vector<16x1xf32>
    %cst_27 = arith.constant 3.200000e+01 : f32
    %106 = vector.broadcast %cst_27 : f32 to vector<16x1xf32>
    %107 = arith.divf %105, %106 : vector<16x1xf32>
    %108 = vector.broadcast %100 : vector<16x1xf32> to vector<16x32xf32>
    %109 = arith.subf %96, %108 : vector<16x32xf32>
    %cst_28 = arith.constant 9.99999974E-6 : f32
    %110 = vector.broadcast %cst_28 : f32 to vector<16x1xf32>
    %111 = arith.addf %107, %110 : vector<16x1xf32>
    %112 = math.rsqrt %111 : vector<16x1xf32>
    %113 = vector.broadcast %112 : vector<16x1xf32> to vector<16x32xf32>
    %114 = arith.mulf %109, %113 : vector<16x32xf32>
    %115 = vector.broadcast %25 : vector<1x32xf32> to vector<16x32xf32>
    %116 = arith.mulf %114, %115 : vector<16x32xf32>
    %117 = vector.broadcast %26 : vector<1x32xf32> to vector<16x32xf32>
    %118 = arith.addf %116, %117 : vector<16x32xf32>
    %cst_29 = arith.constant dense<0.000000e+00> : vector<16x128xf32>
    %119 = tpu.matmul %118, %21, %cst_29 {dimension_numbers = #tpu.dot_dimension_numbers<[1], [0], [0], [1], [0, 0, 1, 1], [], []>} : vector<16x32xf32>, vector<32x128xf32>, vector<16x128xf32> -> vector<16x128xf32>
    %120 = vector.broadcast %27 : vector<1x128xf32> to vector<16x128xf32>
    %121 = arith.addf %119, %120 : vector<16x128xf32>
    %cst_30 = arith.constant 0.000000e+00 : f32
    %122 = vector.broadcast %cst_30 : f32 to vector<16x128xf32>
    %123 = arith.maximumf %121, %122 : vector<16x128xf32>
    %cst_31 = arith.constant dense<0.000000e+00> : vector<16x32xf32>
    %124 = tpu.matmul %123, %22, %cst_31 {dimension_numbers = #tpu.dot_dimension_numbers<[1], [0], [0], [1], [0, 0, 1, 1], [], []>} : vector<16x128xf32>, vector<128x32xf32>, vector<16x32xf32> -> vector<16x32xf32>
    %125 = vector.broadcast %28 : vector<1x32xf32> to vector<16x32xf32>
    %126 = arith.addf %124, %125 : vector<16x32xf32>
    %127 = arith.addf %118, %126 : vector<16x32xf32>
    %cst_32 = arith.constant dense<0.000000e+00> : vector<16xf32>
    %128 = vector.multi_reduction <add>, %127, %cst_32 [1] : vector<16x32xf32> to vector<16xf32>
    %129 = vector.shape_cast %128 : vector<16xf32> to vector<16x1xf32>
    %cst_33 = arith.constant 3.200000e+01 : f32
    %130 = vector.broadcast %cst_33 : f32 to vector<16x1xf32>
    %131 = arith.divf %129, %130 : vector<16x1xf32>
    %132 = vector.broadcast %131 : vector<16x1xf32> to vector<16x32xf32>
    %133 = arith.subf %127, %132 : vector<16x32xf32>
    %134 = arith.mulf %133, %133 : vector<16x32xf32>
    %cst_34 = arith.constant dense<0.000000e+00> : vector<16xf32>
    %135 = vector.multi_reduction <add>, %134, %cst_34 [1] : vector<16x32xf32> to vector<16xf32>
    %136 = vector.shape_cast %135 : vector<16xf32> to vector<16x1xf32>
    %cst_35 = arith.constant 3.200000e+01 : f32
    %137 = vector.broadcast %cst_35 : f32 to vector<16x1xf32>
    %138 = arith.divf %136, %137 : vector<16x1xf32>
    %139 = vector.broadcast %131 : vector<16x1xf32> to vector<16x32xf32>
    %140 = arith.subf %127, %139 : vector<16x32xf32>
    %cst_36 = arith.constant 9.99999974E-6 : f32
    %141 = vector.broadcast %cst_36 : f32 to vector<16x1xf32>
    %142 = arith.addf %138, %141 : vector<16x1xf32>
    %143 = math.rsqrt %142 : vector<16x1xf32>
    %144 = vector.broadcast %143 : vector<16x1xf32> to vector<16x32xf32>
    %145 = arith.mulf %140, %144 : vector<16x32xf32>
    %146 = vector.broadcast %29 : vector<1x32xf32> to vector<16x32xf32>
    %147 = arith.mulf %145, %146 : vector<16x32xf32>
    %148 = vector.broadcast %30 : vector<1x32xf32> to vector<16x32xf32>
    %149 = arith.addf %147, %148 : vector<16x32xf32>
    %150 = arith.mulf %149, %16 : vector<16x32xf32>
    %c0_37 = arith.constant 0 : index
    %c384 = arith.constant 384 : index
    %151 = vector.load %arg2[%c0_37, %c384] : memref<32x896xf32, #tpu.memory_space<vmem>>, vector<32x128xf32>
    %c0_38 = arith.constant 0 : index
    %c512 = arith.constant 512 : index
    %152 = vector.load %arg2[%c0_38, %c512] : memref<32x896xf32, #tpu.memory_space<vmem>>, vector<32x32xf32>
    %c0_39 = arith.constant 0 : index
    %c640 = arith.constant 640 : index
    %153 = vector.load %arg2[%c0_39, %c640] : memref<32x896xf32, #tpu.memory_space<vmem>>, vector<32x128xf32>
    %c0_40 = arith.constant 0 : index
    %c128_41 = arith.constant 128 : index
    %154 = vector.load %arg3[%c0_40, %c128_41] : memref<128x256xf32, #tpu.memory_space<vmem>>, vector<128x32xf32>
    %c8 = arith.constant 8 : index
    %c0_42 = arith.constant 0 : index
    %155 = vector.load %arg4[%c8, %c0_42] : memref<17x128xf32, #tpu.memory_space<vmem>>, vector<1x128xf32>
    %c9 = arith.constant 9 : index
    %c0_43 = arith.constant 0 : index
    %156 = vector.load %arg4[%c9, %c0_43] : memref<17x128xf32, #tpu.memory_space<vmem>>, vector<1x32xf32>
    %c10 = arith.constant 10 : index
    %c0_44 = arith.constant 0 : index
    %157 = vector.load %arg4[%c10, %c0_44] : memref<17x128xf32, #tpu.memory_space<vmem>>, vector<1x32xf32>
    %c11 = arith.constant 11 : index
    %c0_45 = arith.constant 0 : index
    %158 = vector.load %arg4[%c11, %c0_45] : memref<17x128xf32, #tpu.memory_space<vmem>>, vector<1x32xf32>
    %c12 = arith.constant 12 : index
    %c0_46 = arith.constant 0 : index
    %159 = vector.load %arg4[%c12, %c0_46] : memref<17x128xf32, #tpu.memory_space<vmem>>, vector<1x128xf32>
    %c13 = arith.constant 13 : index
    %c0_47 = arith.constant 0 : index
    %160 = vector.load %arg4[%c13, %c0_47] : memref<17x128xf32, #tpu.memory_space<vmem>>, vector<1x32xf32>
    %c14 = arith.constant 14 : index
    %c0_48 = arith.constant 0 : index
    %161 = vector.load %arg4[%c14, %c0_48] : memref<17x128xf32, #tpu.memory_space<vmem>>, vector<1x32xf32>
    %c15 = arith.constant 15 : index
    %c0_49 = arith.constant 0 : index
    %162 = vector.load %arg4[%c15, %c0_49] : memref<17x128xf32, #tpu.memory_space<vmem>>, vector<1x32xf32>
    %cst_50 = arith.constant dense<0.000000e+00> : vector<16x128xf32>
    %163 = tpu.matmul %150, %151, %cst_50 {dimension_numbers = #tpu.dot_dimension_numbers<[1], [0], [0], [1], [0, 0, 1, 1], [], []>} : vector<16x32xf32>, vector<32x128xf32>, vector<16x128xf32> -> vector<16x128xf32>
    %164 = vector.broadcast %155 : vector<1x128xf32> to vector<16x128xf32>
    %165 = arith.addf %163, %164 : vector<16x128xf32>
    %166 = vector.extract_strided_slice %165 {offsets = [0, 0], sizes = [16, 32], strides = [1, 1]} : vector<16x128xf32> to vector<16x32xf32>
    %167 = vector.shape_cast %166 : vector<16x32xf32> to vector<2x8x32xf32>
    %168 = vector.extract_strided_slice %165 {offsets = [0, 32], sizes = [16, 32], strides = [1, 1]} : vector<16x128xf32> to vector<16x32xf32>
    %169 = vector.shape_cast %168 : vector<16x32xf32> to vector<2x8x32xf32>
    %170 = vector.extract_strided_slice %165 {offsets = [0, 64], sizes = [16, 32], strides = [1, 1]} : vector<16x128xf32> to vector<16x32xf32>
    %171 = vector.shape_cast %170 : vector<16x32xf32> to vector<2x8x32xf32>
    %172 = vector.extract_strided_slice %167 {offsets = [0, 0, 0], sizes = [2, 8, 8], strides = [1, 1, 1]} : vector<2x8x32xf32> to vector<2x8x8xf32>
    %173 = vector.shape_cast %172 : vector<2x8x8xf32> to vector<1x2x8x8xf32>
    %174 = vector.extract_strided_slice %167 {offsets = [0, 0, 8], sizes = [2, 8, 8], strides = [1, 1, 1]} : vector<2x8x32xf32> to vector<2x8x8xf32>
    %175 = vector.shape_cast %174 : vector<2x8x8xf32> to vector<1x2x8x8xf32>
    %176 = vector.extract_strided_slice %167 {offsets = [0, 0, 16], sizes = [2, 8, 8], strides = [1, 1, 1]} : vector<2x8x32xf32> to vector<2x8x8xf32>
    %177 = vector.shape_cast %176 : vector<2x8x8xf32> to vector<1x2x8x8xf32>
    %178 = vector.extract_strided_slice %167 {offsets = [0, 0, 24], sizes = [2, 8, 8], strides = [1, 1, 1]} : vector<2x8x32xf32> to vector<2x8x8xf32>
    %179 = vector.shape_cast %178 : vector<2x8x8xf32> to vector<1x2x8x8xf32>
    %180 = tpu.concatenate %173, %175, %177, %179 in 0 : vector<1x2x8x8xf32>, vector<1x2x8x8xf32>, vector<1x2x8x8xf32>, vector<1x2x8x8xf32> -> vector<4x2x8x8xf32>
    %181 = vector.shape_cast %180 : vector<4x2x8x8xf32> to vector<8x8x8xf32>
    %182 = vector.extract_strided_slice %169 {offsets = [0, 0, 0], sizes = [2, 8, 8], strides = [1, 1, 1]} : vector<2x8x32xf32> to vector<2x8x8xf32>
    %183 = vector.shape_cast %182 : vector<2x8x8xf32> to vector<1x2x8x8xf32>
    %184 = vector.extract_strided_slice %169 {offsets = [0, 0, 8], sizes = [2, 8, 8], strides = [1, 1, 1]} : vector<2x8x32xf32> to vector<2x8x8xf32>
    %185 = vector.shape_cast %184 : vector<2x8x8xf32> to vector<1x2x8x8xf32>
    %186 = vector.extract_strided_slice %169 {offsets = [0, 0, 16], sizes = [2, 8, 8], strides = [1, 1, 1]} : vector<2x8x32xf32> to vector<2x8x8xf32>
    %187 = vector.shape_cast %186 : vector<2x8x8xf32> to vector<1x2x8x8xf32>
    %188 = vector.extract_strided_slice %169 {offsets = [0, 0, 24], sizes = [2, 8, 8], strides = [1, 1, 1]} : vector<2x8x32xf32> to vector<2x8x8xf32>
    %189 = vector.shape_cast %188 : vector<2x8x8xf32> to vector<1x2x8x8xf32>
    %190 = tpu.concatenate %183, %185, %187, %189 in 0 : vector<1x2x8x8xf32>, vector<1x2x8x8xf32>, vector<1x2x8x8xf32>, vector<1x2x8x8xf32> -> vector<4x2x8x8xf32>
    %191 = vector.shape_cast %190 : vector<4x2x8x8xf32> to vector<8x8x8xf32>
    %192 = vector.extract_strided_slice %171 {offsets = [0, 0, 0], sizes = [2, 8, 8], strides = [1, 1, 1]} : vector<2x8x32xf32> to vector<2x8x8xf32>
    %193 = vector.shape_cast %192 : vector<2x8x8xf32> to vector<1x2x8x8xf32>
    %194 = vector.extract_strided_slice %171 {offsets = [0, 0, 8], sizes = [2, 8, 8], strides = [1, 1, 1]} : vector<2x8x32xf32> to vector<2x8x8xf32>
    %195 = vector.shape_cast %194 : vector<2x8x8xf32> to vector<1x2x8x8xf32>
    %196 = vector.extract_strided_slice %171 {offsets = [0, 0, 16], sizes = [2, 8, 8], strides = [1, 1, 1]} : vector<2x8x32xf32> to vector<2x8x8xf32>
    %197 = vector.shape_cast %196 : vector<2x8x8xf32> to vector<1x2x8x8xf32>
    %198 = vector.extract_strided_slice %171 {offsets = [0, 0, 24], sizes = [2, 8, 8], strides = [1, 1, 1]} : vector<2x8x32xf32> to vector<2x8x8xf32>
    %199 = vector.shape_cast %198 : vector<2x8x8xf32> to vector<1x2x8x8xf32>
    %200 = tpu.concatenate %193, %195, %197, %199 in 0 : vector<1x2x8x8xf32>, vector<1x2x8x8xf32>, vector<1x2x8x8xf32>, vector<1x2x8x8xf32> -> vector<4x2x8x8xf32>
    %201 = vector.shape_cast %200 : vector<4x2x8x8xf32> to vector<8x8x8xf32>
    "tpu.trace_start"() <{level = 10 : i32, message = "bqd,bkd->bqk"}> : () -> ()
    %cst_51 = arith.constant dense<0.000000e+00> : vector<8x8x8xf32>
    %202 = tpu.matmul %181, %191, %cst_51 {dimension_numbers = #tpu.dot_dimension_numbers<[2], [2], [1], [1], [0, 0, 0, 1, 1, 1], [0], [0]>} : vector<8x8x8xf32>, vector<8x8x8xf32>, vector<8x8x8xf32> -> vector<8x8x8xf32>
    "tpu.trace_stop"() : () -> ()
    %cst_52 = arith.constant dense<0xFF800000> : vector<8x8xf32>
    %203 = vector.multi_reduction <maximumf>, %202, %cst_52 [2] : vector<8x8x8xf32> to vector<8x8xf32>
    %204 = vector.shape_cast %203 : vector<8x8xf32> to vector<8x8x1xf32>
    %205 = vector.broadcast %204 : vector<8x8x1xf32> to vector<8x8x8xf32>
    %206 = arith.subf %202, %205 : vector<8x8x8xf32>
    %207 = math.exp %206 : vector<8x8x8xf32>
    %cst_53 = arith.constant dense<0.000000e+00> : vector<8x8xf32>
    %208 = vector.multi_reduction <add>, %207, %cst_53 [2] : vector<8x8x8xf32> to vector<8x8xf32>
    %209 = vector.shape_cast %208 : vector<8x8xf32> to vector<8x8x1xf32>
    %210 = tpu.reciprocal %209 {approx = true} : vector<8x8x1xf32> -> vector<8x8x1xf32>
    %211 = vector.broadcast %210 : vector<8x8x1xf32> to vector<8x8x8xf32>
    %212 = arith.mulf %207, %211 : vector<8x8x8xf32>
    "tpu.trace_start"() <{level = 10 : i32, message = "bqk,bkd->bqd"}> : () -> ()
    %cst_54 = arith.constant dense<0.000000e+00> : vector<8x8x8xf32>
    %213 = tpu.matmul %212, %201, %cst_54 {dimension_numbers = #tpu.dot_dimension_numbers<[2], [1], [1], [2], [0, 0, 0, 1, 1, 2], [0], [0]>} : vector<8x8x8xf32>, vector<8x8x8xf32>, vector<8x8x8xf32> -> vector<8x8x8xf32>
    "tpu.trace_stop"() : () -> ()
    %214 = vector.shape_cast %213 : vector<8x8x8xf32> to vector<4x2x8x8xf32>
    %215 = vector.extract_strided_slice %214 {offsets = [0, 0, 0, 0], sizes = [1, 2, 8, 8], strides = [1, 1, 1, 1]} : vector<4x2x8x8xf32> to vector<1x2x8x8xf32>
    %216 = vector.shape_cast %215 : vector<1x2x8x8xf32> to vector<2x8x8xf32>
    %217 = vector.extract_strided_slice %214 {offsets = [1, 0, 0, 0], sizes = [1, 2, 8, 8], strides = [1, 1, 1, 1]} : vector<4x2x8x8xf32> to vector<1x2x8x8xf32>
    %218 = vector.shape_cast %217 : vector<1x2x8x8xf32> to vector<2x8x8xf32>
    %219 = vector.extract_strided_slice %214 {offsets = [2, 0, 0, 0], sizes = [1, 2, 8, 8], strides = [1, 1, 1, 1]} : vector<4x2x8x8xf32> to vector<1x2x8x8xf32>
    %220 = vector.shape_cast %219 : vector<1x2x8x8xf32> to vector<2x8x8xf32>
    %221 = vector.extract_strided_slice %214 {offsets = [3, 0, 0, 0], sizes = [1, 2, 8, 8], strides = [1, 1, 1, 1]} : vector<4x2x8x8xf32> to vector<1x2x8x8xf32>
    %222 = vector.shape_cast %221 : vector<1x2x8x8xf32> to vector<2x8x8xf32>
    %223 = tpu.concatenate %216, %218, %220, %222 in 2 : vector<2x8x8xf32>, vector<2x8x8xf32>, vector<2x8x8xf32>, vector<2x8x8xf32> -> vector<2x8x32xf32>
    %224 = vector.shape_cast %223 : vector<2x8x32xf32> to vector<16x32xf32>
    %cst_55 = arith.constant dense<0.000000e+00> : vector<16x32xf32>
    %225 = tpu.matmul %224, %152, %cst_55 {dimension_numbers = #tpu.dot_dimension_numbers<[1], [0], [0], [1], [0, 0, 1, 1], [], []>} : vector<16x32xf32>, vector<32x32xf32>, vector<16x32xf32> -> vector<16x32xf32>
    %226 = vector.broadcast %156 : vector<1x32xf32> to vector<16x32xf32>
    %227 = arith.addf %225, %226 : vector<16x32xf32>
    %228 = arith.addf %150, %227 : vector<16x32xf32>
    %cst_56 = arith.constant dense<0.000000e+00> : vector<16xf32>
    %229 = vector.multi_reduction <add>, %228, %cst_56 [1] : vector<16x32xf32> to vector<16xf32>
    %230 = vector.shape_cast %229 : vector<16xf32> to vector<16x1xf32>
    %cst_57 = arith.constant 3.200000e+01 : f32
    %231 = vector.broadcast %cst_57 : f32 to vector<16x1xf32>
    %232 = arith.divf %230, %231 : vector<16x1xf32>
    %233 = vector.broadcast %232 : vector<16x1xf32> to vector<16x32xf32>
    %234 = arith.subf %228, %233 : vector<16x32xf32>
    %235 = arith.mulf %234, %234 : vector<16x32xf32>
    %cst_58 = arith.constant dense<0.000000e+00> : vector<16xf32>
    %236 = vector.multi_reduction <add>, %235, %cst_58 [1] : vector<16x32xf32> to vector<16xf32>
    %237 = vector.shape_cast %236 : vector<16xf32> to vector<16x1xf32>
    %cst_59 = arith.constant 3.200000e+01 : f32
    %238 = vector.broadcast %cst_59 : f32 to vector<16x1xf32>
    %239 = arith.divf %237, %238 : vector<16x1xf32>
    %240 = vector.broadcast %232 : vector<16x1xf32> to vector<16x32xf32>
    %241 = arith.subf %228, %240 : vector<16x32xf32>
    %cst_60 = arith.constant 9.99999974E-6 : f32
    %242 = vector.broadcast %cst_60 : f32 to vector<16x1xf32>
    %243 = arith.addf %239, %242 : vector<16x1xf32>
    %244 = math.rsqrt %243 : vector<16x1xf32>
    %245 = vector.broadcast %244 : vector<16x1xf32> to vector<16x32xf32>
    %246 = arith.mulf %241, %245 : vector<16x32xf32>
    %247 = vector.broadcast %157 : vector<1x32xf32> to vector<16x32xf32>
    %248 = arith.mulf %246, %247 : vector<16x32xf32>
    %249 = vector.broadcast %158 : vector<1x32xf32> to vector<16x32xf32>
    %250 = arith.addf %248, %249 : vector<16x32xf32>
    %cst_61 = arith.constant dense<0.000000e+00> : vector<16x128xf32>
    %251 = tpu.matmul %250, %153, %cst_61 {dimension_numbers = #tpu.dot_dimension_numbers<[1], [0], [0], [1], [0, 0, 1, 1], [], []>} : vector<16x32xf32>, vector<32x128xf32>, vector<16x128xf32> -> vector<16x128xf32>
    %252 = vector.broadcast %159 : vector<1x128xf32> to vector<16x128xf32>
    %253 = arith.addf %251, %252 : vector<16x128xf32>
    %cst_62 = arith.constant 0.000000e+00 : f32
    %254 = vector.broadcast %cst_62 : f32 to vector<16x128xf32>
    %255 = arith.maximumf %253, %254 : vector<16x128xf32>
    %cst_63 = arith.constant dense<0.000000e+00> : vector<16x32xf32>
    %256 = tpu.matmul %255, %154, %cst_63 {dimension_numbers = #tpu.dot_dimension_numbers<[1], [0], [0], [1], [0, 0, 1, 1], [], []>} : vector<16x128xf32>, vector<128x32xf32>, vector<16x32xf32> -> vector<16x32xf32>
    %257 = vector.broadcast %160 : vector<1x32xf32> to vector<16x32xf32>
    %258 = arith.addf %256, %257 : vector<16x32xf32>
    %259 = arith.addf %250, %258 : vector<16x32xf32>
    %cst_64 = arith.constant dense<0.000000e+00> : vector<16xf32>
    %260 = vector.multi_reduction <add>, %259, %cst_64 [1] : vector<16x32xf32> to vector<16xf32>
    %261 = vector.shape_cast %260 : vector<16xf32> to vector<16x1xf32>
    %cst_65 = arith.constant 3.200000e+01 : f32
    %262 = vector.broadcast %cst_65 : f32 to vector<16x1xf32>
    %263 = arith.divf %261, %262 : vector<16x1xf32>
    %264 = vector.broadcast %263 : vector<16x1xf32> to vector<16x32xf32>
    %265 = arith.subf %259, %264 : vector<16x32xf32>
    %266 = arith.mulf %265, %265 : vector<16x32xf32>
    %cst_66 = arith.constant dense<0.000000e+00> : vector<16xf32>
    %267 = vector.multi_reduction <add>, %266, %cst_66 [1] : vector<16x32xf32> to vector<16xf32>
    %268 = vector.shape_cast %267 : vector<16xf32> to vector<16x1xf32>
    %cst_67 = arith.constant 3.200000e+01 : f32
    %269 = vector.broadcast %cst_67 : f32 to vector<16x1xf32>
    %270 = arith.divf %268, %269 : vector<16x1xf32>
    %271 = vector.broadcast %263 : vector<16x1xf32> to vector<16x32xf32>
    %272 = arith.subf %259, %271 : vector<16x32xf32>
    %cst_68 = arith.constant 9.99999974E-6 : f32
    %273 = vector.broadcast %cst_68 : f32 to vector<16x1xf32>
    %274 = arith.addf %270, %273 : vector<16x1xf32>
    %275 = math.rsqrt %274 : vector<16x1xf32>
    %276 = vector.broadcast %275 : vector<16x1xf32> to vector<16x32xf32>
    %277 = arith.mulf %272, %276 : vector<16x32xf32>
    %278 = vector.broadcast %161 : vector<1x32xf32> to vector<16x32xf32>
    %279 = arith.mulf %277, %278 : vector<16x32xf32>
    %280 = vector.broadcast %162 : vector<1x32xf32> to vector<16x32xf32>
    %281 = arith.addf %279, %280 : vector<16x32xf32>
    %282 = arith.mulf %281, %16 : vector<16x32xf32>
    %c0_69 = arith.constant 0 : index
    %c768 = arith.constant 768 : index
    %283 = vector.load %arg2[%c0_69, %c768] : memref<32x896xf32, #tpu.memory_space<vmem>>, vector<32x32xf32>
    %c16 = arith.constant 16 : index
    %c0_70 = arith.constant 0 : index
    %284 = vector.load %arg4[%c16, %c0_70] : memref<17x128xf32, #tpu.memory_space<vmem>>, vector<1x32xf32>
    %cst_71 = arith.constant dense<0.000000e+00> : vector<16x32xf32>
    %285 = tpu.matmul %282, %283, %cst_71 {dimension_numbers = #tpu.dot_dimension_numbers<[1], [0], [0], [1], [0, 0, 1, 1], [], []>} : vector<16x32xf32>, vector<32x32xf32>, vector<16x32xf32> -> vector<16x32xf32>
    %286 = vector.broadcast %284 : vector<1x32xf32> to vector<16x32xf32>
    %287 = arith.addf %285, %286 : vector<16x32xf32>
    %288 = arith.mulf %287, %16 : vector<16x32xf32>
    %c0_72 = arith.constant 0 : index
    %c0_73 = arith.constant 0 : index
    %289 = vector.load %arg5[%c0_72, %c0_73] : memref<16x32xf32, #tpu.memory_space<vmem>>, vector<16x32xf32>
    tpu.vector_store %arg5[%c0_72, %c0_73], %288 {strides = array<i32>} : memref<16x32xf32, #tpu.memory_space<vmem>>, vector<16x32xf32>,
    return
  }
}

</mosaic_0001>

<llo_original>
// kernel: tpu_custom_call.1
$region0: #{tpu_custom_call.1}
  #allocation0 [shape = 'u32[]', space=smem, size = 0x4, offset = 0x4, fixed_abs, tag = 'smem constant byte address 0x4 - core index']
  #allocation1 [shape = 'u32[144,128]{1,0:T(1,128)}', space=vmem, size = 0x12000, scoped, tag = 'internal scratch']
  %s0 = inlined_call_operand.hbm [shape: s32[2], index: 0, kind: input, shape index: {}]
  %s1 = inlined_call_operand.hbm [shape: f32[16,32], index: 1, kind: input, shape index: {}]
  %s2 = inlined_call_operand.hbm [shape: f32[32,896], index: 2, kind: input, shape index: {}]
  %s3 = inlined_call_operand.hbm [shape: f32[128,256], index: 3, kind: input, shape index: {}]
  %s4 = inlined_call_operand.hbm [shape: f32[17,128], index: 4, kind: input, shape index: {}]
  %s5 = inlined_call_operand.hbm [shape: f32[16,32], index: 5, kind: output, shape index: {}]
  %s6 = sld [smem:[#allocation0]]
  $region50: #{tpu_custom_call.1} parent=0
    _
  %s8 = ssub.s32 1, %s6
  %s9 = scalar_select 0, %s8, %s6
  $region1: #{tpu_custom_call.1} parent=0
    #allocation2 [shape = 'u8[512]{0}', space=smem, size = 0x200, scoped, tag = 'input window, operand 0, single buffered']
    #allocation3 [shape = 's32[1]{0}', space=sflag, size = 0x4, scoped, tag = 'scoped memory for tpu_custom_call.1']
    #allocation4 [shape = 's32[1]{0}', space=sflag, size = 0x4, scoped, tag = 'scoped memory for tpu_custom_call.1']
    #allocation5 [shape = 's32[1]{0}', space=sflag, size = 0x4, scoped, tag = 'scoped memory for tpu_custom_call.1']
    #allocation6 [shape = 'u8[8192]{0}', space=vmem, size = 0x2000, scoped, tag = 'input window, operand 1, single buffered']
    #allocation7 [shape = 'u8[114688]{0}', space=vmem, size = 0x1c000, scoped, tag = 'input window, operand 2, single buffered']
    #allocation8 [shape = 's32[1]{0}', space=sflag, size = 0x4, scoped, tag = 'scoped memory for tpu_custom_call.1']
    #allocation9 [shape = 'u8[131072]{0}', space=vmem, size = 0x20000, scoped, tag = 'input window, operand 3, single buffered']
    #allocation10 [shape = 'u8[12288]{0}', space=vmem, size = 0x3000, scoped, tag = 'input window, operand 4, single buffered']
    #allocation11 [shape = 's32[1]{0}', space=sflag, size = 0x4, scoped, tag = 'scoped memory for tpu_custom_call.1']
    #allocation12 [shape = 'u8[8192]{0}', space=vmem, size = 0x2000, scoped, tag = 'output window, operand 0, single buffered']
    %10 = vsyncpa [#allocation5], 0
    %11 = vsyncpa [#allocation3], 0
    %12 = vsyncpa [#allocation8], 0
    %13 = vsyncpa [#allocation11], 0
    %14 = vsyncpa [#allocation4], 0
    // Predicated region
    $region2: #{tpu_custom_call.1} parent=1 // pred_check
      _
    $region3: #{tpu_custom_call.1} parent=1 // pred_check_branch
      %16 = sbr.rel (0) target = $region5
    $region4: #{tpu_custom_call.1} parent=1 // pred_region
      %s18 = ssub.s32 16, 16
      %19 = vsyncadd [#allocation5], %s18
      %22 = dma.hbm_to_smem %s0, 16, [#allocation2], [#allocation5]
    $region5: #{tpu_custom_call.1} parent=1 // pred_fallthru
      _
    // Predicated region
    $region6: #{tpu_custom_call.1} parent=1 // pred_check
      _
    $region7: #{tpu_custom_call.1} parent=1 // pred_check_branch
      %24 = sbr.rel (0) target = $region9
    $region8: #{tpu_custom_call.1} parent=1 // pred_region
      %s26 = ssub.s32 256, 256
      %27 = vsyncadd [#allocation3], %s26
      %s28 = sshll.u32 [#allocation6], 4
      %s29 = int_to_ptr.vmem [resolvable:$true] %s28
      %34 = dma.hbm_to_vmem [thread:$0]  %s1, 256, %s29, [#allocation3], 128, 128, 8
    $region9: #{tpu_custom_call.1} parent=1 // pred_fallthru
      _
    // Predicated region
    $region10: #{tpu_custom_call.1} parent=1 // pred_check
      _
    $region11: #{tpu_custom_call.1} parent=1 // pred_check_branch
      %36 = sbr.rel (0) target = $region13
    $region12: #{tpu_custom_call.1} parent=1 // pred_region
      %s38 = ssub.s32 3584, 3584
      %39 = vsyncadd [#allocation8], %s38
      %s40 = sshll.u32 [#allocation7], 4
      %s41 = int_to_ptr.vmem [resolvable:$true] %s40
      %46 = dma.hbm_to_vmem [thread:$0]  %s2, 3584, %s41, [#allocation8], 896, 896, 56
    $region13: #{tpu_custom_call.1} parent=1 // pred_fallthru
      _
    // Predicated region
    $region14: #{tpu_custom_call.1} parent=1 // pred_check
      _
    $region15: #{tpu_custom_call.1} parent=1 // pred_check_branch
      %48 = sbr.rel (0) target = $region17
    $region16: #{tpu_custom_call.1} parent=1 // pred_region
      %s50 = ssub.s32 4096, 4096
      %51 = vsyncadd [#allocation8], %s50
      %s52 = sshll.u32 [#allocation9], 4
      %s53 = int_to_ptr.vmem [resolvable:$true] %s52
      %58 = dma.hbm_to_vmem [thread:$0]  %s3, 4096, %s53, [#allocation8], 256, 256, 16
    $region17: #{tpu_custom_call.1} parent=1 // pred_fallthru
      _
    // Predicated region
    $region18: #{tpu_custom_call.1} parent=1 // pred_check
      _
    $region19: #{tpu_custom_call.1} parent=1 // pred_check_branch
      %60 = sbr.rel (0) target = $region21
    $region20: #{tpu_custom_call.1} parent=1 // pred_region
      %s62 = ssub.s32 384, 384
      %63 = vsyncadd [#allocation11], %s62
      %s64 = sshll.u32 [#allocation10], 4
      %s65 = int_to_ptr.vmem [resolvable:$true] %s64
      %70 = dma.hbm_to_vmem [thread:$0]  %s4, 384, %s65, [#allocation11], 128, 128, 8
    $region21: #{tpu_custom_call.1} parent=1 // pred_fallthru
      _
    // Predicated region
    $region22: #{tpu_custom_call.1} parent=1 // pred_check
      _
    $region23: #{tpu_custom_call.1} parent=1 // pred_check_branch
      %72 = sbr.rel (0) target = $region25
    $region24: #{tpu_custom_call.1} parent=1 // pred_region
      %73 = dma.done [#allocation5], 16
    $region25: #{tpu_custom_call.1} parent=1 // pred_fallthru
      _
    // Predicated region
    $region26: #{tpu_custom_call.1} parent=1 // pred_check
      _
    $region27: #{tpu_custom_call.1} parent=1 // pred_check_branch
      %75 = sbr.rel (0) target = $region29
    $region28: #{tpu_custom_call.1} parent=1 // pred_region
      %76 = dma.done [#allocation3], 256
    $region29: #{tpu_custom_call.1} parent=1 // pred_fallthru
      _
    // Predicated region
    $region30: #{tpu_custom_call.1} parent=1 // pred_check
      _
    $region31: #{tpu_custom_call.1} parent=1 // pred_check_branch
      %78 = sbr.rel (0) target = $region33
    $region32: #{tpu_custom_call.1} parent=1 // pred_region
      %79 = dma.done [#allocation8], 3584
    $region33: #{tpu_custom_call.1} parent=1 // pred_fallthru
      _
    // Predicated region
    $region34: #{tpu_custom_call.1} parent=1 // pred_check
      _
    $region35: #{tpu_custom_call.1} parent=1 // pred_check_branch
      %81 = sbr.rel (0) target = $region37
    $region36: #{tpu_custom_call.1} parent=1 // pred_region
      %82 = dma.done [#allocation8], 4096
    $region37: #{tpu_custom_call.1} parent=1 // pred_fallthru
      _
    // Predicated region
    $region38: #{tpu_custom_call.1} parent=1 // pred_check
      _
    $region39: #{tpu_custom_call.1} parent=1 // pred_check_branch
      %84 = sbr.rel (0) target = $region41
    $region40: #{tpu_custom_call.1} parent=1 // pred_region
      %85 = dma.done [#allocation11], 384
    $region41: #{tpu_custom_call.1} parent=1 // pred_fallthru
      _
    %86 = sfence
    %v87 = vlaneseq
    %v88 = vshrl.u32 %v87, 7
    %s89 = sld [smem:[#allocation2]]
    %v90 = vstv %s89
    %s91 = sld [smem:[#allocation2 + $0x1]]
    %v92 = vstv %s91
    %vm93 = vcmp.lt.s32.totalorder %v88, %v90
    %vm94 = vcmp.lt.s32.totalorder %v88, %v92
    %v95 = vsel %vm93, 1, 0
    %v96 = vsel %vm94, 1, 0
    %v97 = vcvt.s32.f32 %v95
    %v98 = vcvt.s32.f32 %v96
    %v99 = vld [vmem:[#allocation6] sm:$0xff]
    %v100 = vld [vmem:[#allocation6 + $0x8] sm:$0xff]
    %v101 = vmul.f32 %v99, %v97
    %v102 = vmul.f32 %v100, %v98
    %v103 = vld [vmem:[#allocation7] sm:$0xff]
    %v104 = vld [vmem:[#allocation7 + $0x38] sm:$0xff]
    %v105 = vld [vmem:[#allocation7 + $0x70] sm:$0xff]
    %v106 = vld [vmem:[#allocation7 + $0xa8] sm:$0xff]
    %v107 = vld [vmem:[#allocation7 + $0x8] sm:$0xff]
    %v108 = vld [vmem:[#allocation7 + $0x40] sm:$0xff]
    %v109 = vld [vmem:[#allocation7 + $0x78] sm:$0xff]
    %v110 = vld [vmem:[#allocation7 + $0xb0] sm:$0xff]
    %v111 = vld [vmem:[#allocation7 + $0x10] sm:$0xff]
    %v112 = vld [vmem:[#allocation7 + $0x48] sm:$0xff]
    %v113 = vld [vmem:[#allocation7 + $0x80] sm:$0xff]
    %v114 = vld [vmem:[#allocation7 + $0xb8] sm:$0xff]
    %v115 = vld [vmem:[#allocation9] sm:$0xff]
    %v116 = vld [vmem:[#allocation9 + $0x10] sm:$0xff]
    %v117 = vld [vmem:[#allocation9 + $0x20] sm:$0xff]
    %v118 = vld [vmem:[#allocation9 + $0x30] sm:$0xff]
    %v119 = vld [vmem:[#allocation9 + $0x40] sm:$0xff]
    %v120 = vld [vmem:[#allocation9 + $0x50] sm:$0xff]
    %v121 = vld [vmem:[#allocation9 + $0x60] sm:$0xff]
    %v122 = vld [vmem:[#allocation9 + $0x70] sm:$0xff]
    %v123 = vld [vmem:[#allocation9 + $0x80] sm:$0xff]
    %v124 = vld [vmem:[#allocation9 + $0x90] sm:$0xff]
    %v125 = vld [vmem:[#allocation9 + $0xa0] sm:$0xff]
    %v126 = vld [vmem:[#allocation9 + $0xb0] sm:$0xff]
    %v127 = vld [vmem:[#allocation9 + $0xc0] sm:$0xff]
    %v128 = vld [vmem:[#allocation9 + $0xd0] sm:$0xff]
    %v129 = vld [vmem:[#allocation9 + $0xe0] sm:$0xff]
    %v130 = vld [vmem:[#allocation9 + $0xf0] sm:$0xff]
    %v131 = vld [vmem:[#allocation10] sm:$0x1]
    %v132 = vld [vmem:[#allocation10 + $0x1] sm:$0x1]
    %v133 = vld [vmem:[#allocation10 + $0x2] sm:$0x1]
    %v134 = vld [vmem:[#allocation10 + $0x3] sm:$0x1]
    %v135 = vld [vmem:[#allocation10 + $0x4] sm:$0x1]
    %v136 = vld [vmem:[#allocation10 + $0x5] sm:$0x1]
    %v137 = vld [vmem:[#allocation10 + $0x6] sm:$0x1]
    %v138 = vld [vmem:[#allocation10 + $0x7] sm:$0x1]
    %v139 = vlaneseq
    %v140 = vshrl.u32 %v139, 7
    %v141 = vsub.s32 0, %v140
    %v142 = vrot.slane %v131, %v141
    %vm143 = vcmask 261120
    %v145 = vsel %vm143, %v101, 0
    %v148 = vsel %vm143, %v102, 0
    %150 = vmatprep.subr.mxu0 0.0
    %151 = vmatpush1.msra.mxu0 %v103
    %152 = vmatprep.subr.mxu0 0.0
    %153 = vmatpush1.msra.mxu0 %v104
    %154 = vmatprep.subr.mxu0 0.0
    %155 = vmatpush1.msra.mxu0 %v105
    %156 = vmatprep.subr.mxu0 0.0
    %157 = vmatpush1.msra.mxu0 %v106
    %158 = vmatprep.subr.mxu0 0.0
    %159 = vmatpush1.msra.mxu0 0.0
    %160 = vmatprep.subr.mxu0 0.0
    %161 = vmatpush1.msra.mxu0 0.0
    %162 = vmatprep.subr.mxu0 0.0
    %163 = vmatpush1.msra.mxu0 0.0
    %164 = vmatprep.subr.mxu0 0.0
    %165 = vmatpush1.msra.mxu0 0.0
    %166 = vmatprep.subr.mxu0 0.0
    %167 = vmatpush1.msra.mxu0 0.0
    %168 = vmatprep.subr.mxu0 0.0
    %169 = vmatpush1.msra.mxu0 0.0
    %170 = vmatprep.subr.mxu0 0.0
    %171 = vmatpush1.msra.mxu0 0.0
    %172 = vmatprep.subr.mxu0 0.0
    %173 = vmatpush1.msra.mxu0 0.0
    %174 = vmatprep.subr.mxu0 0.0
    %175 = vmatpush1.msra.mxu0 0.0
    %176 = vmatprep.subr.mxu0 0.0
    %177 = vmatpush1.msra.mxu0 0.0
    %178 = vmatprep.subr.mxu0 0.0
    %179 = vmatpush1.msra.mxu0 0.0
    %180 = vmatprep.subr.mxu0 0.0
    %181 = vmatpush1.msra.mxu0 0.0
    %182 = vmatprep.subr.mxu0 0.0
    %183 = vmatpush1.msra.mxu0 0.0
    %184 = vmatprep.subr.mxu0 0.0
    %185 = vmatpush1.msra.mxu0 0.0
    %186 = vmatprep.subr.mxu0 0.0
    %187 = vmatpush1.msra.mxu0 0.0
    %188 = vmatprep.subr.mxu0 0.0
    %189 = vmatpush1.msra.mxu0 0.0
    %190 = vmatprep.subr.mxu0 0.0
    %191 = vmatpush1.msra.mxu0 0.0
    %192 = vmatprep.subr.mxu0 0.0
    %193 = vmatpush1.msra.mxu0 0.0
    %194 = vmatprep.subr.mxu0 0.0
    %195 = vmatpush1.msra.mxu0 0.0
    %196 = vmatprep.subr.mxu0 0.0
    %197 = vmatpush1.msra.mxu0 0.0
    %198 = vmatprep.subr.mxu0 0.0
    %199 = vmatpush1.msra.mxu0 0.0
    %200 = vmatprep.subr.mxu0 0.0
    %201 = vmatpush1.msra.mxu0 0.0
    %202 = vmatprep.subr.mxu0 0.0
    %203 = vmatpush1.msra.mxu0 0.0
    %204 = vmatprep.subr.mxu0 0.0
    %205 = vmatpush1.msra.mxu0 0.0
    %206 = vmatprep.subr.mxu0 0.0
    %207 = vmatpush1.msra.mxu0 0.0
    %208 = vmatprep.subr.mxu0 0.0
    %209 = vmatpush1.msra.mxu0 0.0
    %210 = vmatprep.subr.mxu0 0.0
    %211 = vmatpush1.msra.mxu0 0.0
    %212 = vmatprep.subr.mxu0 0.0
    %213 = vmatpush1.msra.mxu0 0.0
    %214 = vmatprep.mubr.f32.mxu0 0.0
    %215 = vmatmul.mubr.f32.gmra.mrb[0].mxu0 %v145
    %v216 = vpop.f32.mrb[0].mxu0
    %v217 = vadd.f32 %v142, %v216
    %v218 = vpop.f32.mrb[0].mxu0
    %219 = vmatprep.mubr.f32.mxu0 0.0
    %220 = vmatmul.mubr.f32.gmra.mrb[0].mxu0 %v148
    %v221 = vpop.f32.mrb[0].mxu0
    %v222 = vadd.f32 %v142, %v221
    %v223 = vpop.f32.mrb[0].mxu0
    %224 = vdwg.mxu0
    %227 = vrot.lane.b32.xlu0 %v217, 120
    %v228 = vpop.permute.xlu0 %227
    %229 = vrot.lane.b32.xlu0 %v222, 120
    %v230 = vpop.permute.xlu0 %229
    %231 = vrot.lane.b32.xlu0 %v217, 112
    %v232 = vpop.permute.xlu0 %231
    %233 = vrot.lane.b32.xlu0 %v222, 112
    %v234 = vpop.permute.xlu0 %233
    %235 = vrot.lane.b32.xlu0 %v217, 104
    %v236 = vpop.permute.xlu0 %235
    %237 = vrot.lane.b32.xlu0 %v222, 104
    %v238 = vpop.permute.xlu0 %237
    %239 = vrot.lane.b32.xlu0 %v217, 96
    %v240 = vpop.permute.xlu0 %239
    %vm241 = vcmask 64512
    %v242 = vsel %vm241, %v217, 0
    %v244 = vsel %vm241, %v240, 0
    %246 = vmatprep.subr.mxu0 0.0
    %247 = vmatpush1.xpose.msra.mxu0 %v244
    %248 = vmatprep.subr.mxu0 0.0
    %249 = vmatpush1.xpose.msra.mxu0 0.0
    %250 = vmatprep.subr.mxu0 0.0
    %251 = vmatpush1.xpose.msra.mxu0 0.0
    %252 = vmatprep.subr.mxu0 0.0
    %253 = vmatpush1.xpose.msra.mxu0 0.0
    %254 = vmatprep.subr.mxu0 0.0
    %255 = vmatpush1.xpose.msra.mxu0 0.0
    %256 = vmatprep.subr.mxu0 0.0
    %257 = vmatpush1.xpose.msra.mxu0 0.0
    %258 = vmatprep.subr.mxu0 0.0
    %259 = vmatpush1.xpose.msra.mxu0 0.0
    %260 = vmatprep.subr.mxu0 0.0
    %261 = vmatpush1.xpose.msra.mxu0 0.0
    %262 = vmatprep.subr.mxu0 0.0
    %263 = vmatpush1.xpose.msra.mxu0 0.0
    %264 = vmatprep.subr.mxu0 0.0
    %265 = vmatpush1.xpose.msra.mxu0 0.0
    %266 = vmatprep.subr.mxu0 0.0
    %267 = vmatpush1.xpose.msra.mxu0 0.0
    %268 = vmatprep.subr.mxu0 0.0
    %269 = vmatpush1.xpose.msra.mxu0 0.0
    %270 = vmatprep.subr.mxu0 0.0
    %271 = vmatpush1.xpose.msra.mxu0 0.0
    %272 = vmatprep.subr.mxu0 0.0
    %273 = vmatpush1.xpose.msra.mxu0 0.0
    %274 = vmatprep.subr.mxu0 0.0
    %275 = vmatpush1.xpose.msra.mxu0 0.0
    %276 = vmatprep.subr.mxu0 0.0
    %277 = vmatpush1.xpose.msra.mxu0 0.0
    %278 = vmatprep.subr.mxu0 0.0
    %279 = vmatpush1.xpose.msra.mxu0 0.0
    %280 = vmatprep.subr.mxu0 0.0
    %281 = vmatpush1.xpose.msra.mxu0 0.0
    %282 = vmatprep.subr.mxu0 0.0
    %283 = vmatpush1.xpose.msra.mxu0 0.0
    %284 = vmatprep.subr.mxu0 0.0
    %285 = vmatpush1.xpose.msra.mxu0 0.0
    %286 = vmatprep.subr.mxu0 0.0
    %287 = vmatpush1.xpose.msra.mxu0 0.0
    %288 = vmatprep.subr.mxu0 0.0
    %289 = vmatpush1.xpose.msra.mxu0 0.0
    %290 = vmatprep.subr.mxu0 0.0
    %291 = vmatpush1.xpose.msra.mxu0 0.0
    %292 = vmatprep.subr.mxu0 0.0
    %293 = vmatpush1.xpose.msra.mxu0 0.0
    %294 = vmatprep.subr.mxu0 0.0
    %295 = vmatpush1.xpose.msra.mxu0 0.0
    %296 = vmatprep.subr.mxu0 0.0
    %297 = vmatpush1.xpose.msra.mxu0 0.0
    %298 = vmatprep.subr.mxu0 0.0
    %299 = vmatpush1.xpose.msra.mxu0 0.0
    %300 = vmatprep.subr.mxu0 0.0
    %301 = vmatpush1.xpose.msra.mxu0 0.0
    %302 = vmatprep.subr.mxu0 0.0
    %303 = vmatpush1.xpose.msra.mxu0 0.0
    %304 = vmatprep.subr.mxu0 0.0
    %305 = vmatpush1.xpose.msra.mxu0 0.0
    %306 = vmatprep.subr.mxu0 0.0
    %307 = vmatpush1.xpose.msra.mxu0 0.0
    %308 = vmatprep.subr.mxu0 0.0
    %309 = vmatpush1.xpose.msra.mxu0 0.0
    %310 = vmatprep.mubr.f32.mxu0 0.0
    %311 = vmatmul.mubr.f32.gmra.mrb[0].mxu0 %v242
    %v312 = vpop.f32.mrb[0].mxu0
    %v313 = vadd.f32 0.0, %v312
    %v314 = vpop.f32.mrb[0].mxu0
    %315 = vdwg.mxu0
    %316 = vrot.lane.b32.xlu0 %v222, 96
    %v317 = vpop.permute.xlu0 %316
    %v318 = vsel %vm241, %v222, 0
    %v320 = vsel %vm241, %v317, 0
    %322 = vmatprep.subr.mxu0 0.0
    %323 = vmatpush1.xpose.msra.mxu0 %v320
    %324 = vmatprep.subr.mxu0 0.0
    %325 = vmatpush1.xpose.msra.mxu0 0.0
    %326 = vmatprep.subr.mxu0 0.0
    %327 = vmatpush1.xpose.msra.mxu0 0.0
    %328 = vmatprep.subr.mxu0 0.0
    %329 = vmatpush1.xpose.msra.mxu0 0.0
    %330 = vmatprep.subr.mxu0 0.0
    %331 = vmatpush1.xpose.msra.mxu0 0.0
    %332 = vmatprep.subr.mxu0 0.0
    %333 = vmatpush1.xpose.msra.mxu0 0.0
    %334 = vmatprep.subr.mxu0 0.0
    %335 = vmatpush1.xpose.msra.mxu0 0.0
    %336 = vmatprep.subr.mxu0 0.0
    %337 = vmatpush1.xpose.msra.mxu0 0.0
    %338 = vmatprep.subr.mxu0 0.0
    %339 = vmatpush1.xpose.msra.mxu0 0.0
    %340 = vmatprep.subr.mxu0 0.0
    %341 = vmatpush1.xpose.msra.mxu0 0.0
    %342 = vmatprep.subr.mxu0 0.0
    %343 = vmatpush1.xpose.msra.mxu0 0.0
    %344 = vmatprep.subr.mxu0 0.0
    %345 = vmatpush1.xpose.msra.mxu0 0.0
    %346 = vmatprep.subr.mxu0 0.0
    %347 = vmatpush1.xpose.msra.mxu0 0.0
    %348 = vmatprep.subr.mxu0 0.0
    %349 = vmatpush1.xpose.msra.mxu0 0.0
    %350 = vmatprep.subr.mxu0 0.0
    %351 = vmatpush1.xpose.msra.mxu0 0.0
    %352 = vmatprep.subr.mxu0 0.0
    %353 = vmatpush1.xpose.msra.mxu0 0.0
    %354 = vmatprep.subr.mxu0 0.0
    %355 = vmatpush1.xpose.msra.mxu0 0.0
    %356 = vmatprep.subr.mxu0 0.0
    %357 = vmatpush1.xpose.msra.mxu0 0.0
    %358 = vmatprep.subr.mxu0 0.0
    %359 = vmatpush1.xpose.msra.mxu0 0.0
    %360 = vmatprep.subr.mxu0 0.0
    %361 = vmatpush1.xpose.msra.mxu0 0.0
    %362 = vmatprep.subr.mxu0 0.0
    %363 = vmatpush1.xpose.msra.mxu0 0.0
    %364 = vmatprep.subr.mxu0 0.0
    %365 = vmatpush1.xpose.msra.mxu0 0.0
    %366 = vmatprep.subr.mxu0 0.0
    %367 = vmatpush1.xpose.msra.mxu0 0.0
    %368 = vmatprep.subr.mxu0 0.0
    %369 = vmatpush1.xpose.msra.mxu0 0.0
    %370 = vmatprep.subr.mxu0 0.0
    %371 = vmatpush1.xpose.msra.mxu0 0.0
    %372 = vmatprep.subr.mxu0 0.0
    %373 = vmatpush1.xpose.msra.mxu0 0.0
    %374 = vmatprep.subr.mxu0 0.0
    %375 = vmatpush1.xpose.msra.mxu0 0.0
    %376 = vmatprep.subr.mxu0 0.0
    %377 = vmatpush1.xpose.msra.mxu0 0.0
    %378 = vmatprep.subr.mxu0 0.0
    %379 = vmatpush1.xpose.msra.mxu0 0.0
    %380 = vmatprep.subr.mxu0 0.0
    %381 = vmatpush1.xpose.msra.mxu0 0.0
    %382 = vmatprep.subr.mxu0 0.0
    %383 = vmatpush1.xpose.msra.mxu0 0.0
    %384 = vmatprep.subr.mxu0 0.0
    %385 = vmatpush1.xpose.msra.mxu0 0.0
    %386 = vmatprep.mubr.f32.mxu0 0.0
    %387 = vmatmul.mubr.f32.gmra.mrb[0].mxu0 %v318
    %v388 = vpop.f32.mrb[0].mxu0
    %v389 = vadd.f32 0.0, %v388
    %v390 = vpop.f32.mrb[0].mxu0
    %391 = vdwg.mxu0
    %392 = vrot.lane.b32.xlu0 %v228, 96
    %v393 = vpop.permute.xlu0 %392
    %v394 = vsel %vm241, %v228, 0
    %v396 = vsel %vm241, %v393, 0
    %398 = vmatprep.subr.mxu0 0.0
    %399 = vmatpush1.xpose.msra.mxu0 %v396
    %400 = vmatprep.subr.mxu0 0.0
    %401 = vmatpush1.xpose.msra.mxu0 0.0
    %402 = vmatprep.subr.mxu0 0.0
    %403 = vmatpush1.xpose.msra.mxu0 0.0
    %404 = vmatprep.subr.mxu0 0.0
    %405 = vmatpush1.xpose.msra.mxu0 0.0
    %406 = vmatprep.subr.mxu0 0.0
    %407 = vmatpush1.xpose.msra.mxu0 0.0
    %408 = vmatprep.subr.mxu0 0.0
    %409 = vmatpush1.xpose.msra.mxu0 0.0
    %410 = vmatprep.subr.mxu0 0.0
    %411 = vmatpush1.xpose.msra.mxu0 0.0
    %412 = vmatprep.subr.mxu0 0.0
    %413 = vmatpush1.xpose.msra.mxu0 0.0
    %414 = vmatprep.subr.mxu0 0.0
    %415 = vmatpush1.xpose.msra.mxu0 0.0
    %416 = vmatprep.subr.mxu0 0.0
    %417 = vmatpush1.xpose.msra.mxu0 0.0
    %418 = vmatprep.subr.mxu0 0.0
    %419 = vmatpush1.xpose.msra.mxu0 0.0
    %420 = vmatprep.subr.mxu0 0.0
    %421 = vmatpush1.xpose.msra.mxu0 0.0
    %422 = vmatprep.subr.mxu0 0.0
    %423 = vmatpush1.xpose.msra.mxu0 0.0
    %424 = vmatprep.subr.mxu0 0.0
    %425 = vmatpush1.xpose.msra.mxu0 0.0
    %426 = vmatprep.subr.mxu0 0.0
    %427 = vmatpush1.xpose.msra.mxu0 0.0
    %428 = vmatprep.subr.mxu0 0.0
    %429 = vmatpush1.xpose.msra.mxu0 0.0
    %430 = vmatprep.subr.mxu0 0.0
    %431 = vmatpush1.xpose.msra.mxu0 0.0
    %432 = vmatprep.subr.mxu0 0.0
    %433 = vmatpush1.xpose.msra.mxu0 0.0
    %434 = vmatprep.subr.mxu0 0.0
    %435 = vmatpush1.xpose.msra.mxu0 0.0
    %436 = vmatprep.subr.mxu0 0.0
    %437 = vmatpush1.xpose.msra.mxu0 0.0
    %438 = vmatprep.subr.mxu0 0.0
    %439 = vmatpush1.xpose.msra.mxu0 0.0
    %440 = vmatprep.subr.mxu0 0.0
    %441 = vmatpush1.xpose.msra.mxu0 0.0
    %442 = vmatprep.subr.mxu0 0.0
    %443 = vmatpush1.xpose.msra.mxu0 0.0
    %444 = vmatprep.subr.mxu0 0.0
    %445 = vmatpush1.xpose.msra.mxu0 0.0
    %446 = vmatprep.subr.mxu0 0.0
    %447 = vmatpush1.xpose.msra.mxu0 0.0
    %448 = vmatprep.subr.mxu0 0.0
    %449 = vmatpush1.xpose.msra.mxu0 0.0
    %450 = vmatprep.subr.mxu0 0.0
    %451 = vmatpush1.xpose.msra.mxu0 0.0
    %452 = vmatprep.subr.mxu0 0.0
    %453 = vmatpush1.xpose.msra.mxu0 0.0
    %454 = vmatprep.subr.mxu0 0.0
    %455 = vmatpush1.xpose.msra.mxu0 0.0
    %456 = vmatprep.subr.mxu0 0.0
    %457 = vmatpush1.xpose.msra.mxu0 0.0
    %458 = vmatprep.subr.mxu0 0.0
    %459 = vmatpush1.xpose.msra.mxu0 0.0
    %460 = vmatprep.subr.mxu0 0.0
    %461 = vmatpush1.xpose.msra.mxu0 0.0
    %462 = vmatprep.mubr.f32.mxu0 0.0
    %463 = vmatmul.mubr.f32.gmra.mrb[0].mxu0 %v394
    %v464 = vpop.f32.mrb[0].mxu0
    %v465 = vadd.f32 0.0, %v464
    %v466 = vpop.f32.mrb[0].mxu0
    %467 = vdwg.mxu0
    %468 = vrot.lane.b32.xlu0 %v230, 96
    %v469 = vpop.permute.xlu0 %468
    %v470 = vsel %vm241, %v230, 0
    %v472 = vsel %vm241, %v469, 0
    %474 = vmatprep.subr.mxu0 0.0
    %475 = vmatpush1.xpose.msra.mxu0 %v472
    %476 = vmatprep.subr.mxu0 0.0
    %477 = vmatpush1.xpose.msra.mxu0 0.0
    %478 = vmatprep.subr.mxu0 0.0
    %479 = vmatpush1.xpose.msra.mxu0 0.0
    %480 = vmatprep.subr.mxu0 0.0
    %481 = vmatpush1.xpose.msra.mxu0 0.0
    %482 = vmatprep.subr.mxu0 0.0
    %483 = vmatpush1.xpose.msra.mxu0 0.0
    %484 = vmatprep.subr.mxu0 0.0
    %485 = vmatpush1.xpose.msra.mxu0 0.0
    %486 = vmatprep.subr.mxu0 0.0
    %487 = vmatpush1.xpose.msra.mxu0 0.0
    %488 = vmatprep.subr.mxu0 0.0
    %489 = vmatpush1.xpose.msra.mxu0 0.0
    %490 = vmatprep.subr.mxu0 0.0
    %491 = vmatpush1.xpose.msra.mxu0 0.0
    %492 = vmatprep.subr.mxu0 0.0
    %493 = vmatpush1.xpose.msra.mxu0 0.0
    %494 = vmatprep.subr.mxu0 0.0
    %495 = vmatpush1.xpose.msra.mxu0 0.0
    %496 = vmatprep.subr.mxu0 0.0
    %497 = vmatpush1.xpose.msra.mxu0 0.0
    %498 = vmatprep.subr.mxu0 0.0
    %499 = vmatpush1.xpose.msra.mxu0 0.0
    %500 = vmatprep.subr.mxu0 0.0
    %501 = vmatpush1.xpose.msra.mxu0 0.0
    %502 = vmatprep.subr.mxu0 0.0
    %503 = vmatpush1.xpose.msra.mxu0 0.0
    %504 = vmatprep.subr.mxu0 0.0
    %505 = vmatpush1.xpose.msra.mxu0 0.0
    %506 = vmatprep.subr.mxu0 0.0
    %507 = vmatpush1.xpose.msra.mxu0 0.0
    %508 = vmatprep.subr.mxu0 0.0
    %509 = vmatpush1.xpose.msra.mxu0 0.0
    %510 = vmatprep.subr.mxu0 0.0
    %511 = vmatpush1.xpose.msra.mxu0 0.0
    %512 = vmatprep.subr.mxu0 0.0
    %513 = vmatpush1.xpose.msra.mxu0 0.0
    %514 = vmatprep.subr.mxu0 0.0
    %515 = vmatpush1.xpose.msra.mxu0 0.0
    %516 = vmatprep.subr.mxu0 0.0
    %517 = vmatpush1.xpose.msra.mxu0 0.0
    %518 = vmatprep.subr.mxu0 0.0
    %519 = vmatpush1.xpose.msra.mxu0 0.0
    %520 = vmatprep.subr.mxu0 0.0
    %521 = vmatpush1.xpose.msra.mxu0 0.0
    %522 = vmatprep.subr.mxu0 0.0
    %523 = vmatpush1.xpose.msra.mxu0 0.0
    %524 = vmatprep.subr.mxu0 0.0
    %525 = vmatpush1.xpose.msra.mxu0 0.0
    %526 = vmatprep.subr.mxu0 0.0
    %527 = vmatpush1.xpose.msra.mxu0 0.0
    %528 = vmatprep.subr.mxu0 0.0
    %529 = vmatpush1.xpose.msra.mxu0 0.0
    %530 = vmatprep.subr.mxu0 0.0
    %531 = vmatpush1.xpose.msra.mxu0 0.0
    %532 = vmatprep.subr.mxu0 0.0
    %533 = vmatpush1.xpose.msra.mxu0 0.0
    %534 = vmatprep.subr.mxu0 0.0
    %535 = vmatpush1.xpose.msra.mxu0 0.0
    %536 = vmatprep.subr.mxu0 0.0
    %537 = vmatpush1.xpose.msra.mxu0 0.0
    %538 = vmatprep.mubr.f32.mxu0 0.0
    %539 = vmatmul.mubr.f32.gmra.mrb[0].mxu0 %v470
    %v540 = vpop.f32.mrb[0].mxu0
    %v541 = vadd.f32 0.0, %v540
    %v542 = vpop.f32.mrb[0].mxu0
    %543 = vdwg.mxu0
    %544 = vrot.lane.b32.xlu0 %v232, 96
    %v545 = vpop.permute.xlu0 %544
    %v546 = vsel %vm241, %v232, 0
    %v548 = vsel %vm241, %v545, 0
    %550 = vmatprep.subr.mxu0 0.0
    %551 = vmatpush1.xpose.msra.mxu0 %v548
    %552 = vmatprep.subr.mxu0 0.0
    %553 = vmatpush1.xpose.msra.mxu0 0.0
    %554 = vmatprep.subr.mxu0 0.0
    %555 = vmatpush1.xpose.msra.mxu0 0.0
    %556 = vmatprep.subr.mxu0 0.0
    %557 = vmatpush1.xpose.msra.mxu0 0.0
    %558 = vmatprep.subr.mxu0 0.0
    %559 = vmatpush1.xpose.msra.mxu0 0.0
    %560 = vmatprep.subr.mxu0 0.0
    %561 = vmatpush1.xpose.msra.mxu0 0.0
    %562 = vmatprep.subr.mxu0 0.0
    %563 = vmatpush1.xpose.msra.mxu0 0.0
    %564 = vmatprep.subr.mxu0 0.0
    %565 = vmatpush1.xpose.msra.mxu0 0.0
    %566 = vmatprep.subr.mxu0 0.0
    %567 = vmatpush1.xpose.msra.mxu0 0.0
    %568 = vmatprep.subr.mxu0 0.0
    %569 = vmatpush1.xpose.msra.mxu0 0.0
    %570 = vmatprep.subr.mxu0 0.0
    %571 = vmatpush1.xpose.msra.mxu0 0.0
    %572 = vmatprep.subr.mxu0 0.0
    %573 = vmatpush1.xpose.msra.mxu0 0.0
    %574 = vmatprep.subr.mxu0 0.0
    %575 = vmatpush1.xpose.msra.mxu0 0.0
    %576 = vmatprep.subr.mxu0 0.0
    %577 = vmatpush1.xpose.msra.mxu0 0.0
    %578 = vmatprep.subr.mxu0 0.0
    %579 = vmatpush1.xpose.msra.mxu0 0.0
    %580 = vmatprep.subr.mxu0 0.0
    %581 = vmatpush1.xpose.msra.mxu0 0.0
    %582 = vmatprep.subr.mxu0 0.0
    %583 = vmatpush1.xpose.msra.mxu0 0.0
    %584 = vmatprep.subr.mxu0 0.0
    %585 = vmatpush1.xpose.msra.mxu0 0.0
    %586 = vmatprep.subr.mxu0 0.0
    %587 = vmatpush1.xpose.msra.mxu0 0.0
    %588 = vmatprep.subr.mxu0 0.0
    %589 = vmatpush1.xpose.msra.mxu0 0.0
    %590 = vmatprep.subr.mxu0 0.0
    %591 = vmatpush1.xpose.msra.mxu0 0.0
    %592 = vmatprep.subr.mxu0 0.0
    %593 = vmatpush1.xpose.msra.mxu0 0.0
    %594 = vmatprep.subr.mxu0 0.0
    %595 = vmatpush1.xpose.msra.mxu0 0.0
    %596 = vmatprep.subr.mxu0 0.0
    %597 = vmatpush1.xpose.msra.mxu0 0.0
    %598 = vmatprep.subr.mxu0 0.0
    %599 = vmatpush1.xpose.msra.mxu0 0.0
    %600 = vmatprep.subr.mxu0 0.0
    %601 = vmatpush1.xpose.msra.mxu0 0.0
    %602 = vmatprep.subr.mxu0 0.0
    %603 = vmatpush1.xpose.msra.mxu0 0.0
    %604 = vmatprep.subr.mxu0 0.0
    %605 = vmatpush1.xpose.msra.mxu0 0.0
    %606 = vmatprep.subr.mxu0 0.0
    %607 = vmatpush1.xpose.msra.mxu0 0.0
    %608 = vmatprep.subr.mxu0 0.0
    %609 = vmatpush1.xpose.msra.mxu0 0.0
    %610 = vmatprep.subr.mxu0 0.0
    %611 = vmatpush1.xpose.msra.mxu0 0.0
    %612 = vmatprep.subr.mxu0 0.0
    %613 = vmatpush1.xpose.msra.mxu0 0.0
    %614 = vmatprep.mubr.f32.mxu0 0.0
    %615 = vmatmul.mubr.f32.gmra.mrb[0].mxu0 %v546
    %v616 = vpop.f32.mrb[0].mxu0
    %v617 = vadd.f32 0.0, %v616
    %v618 = vpop.f32.mrb[0].mxu0
    %619 = vdwg.mxu0
    %620 = vrot.lane.b32.xlu0 %v234, 96
    %v621 = vpop.permute.xlu0 %620
    %v622 = vsel %vm241, %v234, 0
    %v624 = vsel %vm241, %v621, 0
    %626 = vmatprep.subr.mxu0 0.0
    %627 = vmatpush1.xpose.msra.mxu0 %v624
    %628 = vmatprep.subr.mxu0 0.0
    %629 = vmatpush1.xpose.msra.mxu0 0.0
    %630 = vmatprep.subr.mxu0 0.0
    %631 = vmatpush1.xpose.msra.mxu0 0.0
    %632 = vmatprep.subr.mxu0 0.0
    %633 = vmatpush1.xpose.msra.mxu0 0.0
    %634 = vmatprep.subr.mxu0 0.0
    %635 = vmatpush1.xpose.msra.mxu0 0.0
    %636 = vmatprep.subr.mxu0 0.0
    %637 = vmatpush1.xpose.msra.mxu0 0.0
    %638 = vmatprep.subr.mxu0 0.0
    %639 = vmatpush1.xpose.msra.mxu0 0.0
    %640 = vmatprep.subr.mxu0 0.0
    %641 = vmatpush1.xpose.msra.mxu0 0.0
    %642 = vmatprep.subr.mxu0 0.0
    %643 = vmatpush1.xpose.msra.mxu0 0.0
    %644 = vmatprep.subr.mxu0 0.0
    %645 = vmatpush1.xpose.msra.mxu0 0.0
    %646 = vmatprep.subr.mxu0 0.0
    %647 = vmatpush1.xpose.msra.mxu0 0.0
    %648 = vmatprep.subr.mxu0 0.0
    %649 = vmatpush1.xpose.msra.mxu0 0.0
    %650 = vmatprep.subr.mxu0 0.0
    %651 = vmatpush1.xpose.msra.mxu0 0.0
    %652 = vmatprep.subr.mxu0 0.0
    %653 = vmatpush1.xpose.msra.mxu0 0.0
    %654 = vmatprep.subr.mxu0 0.0
    %655 = vmatpush1.xpose.msra.mxu0 0.0
    %656 = vmatprep.subr.mxu0 0.0
    %657 = vmatpush1.xpose.msra.mxu0 0.0
    %658 = vmatprep.subr.mxu0 0.0
    %659 = vmatpush1.xpose.msra.mxu0 0.0
    %660 = vmatprep.subr.mxu0 0.0
    %661 = vmatpush1.xpose.msra.mxu0 0.0
    %662 = vmatprep.subr.mxu0 0.0
    %663 = vmatpush1.xpose.msra.mxu0 0.0
    %664 = vmatprep.subr.mxu0 0.0
    %665 = vmatpush1.xpose.msra.mxu0 0.0
    %666 = vmatprep.subr.mxu0 0.0
    %667 = vmatpush1.xpose.msra.mxu0 0.0
    %668 = vmatprep.subr.mxu0 0.0
    %669 = vmatpush1.xpose.msra.mxu0 0.0
    %670 = vmatprep.subr.mxu0 0.0
    %671 = vmatpush1.xpose.msra.mxu0 0.0
    %672 = vmatprep.subr.mxu0 0.0
    %673 = vmatpush1.xpose.msra.mxu0 0.0
    %674 = vmatprep.subr.mxu0 0.0
    %675 = vmatpush1.xpose.msra.mxu0 0.0
    %676 = vmatprep.subr.mxu0 0.0
    %677 = vmatpush1.xpose.msra.mxu0 0.0
    %678 = vmatprep.subr.mxu0 0.0
    %679 = vmatpush1.xpose.msra.mxu0 0.0
    %680 = vmatprep.subr.mxu0 0.0
    %681 = vmatpush1.xpose.msra.mxu0 0.0
    %682 = vmatprep.subr.mxu0 0.0
    %683 = vmatpush1.xpose.msra.mxu0 0.0
    %684 = vmatprep.subr.mxu0 0.0
    %685 = vmatpush1.xpose.msra.mxu0 0.0
    %686 = vmatprep.subr.mxu0 0.0
    %687 = vmatpush1.xpose.msra.mxu0 0.0
    %688 = vmatprep.subr.mxu0 0.0
    %689 = vmatpush1.xpose.msra.mxu0 0.0
    %690 = vmatprep.mubr.f32.mxu0 0.0
    %691 = vmatmul.mubr.f32.gmra.mrb[0].mxu0 %v622
    %v692 = vpop.f32.mrb[0].mxu0
    %v693 = vadd.f32 0.0, %v692
    %v694 = vpop.f32.mrb[0].mxu0
    %695 = vdwg.mxu0
    %696 = vrot.lane.b32.xlu0 %v236, 96
    %v697 = vpop.permute.xlu0 %696
    %v698 = vsel %vm241, %v236, 0
    %v700 = vsel %vm241, %v697, 0
    %702 = vmatprep.subr.mxu0 0.0
    %703 = vmatpush1.xpose.msra.mxu0 %v700
    %704 = vmatprep.subr.mxu0 0.0
    %705 = vmatpush1.xpose.msra.mxu0 0.0
    %706 = vmatprep.subr.mxu0 0.0
    %707 = vmatpush1.xpose.msra.mxu0 0.0
    %708 = vmatprep.subr.mxu0 0.0
    %709 = vmatpush1.xpose.msra.mxu0 0.0
    %710 = vmatprep.subr.mxu0 0.0
    %711 = vmatpush1.xpose.msra.mxu0 0.0
    %712 = vmatprep.subr.mxu0 0.0
    %713 = vmatpush1.xpose.msra.mxu0 0.0
    %714 = vmatprep.subr.mxu0 0.0
    %715 = vmatpush1.xpose.msra.mxu0 0.0
    %716 = vmatprep.subr.mxu0 0.0
    %717 = vmatpush1.xpose.msra.mxu0 0.0
    %718 = vmatprep.subr.mxu0 0.0
    %719 = vmatpush1.xpose.msra.mxu0 0.0
    %720 = vmatprep.subr.mxu0 0.0
    %721 = vmatpush1.xpose.msra.mxu0 0.0
    %722 = vmatprep.subr.mxu0 0.0
    %723 = vmatpush1.xpose.msra.mxu0 0.0
    %724 = vmatprep.subr.mxu0 0.0
    %725 = vmatpush1.xpose.msra.mxu0 0.0
    %726 = vmatprep.subr.mxu0 0.0
    %727 = vmatpush1.xpose.msra.mxu0 0.0
    %728 = vmatprep.subr.mxu0 0.0
    %729 = vmatpush1.xpose.msra.mxu0 0.0
    %730 = vmatprep.subr.mxu0 0.0
    %731 = vmatpush1.xpose.msra.mxu0 0.0
    %732 = vmatprep.subr.mxu0 0.0
    %733 = vmatpush1.xpose.msra.mxu0 0.0
    %734 = vmatprep.subr.mxu0 0.0
    %735 = vmatpush1.xpose.msra.mxu0 0.0
    %736 = vmatprep.subr.mxu0 0.0
    %737 = vmatpush1.xpose.msra.mxu0 0.0
    %738 = vmatprep.subr.mxu0 0.0
    %739 = vmatpush1.xpose.msra.mxu0 0.0
    %740 = vmatprep.subr.mxu0 0.0
    %741 = vmatpush1.xpose.msra.mxu0 0.0
    %742 = vmatprep.subr.mxu0 0.0
    %743 = vmatpush1.xpose.msra.mxu0 0.0
    %744 = vmatprep.subr.mxu0 0.0
    %745 = vmatpush1.xpose.msra.mxu0 0.0
    %746 = vmatprep.subr.mxu0 0.0
    %747 = vmatpush1.xpose.msra.mxu0 0.0
    %748 = vmatprep.subr.mxu0 0.0
    %749 = vmatpush1.xpose.msra.mxu0 0.0
    %750 = vmatprep.subr.mxu0 0.0
    %751 = vmatpush1.xpose.msra.mxu0 0.0
    %752 = vmatprep.subr.mxu0 0.0
    %753 = vmatpush1.xpose.msra.mxu0 0.0
    %754 = vmatprep.subr.mxu0 0.0
    %755 = vmatpush1.xpose.msra.mxu0 0.0
    %756 = vmatprep.subr.mxu0 0.0
    %757 = vmatpush1.xpose.msra.mxu0 0.0
    %758 = vmatprep.subr.mxu0 0.0
    %759 = vmatpush1.xpose.msra.mxu0 0.0
    %760 = vmatprep.subr.mxu0 0.0
    %761 = vmatpush1.xpose.msra.mxu0 0.0
    %762 = vmatprep.subr.mxu0 0.0
    %763 = vmatpush1.xpose.msra.mxu0 0.0
    %764 = vmatprep.subr.mxu0 0.0
    %765 = vmatpush1.xpose.msra.mxu0 0.0
    %766 = vmatprep.mubr.f32.mxu0 0.0
    %767 = vmatmul.mubr.f32.gmra.mrb[0].mxu0 %v698
    %v768 = vpop.f32.mrb[0].mxu0
    %v769 = vadd.f32 0.0, %v768
    %v770 = vpop.f32.mrb[0].mxu0
    %771 = vdwg.mxu0
    %772 = vrot.lane.b32.xlu0 %v238, 96
    %v773 = vpop.permute.xlu0 %772
    %v774 = vsel %vm241, %v238, 0
    %v776 = vsel %vm241, %v773, 0
    %778 = vmatprep.subr.mxu0 0.0
    %779 = vmatpush1.xpose.msra.mxu0 %v776
    %780 = vmatprep.subr.mxu0 0.0
    %781 = vmatpush1.xpose.msra.mxu0 0.0
    %782 = vmatprep.subr.mxu0 0.0
    %783 = vmatpush1.xpose.msra.mxu0 0.0
    %784 = vmatprep.subr.mxu0 0.0
    %785 = vmatpush1.xpose.msra.mxu0 0.0
    %786 = vmatprep.subr.mxu0 0.0
    %787 = vmatpush1.xpose.msra.mxu0 0.0
    %788 = vmatprep.subr.mxu0 0.0
    %789 = vmatpush1.xpose.msra.mxu0 0.0
    %790 = vmatprep.subr.mxu0 0.0
    %791 = vmatpush1.xpose.msra.mxu0 0.0
    %792 = vmatprep.subr.mxu0 0.0
    %793 = vmatpush1.xpose.msra.mxu0 0.0
    %794 = vmatprep.subr.mxu0 0.0
    %795 = vmatpush1.xpose.msra.mxu0 0.0
    %796 = vmatprep.subr.mxu0 0.0
    %797 = vmatpush1.xpose.msra.mxu0 0.0
    %798 = vmatprep.subr.mxu0 0.0
    %799 = vmatpush1.xpose.msra.mxu0 0.0
    %800 = vmatprep.subr.mxu0 0.0
    %801 = vmatpush1.xpose.msra.mxu0 0.0
    %802 = vmatprep.subr.mxu0 0.0
    %803 = vmatpush1.xpose.msra.mxu0 0.0
    %804 = vmatprep.subr.mxu0 0.0
    %805 = vmatpush1.xpose.msra.mxu0 0.0
    %806 = vmatprep.subr.mxu0 0.0
    %807 = vmatpush1.xpose.msra.mxu0 0.0
    %808 = vmatprep.subr.mxu0 0.0
    %809 = vmatpush1.xpose.msra.mxu0 0.0
    %810 = vmatprep.subr.mxu0 0.0
    %811 = vmatpush1.xpose.msra.mxu0 0.0
    %812 = vmatprep.subr.mxu0 0.0
    %813 = vmatpush1.xpose.msra.mxu0 0.0
    %814 = vmatprep.subr.mxu0 0.0
    %815 = vmatpush1.xpose.msra.mxu0 0.0
    %816 = vmatprep.subr.mxu0 0.0
    %817 = vmatpush1.xpose.msra.mxu0 0.0
    %818 = vmatprep.subr.mxu0 0.0
    %819 = vmatpush1.xpose.msra.mxu0 0.0
    %820 = vmatprep.subr.mxu0 0.0
    %821 = vmatpush1.xpose.msra.mxu0 0.0
    %822 = vmatprep.subr.mxu0 0.0
    %823 = vmatpush1.xpose.msra.mxu0 0.0
    %824 = vmatprep.subr.mxu0 0.0
    %825 = vmatpush1.xpose.msra.mxu0 0.0
    %826 = vmatprep.subr.mxu0 0.0
    %827 = vmatpush1.xpose.msra.mxu0 0.0
    %828 = vmatprep.subr.mxu0 0.0
    %829 = vmatpush1.xpose.msra.mxu0 0.0
    %830 = vmatprep.subr.mxu0 0.0
    %831 = vmatpush1.xpose.msra.mxu0 0.0
    %832 = vmatprep.subr.mxu0 0.0
    %833 = vmatpush1.xpose.msra.mxu0 0.0
    %834 = vmatprep.subr.mxu0 0.0
    %835 = vmatpush1.xpose.msra.mxu0 0.0
    %836 = vmatprep.subr.mxu0 0.0
    %837 = vmatpush1.xpose.msra.mxu0 0.0
    %838 = vmatprep.subr.mxu0 0.0
    %839 = vmatpush1.xpose.msra.mxu0 0.0
    %840 = vmatprep.subr.mxu0 0.0
    %841 = vmatpush1.xpose.msra.mxu0 0.0
    %842 = vmatprep.mubr.f32.mxu0 0.0
    %843 = vmatmul.mubr.f32.gmra.mrb[0].mxu0 %v774
    %v844 = vpop.f32.mrb[0].mxu0
    %v845 = vadd.f32 0.0, %v844
    %v846 = vpop.f32.mrb[0].mxu0
    %847 = vdwg.mxu0
    %v848 = vsel %vm241, %v313, -inf
    %849 = vmax.xlane.f32.xlu0 %v848
    %v850 = vpop.xlane.xlu0 %849
    %v851 = vsel %vm241, %v389, -inf
    %852 = vmax.xlane.f32.xlu0 %v851
    %v853 = vpop.xlane.xlu0 %852
    %v854 = vsel %vm241, %v465, -inf
    %855 = vmax.xlane.f32.xlu0 %v854
    %v856 = vpop.xlane.xlu0 %855
    %v857 = vsel %vm241, %v541, -inf
    %858 = vmax.xlane.f32.xlu0 %v857
    %v859 = vpop.xlane.xlu0 %858
    %v860 = vsel %vm241, %v617, -inf
    %861 = vmax.xlane.f32.xlu0 %v860
    %v862 = vpop.xlane.xlu0 %861
    %v863 = vsel %vm241, %v693, -inf
    %864 = vmax.xlane.f32.xlu0 %v863
    %v865 = vpop.xlane.xlu0 %864
    %v866 = vsel %vm241, %v769, -inf
    %867 = vmax.xlane.f32.xlu0 %v866
    %v868 = vpop.xlane.xlu0 %867
    %v869 = vsel %vm241, %v845, -inf
    %870 = vmax.xlane.f32.xlu0 %v869
    %v871 = vpop.xlane.xlu0 %870
    %v872 = vsub.f32 %v313, %v850
    %v873 = vsub.f32 %v389, %v853
    %v874 = vsub.f32 %v465, %v856
    %v875 = vsub.f32 %v541, %v859
    %v876 = vsub.f32 %v617, %v862
    %v877 = vsub.f32 %v693, %v865
    %v878 = vsub.f32 %v769, %v868
    %v879 = vsub.f32 %v845, %v871
    %v880 = vmul.f32 %v872, 1.442695
    %v881 = vpow.pop %v880
    %v882 = vmul.f32 %v873, 1.442695
    %v883 = vpow.pop %v882
    %v884 = vmul.f32 %v874, 1.442695
    %v885 = vpow.pop %v884
    %v886 = vmul.f32 %v875, 1.442695
    %v887 = vpow.pop %v886
    %v888 = vmul.f32 %v876, 1.442695
    %v889 = vpow.pop %v888
    %v890 = vmul.f32 %v877, 1.442695
    %v891 = vpow.pop %v890
    %v892 = vmul.f32 %v878, 1.442695
    %v893 = vpow.pop %v892
    %v894 = vmul.f32 %v879, 1.442695
    %v895 = vpow.pop %v894
    %v896 = vsel %vm241, %v881, 0.0
    %897 = vadd.xlane.f32.xlu0 %v896
    %v898 = vpop.xlane.xlu0 %897
    %v899 = vsel %vm241, %v883, 0.0
    %900 = vadd.xlane.f32.xlu0 %v899
    %v901 = vpop.xlane.xlu0 %900
    %v902 = vsel %vm241, %v885, 0.0
    %903 = vadd.xlane.f32.xlu0 %v902
    %v904 = vpop.xlane.xlu0 %903
    %v905 = vsel %vm241, %v887, 0.0
    %906 = vadd.xlane.f32.xlu0 %v905
    %v907 = vpop.xlane.xlu0 %906
    %v908 = vsel %vm241, %v889, 0.0
    %909 = vadd.xlane.f32.xlu0 %v908
    %v910 = vpop.xlane.xlu0 %909
    %v911 = vsel %vm241, %v891, 0.0
    %912 = vadd.xlane.f32.xlu0 %v911
    %v913 = vpop.xlane.xlu0 %912
    %v914 = vsel %vm241, %v893, 0.0
    %915 = vadd.xlane.f32.xlu0 %v914
    %v916 = vpop.xlane.xlu0 %915
    %v917 = vsel %vm241, %v895, 0.0
    %918 = vadd.xlane.f32.xlu0 %v917
    %v919 = vpop.xlane.xlu0 %918
    %v920 = vrcp.pop %v898
    %v921 = vrcp.pop %v901
    %v922 = vrcp.pop %v904
    %v923 = vrcp.pop %v907
    %v924 = vrcp.pop %v910
    %v925 = vrcp.pop %v913
    %v926 = vrcp.pop %v916
    %v927 = vrcp.pop %v919
    %v928 = vmul.f32 %v881, %v920
    %v929 = vmul.f32 %v883, %v921
    %v930 = vmul.f32 %v885, %v922
    %v931 = vmul.f32 %v887, %v923
    %v932 = vmul.f32 %v889, %v924
    %v933 = vmul.f32 %v891, %v925
    %v934 = vmul.f32 %v893, %v926
    %v935 = vmul.f32 %v895, %v927
    %936 = vrot.lane.b32.xlu0 %v217, 64
    %v937 = vpop.permute.xlu0 %936
    %v940 = vsel %vm241, %v928, 0
    %942 = vmatprep.subr.mxu0 0.0
    %943 = vmatpush1.msra.mxu0 %v937
    %944 = vmatprep.subr.mxu0 0.0
    %945 = vmatpush1.msra.mxu0 0.0
    %946 = vmatprep.subr.mxu0 0.0
    %947 = vmatpush1.msra.mxu0 0.0
    %948 = vmatprep.subr.mxu0 0.0
    %949 = vmatpush1.msra.mxu0 0.0
    %950 = vmatprep.subr.mxu0 0.0
    %951 = vmatpush1.msra.mxu0 0.0
    %952 = vmatprep.subr.mxu0 0.0
    %953 = vmatpush1.msra.mxu0 0.0
    %954 = vmatprep.subr.mxu0 0.0
    %955 = vmatpush1.msra.mxu0 0.0
    %956 = vmatprep.subr.mxu0 0.0
    %957 = vmatpush1.msra.mxu0 0.0
    %958 = vmatprep.subr.mxu0 0.0
    %959 = vmatpush1.msra.mxu0 0.0
    %960 = vmatprep.subr.mxu0 0.0
    %961 = vmatpush1.msra.mxu0 0.0
    %962 = vmatprep.subr.mxu0 0.0
    %963 = vmatpush1.msra.mxu0 0.0
    %964 = vmatprep.subr.mxu0 0.0
    %965 = vmatpush1.msra.mxu0 0.0
    %966 = vmatprep.subr.mxu0 0.0
    %967 = vmatpush1.msra.mxu0 0.0
    %968 = vmatprep.subr.mxu0 0.0
    %969 = vmatpush1.msra.mxu0 0.0
    %970 = vmatprep.subr.mxu0 0.0
    %971 = vmatpush1.msra.mxu0 0.0
    %972 = vmatprep.subr.mxu0 0.0
    %973 = vmatpush1.msra.mxu0 0.0
    %974 = vmatprep.subr.mxu0 0.0
    %975 = vmatpush1.msra.mxu0 0.0
    %976 = vmatprep.subr.mxu0 0.0
    %977 = vmatpush1.msra.mxu0 0.0
    %978 = vmatprep.subr.mxu0 0.0
    %979 = vmatpush1.msra.mxu0 0.0
    %980 = vmatprep.subr.mxu0 0.0
    %981 = vmatpush1.msra.mxu0 0.0
    %982 = vmatprep.subr.mxu0 0.0
    %983 = vmatpush1.msra.mxu0 0.0
    %984 = vmatprep.subr.mxu0 0.0
    %985 = vmatpush1.msra.mxu0 0.0
    %986 = vmatprep.subr.mxu0 0.0
    %987 = vmatpush1.msra.mxu0 0.0
    %988 = vmatprep.subr.mxu0 0.0
    %989 = vmatpush1.msra.mxu0 0.0
    %990 = vmatprep.subr.mxu0 0.0
    %991 = vmatpush1.msra.mxu0 0.0
    %992 = vmatprep.subr.mxu0 0.0
    %993 = vmatpush1.msra.mxu0 0.0
    %994 = vmatprep.subr.mxu0 0.0
    %995 = vmatpush1.msra.mxu0 0.0
    %996 = vmatprep.subr.mxu0 0.0
    %997 = vmatpush1.msra.mxu0 0.0
    %998 = vmatprep.subr.mxu0 0.0
    %999 = vmatpush1.msra.mxu0 0.0
    %1000 = vmatprep.subr.mxu0 0.0
    %1001 = vmatpush1.msra.mxu0 0.0
    %1002 = vmatprep.subr.mxu0 0.0
    %1003 = vmatpush1.msra.mxu0 0.0
    %1004 = vmatprep.subr.mxu0 0.0
    %1005 = vmatpush1.msra.mxu0 0.0
    %1006 = vmatprep.mubr.f32.mxu0 0.0
    %1007 = vmatmul.mubr.f32.gmra.mrb[0].mxu0 %v940
    %v1008 = vpop.f32.mrb[0].mxu0
    %v1009 = vadd.f32 0.0, %v1008
    %v1010 = vpop.f32.mrb[0].mxu0
    %1011 = vdwg.mxu0
    %1012 = vrot.lane.b32.xlu0 %v222, 64
    %v1013 = vpop.permute.xlu0 %1012
    %v1016 = vsel %vm241, %v929, 0
    %1018 = vmatprep.subr.mxu0 0.0
    %1019 = vmatpush1.msra.mxu0 %v1013
    %1020 = vmatprep.subr.mxu0 0.0
    %1021 = vmatpush1.msra.mxu0 0.0
    %1022 = vmatprep.subr.mxu0 0.0
    %1023 = vmatpush1.msra.mxu0 0.0
    %1024 = vmatprep.subr.mxu0 0.0
    %1025 = vmatpush1.msra.mxu0 0.0
    %1026 = vmatprep.subr.mxu0 0.0
    %1027 = vmatpush1.msra.mxu0 0.0
    %1028 = vmatprep.subr.mxu0 0.0
    %1029 = vmatpush1.msra.mxu0 0.0
    %1030 = vmatprep.subr.mxu0 0.0
    %1031 = vmatpush1.msra.mxu0 0.0
    %1032 = vmatprep.subr.mxu0 0.0
    %1033 = vmatpush1.msra.mxu0 0.0
    %1034 = vmatprep.subr.mxu0 0.0
    %1035 = vmatpush1.msra.mxu0 0.0
    %1036 = vmatprep.subr.mxu0 0.0
    %1037 = vmatpush1.msra.mxu0 0.0
    %1038 = vmatprep.subr.mxu0 0.0
    %1039 = vmatpush1.msra.mxu0 0.0
    %1040 = vmatprep.subr.mxu0 0.0
    %1041 = vmatpush1.msra.mxu0 0.0
    %1042 = vmatprep.subr.mxu0 0.0
    %1043 = vmatpush1.msra.mxu0 0.0
    %1044 = vmatprep.subr.mxu0 0.0
    %1045 = vmatpush1.msra.mxu0 0.0
    %1046 = vmatprep.subr.mxu0 0.0
    %1047 = vmatpush1.msra.mxu0 0.0
    %1048 = vmatprep.subr.mxu0 0.0
    %1049 = vmatpush1.msra.mxu0 0.0
    %1050 = vmatprep.subr.mxu0 0.0
    %1051 = vmatpush1.msra.mxu0 0.0
    %1052 = vmatprep.subr.mxu0 0.0
    %1053 = vmatpush1.msra.mxu0 0.0
    %1054 = vmatprep.subr.mxu0 0.0
    %1055 = vmatpush1.msra.mxu0 0.0
    %1056 = vmatprep.subr.mxu0 0.0
    %1057 = vmatpush1.msra.mxu0 0.0
    %1058 = vmatprep.subr.mxu0 0.0
    %1059 = vmatpush1.msra.mxu0 0.0
    %1060 = vmatprep.subr.mxu0 0.0
    %1061 = vmatpush1.msra.mxu0 0.0
    %1062 = vmatprep.subr.mxu0 0.0
    %1063 = vmatpush1.msra.mxu0 0.0
    %1064 = vmatprep.subr.mxu0 0.0
    %1065 = vmatpush1.msra.mxu0 0.0
    %1066 = vmatprep.subr.mxu0 0.0
    %1067 = vmatpush1.msra.mxu0 0.0
    %1068 = vmatprep.subr.mxu0 0.0
    %1069 = vmatpush1.msra.mxu0 0.0
    %1070 = vmatprep.subr.mxu0 0.0
    %1071 = vmatpush1.msra.mxu0 0.0
    %1072 = vmatprep.subr.mxu0 0.0
    %1073 = vmatpush1.msra.mxu0 0.0
    %1074 = vmatprep.subr.mxu0 0.0
    %1075 = vmatpush1.msra.mxu0 0.0
    %1076 = vmatprep.subr.mxu0 0.0
    %1077 = vmatpush1.msra.mxu0 0.0
    %1078 = vmatprep.subr.mxu0 0.0
    %1079 = vmatpush1.msra.mxu0 0.0
    %1080 = vmatprep.subr.mxu0 0.0
    %1081 = vmatpush1.msra.mxu0 0.0
    %1082 = vmatprep.mubr.f32.mxu0 0.0
    %1083 = vmatmul.mubr.f32.gmra.mrb[0].mxu0 %v1016
    %v1084 = vpop.f32.mrb[0].mxu0
    %v1085 = vadd.f32 0.0, %v1084
    %v1086 = vpop.f32.mrb[0].mxu0
    %1087 = vdwg.mxu0
    %1088 = vrot.lane.b32.xlu0 %v228, 64
    %v1089 = vpop.permute.xlu0 %1088
    %v1092 = vsel %vm241, %v930, 0
    %1094 = vmatprep.subr.mxu0 0.0
    %1095 = vmatpush1.msra.mxu0 %v1089
    %1096 = vmatprep.subr.mxu0 0.0
    %1097 = vmatpush1.msra.mxu0 0.0
    %1098 = vmatprep.subr.mxu0 0.0
    %1099 = vmatpush1.msra.mxu0 0.0
    %1100 = vmatprep.subr.mxu0 0.0
    %1101 = vmatpush1.msra.mxu0 0.0
    %1102 = vmatprep.subr.mxu0 0.0
    %1103 = vmatpush1.msra.mxu0 0.0
    %1104 = vmatprep.subr.mxu0 0.0
    %1105 = vmatpush1.msra.mxu0 0.0
    %1106 = vmatprep.subr.mxu0 0.0
    %1107 = vmatpush1.msra.mxu0 0.0
    %1108 = vmatprep.subr.mxu0 0.0
    %1109 = vmatpush1.msra.mxu0 0.0
    %1110 = vmatprep.subr.mxu0 0.0
    %1111 = vmatpush1.msra.mxu0 0.0
    %1112 = vmatprep.subr.mxu0 0.0
    %1113 = vmatpush1.msra.mxu0 0.0
    %1114 = vmatprep.subr.mxu0 0.0
    %1115 = vmatpush1.msra.mxu0 0.0
    %1116 = vmatprep.subr.mxu0 0.0
    %1117 = vmatpush1.msra.mxu0 0.0
    %1118 = vmatprep.subr.mxu0 0.0
    %1119 = vmatpush1.msra.mxu0 0.0
    %1120 = vmatprep.subr.mxu0 0.0
    %1121 = vmatpush1.msra.mxu0 0.0
    %1122 = vmatprep.subr.mxu0 0.0
    %1123 = vmatpush1.msra.mxu0 0.0
    %1124 = vmatprep.subr.mxu0 0.0
    %1125 = vmatpush1.msra.mxu0 0.0
    %1126 = vmatprep.subr.mxu0 0.0
    %1127 = vmatpush1.msra.mxu0 0.0
    %1128 = vmatprep.subr.mxu0 0.0
    %1129 = vmatpush1.msra.mxu0 0.0
    %1130 = vmatprep.subr.mxu0 0.0
    %1131 = vmatpush1.msra.mxu0 0.0
    %1132 = vmatprep.subr.mxu0 0.0
    %1133 = vmatpush1.msra.mxu0 0.0
    %1134 = vmatprep.subr.mxu0 0.0
    %1135 = vmatpush1.msra.mxu0 0.0
    %1136 = vmatprep.subr.mxu0 0.0
    %1137 = vmatpush1.msra.mxu0 0.0
    %1138 = vmatprep.subr.mxu0 0.0
    %1139 = vmatpush1.msra.mxu0 0.0
    %1140 = vmatprep.subr.mxu0 0.0
    %1141 = vmatpush1.msra.mxu0 0.0
    %1142 = vmatprep.subr.mxu0 0.0
    %1143 = vmatpush1.msra.mxu0 0.0
    %1144 = vmatprep.subr.mxu0 0.0
    %1145 = vmatpush1.msra.mxu0 0.0
    %1146 = vmatprep.subr.mxu0 0.0
    %1147 = vmatpush1.msra.mxu0 0.0
    %1148 = vmatprep.subr.mxu0 0.0
    %1149 = vmatpush1.msra.mxu0 0.0
    %1150 = vmatprep.subr.mxu0 0.0
    %1151 = vmatpush1.msra.mxu0 0.0
    %1152 = vmatprep.subr.mxu0 0.0
    %1153 = vmatpush1.msra.mxu0 0.0
    %1154 = vmatprep.subr.mxu0 0.0
    %1155 = vmatpush1.msra.mxu0 0.0
    %1156 = vmatprep.subr.mxu0 0.0
    %1157 = vmatpush1.msra.mxu0 0.0
    %1158 = vmatprep.mubr.f32.mxu0 0.0
    %1159 = vmatmul.mubr.f32.gmra.mrb[0].mxu0 %v1092
    %v1160 = vpop.f32.mrb[0].mxu0
    %v1161 = vadd.f32 0.0, %v1160
    %v1162 = vpop.f32.mrb[0].mxu0
    %1163 = vdwg.mxu0
    %1164 = vrot.lane.b32.xlu0 %v230, 64
    %v1165 = vpop.permute.xlu0 %1164
    %v1168 = vsel %vm241, %v931, 0
    %1170 = vmatprep.subr.mxu0 0.0
    %1171 = vmatpush1.msra.mxu0 %v1165
    %1172 = vmatprep.subr.mxu0 0.0
    %1173 = vmatpush1.msra.mxu0 0.0
    %1174 = vmatprep.subr.mxu0 0.0
    %1175 = vmatpush1.msra.mxu0 0.0
    %1176 = vmatprep.subr.mxu0 0.0
    %1177 = vmatpush1.msra.mxu0 0.0
    %1178 = vmatprep.subr.mxu0 0.0
    %1179 = vmatpush1.msra.mxu0 0.0
    %1180 = vmatprep.subr.mxu0 0.0
    %1181 = vmatpush1.msra.mxu0 0.0
    %1182 = vmatprep.subr.mxu0 0.0
    %1183 = vmatpush1.msra.mxu0 0.0
    %1184 = vmatprep.subr.mxu0 0.0
    %1185 = vmatpush1.msra.mxu0 0.0
    %1186 = vmatprep.subr.mxu0 0.0
    %1187 = vmatpush1.msra.mxu0 0.0
    %1188 = vmatprep.subr.mxu0 0.0
    %1189 = vmatpush1.msra.mxu0 0.0
    %1190 = vmatprep.subr.mxu0 0.0
    %1191 = vmatpush1.msra.mxu0 0.0
    %1192 = vmatprep.subr.mxu0 0.0
    %1193 = vmatpush1.msra.mxu0 0.0
    %1194 = vmatprep.subr.mxu0 0.0
    %1195 = vmatpush1.msra.mxu0 0.0
    %1196 = vmatprep.subr.mxu0 0.0
    %1197 = vmatpush1.msra.mxu0 0.0
    %1198 = vmatprep.subr.mxu0 0.0
    %1199 = vmatpush1.msra.mxu0 0.0
    %1200 = vmatprep.subr.mxu0 0.0
    %1201 = vmatpush1.msra.mxu0 0.0
    %1202 = vmatprep.subr.mxu0 0.0
    %1203 = vmatpush1.msra.mxu0 0.0
    %1204 = vmatprep.subr.mxu0 0.0
    %1205 = vmatpush1.msra.mxu0 0.0
    %1206 = vmatprep.subr.mxu0 0.0
    %1207 = vmatpush1.msra.mxu0 0.0
    %1208 = vmatprep.subr.mxu0 0.0
    %1209 = vmatpush1.msra.mxu0 0.0
    %1210 = vmatprep.subr.mxu0 0.0
    %1211 = vmatpush1.msra.mxu0 0.0
    %1212 = vmatprep.subr.mxu0 0.0
    %1213 = vmatpush1.msra.mxu0 0.0
    %1214 = vmatprep.subr.mxu0 0.0
    %1215 = vmatpush1.msra.mxu0 0.0
    %1216 = vmatprep.subr.mxu0 0.0
    %1217 = vmatpush1.msra.mxu0 0.0
    %1218 = vmatprep.subr.mxu0 0.0
    %1219 = vmatpush1.msra.mxu0 0.0
    %1220 = vmatprep.subr.mxu0 0.0
    %1221 = vmatpush1.msra.mxu0 0.0
    %1222 = vmatprep.subr.mxu0 0.0
    %1223 = vmatpush1.msra.mxu0 0.0
    %1224 = vmatprep.subr.mxu0 0.0
    %1225 = vmatpush1.msra.mxu0 0.0
    %1226 = vmatprep.subr.mxu0 0.0
    %1227 = vmatpush1.msra.mxu0 0.0
    %1228 = vmatprep.subr.mxu0 0.0
    %1229 = vmatpush1.msra.mxu0 0.0
    %1230 = vmatprep.subr.mxu0 0.0
    %1231 = vmatpush1.msra.mxu0 0.0
    %1232 = vmatprep.subr.mxu0 0.0
    %1233 = vmatpush1.msra.mxu0 0.0
    %1234 = vmatprep.mubr.f32.mxu0 0.0
    %1235 = vmatmul.mubr.f32.gmra.mrb[0].mxu0 %v1168
    %v1236 = vpop.f32.mrb[0].mxu0
    %v1237 = vadd.f32 0.0, %v1236
    %v1238 = vpop.f32.mrb[0].mxu0
    %1239 = vdwg.mxu0
    %1240 = vrot.lane.b32.xlu0 %v232, 64
    %v1241 = vpop.permute.xlu0 %1240
    %v1244 = vsel %vm241, %v932, 0
    %1246 = vmatprep.subr.mxu0 0.0
    %1247 = vmatpush1.msra.mxu0 %v1241
    %1248 = vmatprep.subr.mxu0 0.0
    %1249 = vmatpush1.msra.mxu0 0.0
    %1250 = vmatprep.subr.mxu0 0.0
    %1251 = vmatpush1.msra.mxu0 0.0
    %1252 = vmatprep.subr.mxu0 0.0
    %1253 = vmatpush1.msra.mxu0 0.0
    %1254 = vmatprep.subr.mxu0 0.0
    %1255 = vmatpush1.msra.mxu0 0.0
    %1256 = vmatprep.subr.mxu0 0.0
    %1257 = vmatpush1.msra.mxu0 0.0
    %1258 = vmatprep.subr.mxu0 0.0
    %1259 = vmatpush1.msra.mxu0 0.0
    %1260 = vmatprep.subr.mxu0 0.0
    %1261 = vmatpush1.msra.mxu0 0.0
    %1262 = vmatprep.subr.mxu0 0.0
    %1263 = vmatpush1.msra.mxu0 0.0
    %1264 = vmatprep.subr.mxu0 0.0
    %1265 = vmatpush1.msra.mxu0 0.0
    %1266 = vmatprep.subr.mxu0 0.0
    %1267 = vmatpush1.msra.mxu0 0.0
    %1268 = vmatprep.subr.mxu0 0.0
    %1269 = vmatpush1.msra.mxu0 0.0
    %1270 = vmatprep.subr.mxu0 0.0
    %1271 = vmatpush1.msra.mxu0 0.0
    %1272 = vmatprep.subr.mxu0 0.0
    %1273 = vmatpush1.msra.mxu0 0.0
    %1274 = vmatprep.subr.mxu0 0.0
    %1275 = vmatpush1.msra.mxu0 0.0
    %1276 = vmatprep.subr.mxu0 0.0
    %1277 = vmatpush1.msra.mxu0 0.0
    %1278 = vmatprep.subr.mxu0 0.0
    %1279 = vmatpush1.msra.mxu0 0.0
    %1280 = vmatprep.subr.mxu0 0.0
    %1281 = vmatpush1.msra.mxu0 0.0
    %1282 = vmatprep.subr.mxu0 0.0
    %1283 = vmatpush1.msra.mxu0 0.0
    %1284 = vmatprep.subr.mxu0 0.0
    %1285 = vmatpush1.msra.mxu0 0.0
    %1286 = vmatprep.subr.mxu0 0.0
    %1287 = vmatpush1.msra.mxu0 0.0
    %1288 = vmatprep.subr.mxu0 0.0
    %1289 = vmatpush1.msra.mxu0 0.0
    %1290 = vmatprep.subr.mxu0 0.0
    %1291 = vmatpush1.msra.mxu0 0.0
    %1292 = vmatprep.subr.mxu0 0.0
    %1293 = vmatpush1.msra.mxu0 0.0
    %1294 = vmatprep.subr.mxu0 0.0
    %1295 = vmatpush1.msra.mxu0 0.0
    %1296 = vmatprep.subr.mxu0 0.0
    %1297 = vmatpush1.msra.mxu0 0.0
    %1298 = vmatprep.subr.mxu0 0.0
    %1299 = vmatpush1.msra.mxu0 0.0
    %1300 = vmatprep.subr.mxu0 0.0
    %1301 = vmatpush1.msra.mxu0 0.0
    %1302 = vmatprep.subr.mxu0 0.0
    %1303 = vmatpush1.msra.mxu0 0.0
    %1304 = vmatprep.subr.mxu0 0.0
    %1305 = vmatpush1.msra.mxu0 0.0
    %1306 = vmatprep.subr.mxu0 0.0
    %1307 = vmatpush1.msra.mxu0 0.0
    %1308 = vmatprep.subr.mxu0 0.0
    %1309 = vmatpush1.msra.mxu0 0.0
    %1310 = vmatprep.mubr.f32.mxu0 0.0
    %1311 = vmatmul.mubr.f32.gmra.mrb[0].mxu0 %v1244
    %v1312 = vpop.f32.mrb[0].mxu0
    %v1313 = vadd.f32 0.0, %v1312
    %v1314 = vpop.f32.mrb[0].mxu0
    %1315 = vdwg.mxu0
    %1316 = vrot.lane.b32.xlu0 %v234, 64
    %v1317 = vpop.permute.xlu0 %1316
    %v1320 = vsel %vm241, %v933, 0
    %1322 = vmatprep.subr.mxu0 0.0
    %1323 = vmatpush1.msra.mxu0 %v1317
    %1324 = vmatprep.subr.mxu0 0.0
    %1325 = vmatpush1.msra.mxu0 0.0
    %1326 = vmatprep.subr.mxu0 0.0
    %1327 = vmatpush1.msra.mxu0 0.0
    %1328 = vmatprep.subr.mxu0 0.0
    %1329 = vmatpush1.msra.mxu0 0.0
    %1330 = vmatprep.subr.mxu0 0.0
    %1331 = vmatpush1.msra.mxu0 0.0
    %1332 = vmatprep.subr.mxu0 0.0
    %1333 = vmatpush1.msra.mxu0 0.0
    %1334 = vmatprep.subr.mxu0 0.0
    %1335 = vmatpush1.msra.mxu0 0.0
    %1336 = vmatprep.subr.mxu0 0.0
    %1337 = vmatpush1.msra.mxu0 0.0
    %1338 = vmatprep.subr.mxu0 0.0
    %1339 = vmatpush1.msra.mxu0 0.0
    %1340 = vmatprep.subr.mxu0 0.0
    %1341 = vmatpush1.msra.mxu0 0.0
    %1342 = vmatprep.subr.mxu0 0.0
    %1343 = vmatpush1.msra.mxu0 0.0
    %1344 = vmatprep.subr.mxu0 0.0
    %1345 = vmatpush1.msra.mxu0 0.0
    %1346 = vmatprep.subr.mxu0 0.0
    %1347 = vmatpush1.msra.mxu0 0.0
    %1348 = vmatprep.subr.mxu0 0.0
    %1349 = vmatpush1.msra.mxu0 0.0
    %1350 = vmatprep.subr.mxu0 0.0
    %1351 = vmatpush1.msra.mxu0 0.0
    %1352 = vmatprep.subr.mxu0 0.0
    %1353 = vmatpush1.msra.mxu0 0.0
    %1354 = vmatprep.subr.mxu0 0.0
    %1355 = vmatpush1.msra.mxu0 0.0
    %1356 = vmatprep.subr.mxu0 0.0
    %1357 = vmatpush1.msra.mxu0 0.0
    %1358 = vmatprep.subr.mxu0 0.0
    %1359 = vmatpush1.msra.mxu0 0.0
    %1360 = vmatprep.subr.mxu0 0.0
    %1361 = vmatpush1.msra.mxu0 0.0
    %1362 = vmatprep.subr.mxu0 0.0
    %1363 = vmatpush1.msra.mxu0 0.0
    %1364 = vmatprep.subr.mxu0 0.0
    %1365 = vmatpush1.msra.mxu0 0.0
    %1366 = vmatprep.subr.mxu0 0.0
    %1367 = vmatpush1.msra.mxu0 0.0
    %1368 = vmatprep.subr.mxu0 0.0
    %1369 = vmatpush1.msra.mxu0 0.0
    %1370 = vmatprep.subr.mxu0 0.0
    %1371 = vmatpush1.msra.mxu0 0.0
    %1372 = vmatprep.subr.mxu0 0.0
    %1373 = vmatpush1.msra.mxu0 0.0
    %1374 = vmatprep.subr.mxu0 0.0
    %1375 = vmatpush1.msra.mxu0 0.0
    %1376 = vmatprep.subr.mxu0 0.0
    %1377 = vmatpush1.msra.mxu0 0.0
    %1378 = vmatprep.subr.mxu0 0.0
    %1379 = vmatpush1.msra.mxu0 0.0
    %1380 = vmatprep.subr.mxu0 0.0
    %1381 = vmatpush1.msra.mxu0 0.0
    %1382 = vmatprep.subr.mxu0 0.0
    %1383 = vmatpush1.msra.mxu0 0.0
    %1384 = vmatprep.subr.mxu0 0.0
    %1385 = vmatpush1.msra.mxu0 0.0
    %1386 = vmatprep.mubr.f32.mxu0 0.0
    %1387 = vmatmul.mubr.f32.gmra.mrb[0].mxu0 %v1320
    %v1388 = vpop.f32.mrb[0].mxu0
    %v1389 = vadd.f32 0.0, %v1388
    %v1390 = vpop.f32.mrb[0].mxu0
    %1391 = vdwg.mxu0
    %1392 = vrot.lane.b32.xlu0 %v236, 64
    %v1393 = vpop.permute.xlu0 %1392
    %v1396 = vsel %vm241, %v934, 0
    %1398 = vmatprep.subr.mxu0 0.0
    %1399 = vmatpush1.msra.mxu0 %v1393
    %1400 = vmatprep.subr.mxu0 0.0
    %1401 = vmatpush1.msra.mxu0 0.0
    %1402 = vmatprep.subr.mxu0 0.0
    %1403 = vmatpush1.msra.mxu0 0.0
    %1404 = vmatprep.subr.mxu0 0.0
    %1405 = vmatpush1.msra.mxu0 0.0
    %1406 = vmatprep.subr.mxu0 0.0
    %1407 = vmatpush1.msra.mxu0 0.0
    %1408 = vmatprep.subr.mxu0 0.0
    %1409 = vmatpush1.msra.mxu0 0.0
    %1410 = vmatprep.subr.mxu0 0.0
    %1411 = vmatpush1.msra.mxu0 0.0
    %1412 = vmatprep.subr.mxu0 0.0
    %1413 = vmatpush1.msra.mxu0 0.0
    %1414 = vmatprep.subr.mxu0 0.0
    %1415 = vmatpush1.msra.mxu0 0.0
    %1416 = vmatprep.subr.mxu0 0.0
    %1417 = vmatpush1.msra.mxu0 0.0
    %1418 = vmatprep.subr.mxu0 0.0
    %1419 = vmatpush1.msra.mxu0 0.0
    %1420 = vmatprep.subr.mxu0 0.0
    %1421 = vmatpush1.msra.mxu0 0.0
    %1422 = vmatprep.subr.mxu0 0.0
    %1423 = vmatpush1.msra.mxu0 0.0
    %1424 = vmatprep.subr.mxu0 0.0
    %1425 = vmatpush1.msra.mxu0 0.0
    %1426 = vmatprep.subr.mxu0 0.0
    %1427 = vmatpush1.msra.mxu0 0.0
    %1428 = vmatprep.subr.mxu0 0.0
    %1429 = vmatpush1.msra.mxu0 0.0
    %1430 = vmatprep.subr.mxu0 0.0
    %1431 = vmatpush1.msra.mxu0 0.0
    %1432 = vmatprep.subr.mxu0 0.0
    %1433 = vmatpush1.msra.mxu0 0.0
    %1434 = vmatprep.subr.mxu0 0.0
    %1435 = vmatpush1.msra.mxu0 0.0
    %1436 = vmatprep.subr.mxu0 0.0
    %1437 = vmatpush1.msra.mxu0 0.0
    %1438 = vmatprep.subr.mxu0 0.0
    %1439 = vmatpush1.msra.mxu0 0.0
    %1440 = vmatprep.subr.mxu0 0.0
    %1441 = vmatpush1.msra.mxu0 0.0
    %1442 = vmatprep.subr.mxu0 0.0
    %1443 = vmatpush1.msra.mxu0 0.0
    %1444 = vmatprep.subr.mxu0 0.0
    %1445 = vmatpush1.msra.mxu0 0.0
    %1446 = vmatprep.subr.mxu0 0.0
    %1447 = vmatpush1.msra.mxu0 0.0
    %1448 = vmatprep.subr.mxu0 0.0
    %1449 = vmatpush1.msra.mxu0 0.0
    %1450 = vmatprep.subr.mxu0 0.0
    %1451 = vmatpush1.msra.mxu0 0.0
    %1452 = vmatprep.subr.mxu0 0.0
    %1453 = vmatpush1.msra.mxu0 0.0
    %1454 = vmatprep.subr.mxu0 0.0
    %1455 = vmatpush1.msra.mxu0 0.0
    %1456 = vmatprep.subr.mxu0 0.0
    %1457 = vmatpush1.msra.mxu0 0.0
    %1458 = vmatprep.subr.mxu0 0.0
    %1459 = vmatpush1.msra.mxu0 0.0
    %1460 = vmatprep.subr.mxu0 0.0
    %1461 = vmatpush1.msra.mxu0 0.0
    %1462 = vmatprep.mubr.f32.mxu0 0.0
    %1463 = vmatmul.mubr.f32.gmra.mrb[0].mxu0 %v1396
    %v1464 = vpop.f32.mrb[0].mxu0
    %v1465 = vadd.f32 0.0, %v1464
    %v1466 = vpop.f32.mrb[0].mxu0
    %1467 = vdwg.mxu0
    %1468 = vrot.lane.b32.xlu0 %v238, 64
    %v1469 = vpop.permute.xlu0 %1468
    %v1472 = vsel %vm241, %v935, 0
    %1474 = vmatprep.subr.mxu0 0.0
    %1475 = vmatpush1.msra.mxu0 %v1469
    %1476 = vmatprep.subr.mxu0 0.0
    %1477 = vmatpush1.msra.mxu0 0.0
    %1478 = vmatprep.subr.mxu0 0.0
    %1479 = vmatpush1.msra.mxu0 0.0
    %1480 = vmatprep.subr.mxu0 0.0
    %1481 = vmatpush1.msra.mxu0 0.0
    %1482 = vmatprep.subr.mxu0 0.0
    %1483 = vmatpush1.msra.mxu0 0.0
    %1484 = vmatprep.subr.mxu0 0.0
    %1485 = vmatpush1.msra.mxu0 0.0
    %1486 = vmatprep.subr.mxu0 0.0
    %1487 = vmatpush1.msra.mxu0 0.0
    %1488 = vmatprep.subr.mxu0 0.0
    %1489 = vmatpush1.msra.mxu0 0.0
    %1490 = vmatprep.subr.mxu0 0.0
    %1491 = vmatpush1.msra.mxu0 0.0
    %1492 = vmatprep.subr.mxu0 0.0
    %1493 = vmatpush1.msra.mxu0 0.0
    %1494 = vmatprep.subr.mxu0 0.0
    %1495 = vmatpush1.msra.mxu0 0.0
    %1496 = vmatprep.subr.mxu0 0.0
    %1497 = vmatpush1.msra.mxu0 0.0
    %1498 = vmatprep.subr.mxu0 0.0
    %1499 = vmatpush1.msra.mxu0 0.0
    %1500 = vmatprep.subr.mxu0 0.0
    %1501 = vmatpush1.msra.mxu0 0.0
    %1502 = vmatprep.subr.mxu0 0.0
    %1503 = vmatpush1.msra.mxu0 0.0
    %1504 = vmatprep.subr.mxu0 0.0
    %1505 = vmatpush1.msra.mxu0 0.0
    %1506 = vmatprep.subr.mxu0 0.0
    %1507 = vmatpush1.msra.mxu0 0.0
    %1508 = vmatprep.subr.mxu0 0.0
    %1509 = vmatpush1.msra.mxu0 0.0
    %1510 = vmatprep.subr.mxu0 0.0
    %1511 = vmatpush1.msra.mxu0 0.0
    %1512 = vmatprep.subr.mxu0 0.0
    %1513 = vmatpush1.msra.mxu0 0.0
    %1514 = vmatprep.subr.mxu0 0.0
    %1515 = vmatpush1.msra.mxu0 0.0
    %1516 = vmatprep.subr.mxu0 0.0
    %1517 = vmatpush1.msra.mxu0 0.0
    %1518 = vmatprep.subr.mxu0 0.0
    %1519 = vmatpush1.msra.mxu0 0.0
    %1520 = vmatprep.subr.mxu0 0.0
    %1521 = vmatpush1.msra.mxu0 0.0
    %1522 = vmatprep.subr.mxu0 0.0
    %1523 = vmatpush1.msra.mxu0 0.0
    %1524 = vmatprep.subr.mxu0 0.0
    %1525 = vmatpush1.msra.mxu0 0.0
    %1526 = vmatprep.subr.mxu0 0.0
    %1527 = vmatpush1.msra.mxu0 0.0
    %1528 = vmatprep.subr.mxu0 0.0
    %1529 = vmatpush1.msra.mxu0 0.0
    %1530 = vmatprep.subr.mxu0 0.0
    %1531 = vmatpush1.msra.mxu0 0.0
    %1532 = vmatprep.subr.mxu0 0.0
    %1533 = vmatpush1.msra.mxu0 0.0
    %1534 = vmatprep.subr.mxu0 0.0
    %1535 = vmatpush1.msra.mxu0 0.0
    %1536 = vmatprep.subr.mxu0 0.0
    %1537 = vmatpush1.msra.mxu0 0.0
    %1538 = vmatprep.mubr.f32.mxu0 0.0
    %1539 = vmatmul.mubr.f32.gmra.mrb[0].mxu0 %v1472
    %v1540 = vpop.f32.mrb[0].mxu0
    %v1541 = vadd.f32 0.0, %v1540
    %v1542 = vpop.f32.mrb[0].mxu0
    %1543 = vdwg.mxu0
    %1546 = vrot.lane.b32.xlu0 %v1161, 8
    %v1547 = vpop.permute.xlu0 %1546
    %1548 = vrot.lane.b32.xlu0 %v1237, 8
    %v1549 = vpop.permute.xlu0 %1548
    %1554 = vrot.lane.b32.xlu0 %v1313, 16
    %v1555 = vpop.permute.xlu0 %1554
    %1556 = vrot.lane.b32.xlu0 %v1389, 16
    %v1557 = vpop.permute.xlu0 %1556
    %1562 = vrot.lane.b32.xlu0 %v1465, 24
    %v1563 = vpop.permute.xlu0 %1562
    %1564 = vrot.lane.b32.xlu0 %v1541, 24
    %v1565 = vpop.permute.xlu0 %1564
    %v1568 = vsel %vm241, %v1009, %v1547
    %v1569 = vsel %vm241, %v1085, %v1549
    %vm1570 = vcmask 130048
    %v1571 = vsel %vm1570, %v1568, %v1555
    %v1572 = vsel %vm1570, %v1569, %v1557
    %vm1573 = vcmask 195584
    %v1574 = vsel %vm1573, %v1571, %v1563
    %v1575 = vsel %vm1573, %v1572, %v1565
    %v1576 = vlaneseq
    %v1577 = vshrl.u32 %v1576, 7
    %v1578 = vsub.s32 0, %v1577
    %v1579 = vrot.slane %v132, %v1578
    %v1581 = vsel %vm143, %v1574, 0
    %v1584 = vsel %vm143, %v1575, 0
    %1586 = vmatprep.subr.mxu0 0.0
    %1587 = vmatpush1.msra.mxu0 %v107
    %1588 = vmatprep.subr.mxu0 0.0
    %1589 = vmatpush1.msra.mxu0 %v108
    %1590 = vmatprep.subr.mxu0 0.0
    %1591 = vmatpush1.msra.mxu0 %v109
    %1592 = vmatprep.subr.mxu0 0.0
    %1593 = vmatpush1.msra.mxu0 %v110
    %1594 = vmatprep.subr.mxu0 0.0
    %1595 = vmatpush1.msra.mxu0 0.0
    %1596 = vmatprep.subr.mxu0 0.0
    %1597 = vmatpush1.msra.mxu0 0.0
    %1598 = vmatprep.subr.mxu0 0.0
    %1599 = vmatpush1.msra.mxu0 0.0
    %1600 = vmatprep.subr.mxu0 0.0
    %1601 = vmatpush1.msra.mxu0 0.0
    %1602 = vmatprep.subr.mxu0 0.0
    %1603 = vmatpush1.msra.mxu0 0.0
    %1604 = vmatprep.subr.mxu0 0.0
    %1605 = vmatpush1.msra.mxu0 0.0
    %1606 = vmatprep.subr.mxu0 0.0
    %1607 = vmatpush1.msra.mxu0 0.0
    %1608 = vmatprep.subr.mxu0 0.0
    %1609 = vmatpush1.msra.mxu0 0.0
    %1610 = vmatprep.subr.mxu0 0.0
    %1611 = vmatpush1.msra.mxu0 0.0
    %1612 = vmatprep.subr.mxu0 0.0
    %1613 = vmatpush1.msra.mxu0 0.0
    %1614 = vmatprep.subr.mxu0 0.0
    %1615 = vmatpush1.msra.mxu0 0.0
    %1616 = vmatprep.subr.mxu0 0.0
    %1617 = vmatpush1.msra.mxu0 0.0
    %1618 = vmatprep.subr.mxu0 0.0
    %1619 = vmatpush1.msra.mxu0 0.0
    %1620 = vmatprep.subr.mxu0 0.0
    %1621 = vmatpush1.msra.mxu0 0.0
    %1622 = vmatprep.subr.mxu0 0.0
    %1623 = vmatpush1.msra.mxu0 0.0
    %1624 = vmatprep.subr.mxu0 0.0
    %1625 = vmatpush1.msra.mxu0 0.0
    %1626 = vmatprep.subr.mxu0 0.0
    %1627 = vmatpush1.msra.mxu0 0.0
    %1628 = vmatprep.subr.mxu0 0.0
    %1629 = vmatpush1.msra.mxu0 0.0
    %1630 = vmatprep.subr.mxu0 0.0
    %1631 = vmatpush1.msra.mxu0 0.0
    %1632 = vmatprep.subr.mxu0 0.0
    %1633 = vmatpush1.msra.mxu0 0.0
    %1634 = vmatprep.subr.mxu0 0.0
    %1635 = vmatpush1.msra.mxu0 0.0
    %1636 = vmatprep.subr.mxu0 0.0
    %1637 = vmatpush1.msra.mxu0 0.0
    %1638 = vmatprep.subr.mxu0 0.0
    %1639 = vmatpush1.msra.mxu0 0.0
    %1640 = vmatprep.subr.mxu0 0.0
    %1641 = vmatpush1.msra.mxu0 0.0
    %1642 = vmatprep.subr.mxu0 0.0
    %1643 = vmatpush1.msra.mxu0 0.0
    %1644 = vmatprep.subr.mxu0 0.0
    %1645 = vmatpush1.msra.mxu0 0.0
    %1646 = vmatprep.subr.mxu0 0.0
    %1647 = vmatpush1.msra.mxu0 0.0
    %1648 = vmatprep.subr.mxu0 0.0
    %1649 = vmatpush1.msra.mxu0 0.0
    %1650 = vmatprep.mubr.f32.mxu0 0.0
    %1651 = vmatmul.mubr.f32.gmra.mrb[0].mxu0 %v1581
    %v1652 = vpop.f32.mrb[0].mxu0
    %v1653 = vadd.f32 %v1579, %v1652
    %v1654 = vpop.f32.mrb[0].mxu0
    %1655 = vmatprep.mubr.f32.mxu0 0.0
    %1656 = vmatmul.mubr.f32.gmra.mrb[0].mxu0 %v1584
    %v1657 = vpop.f32.mrb[0].mxu0
    %v1658 = vadd.f32 %v1579, %v1657
    %v1659 = vpop.f32.mrb[0].mxu0
    %1660 = vdwg.mxu0
    %v1661 = vadd.f32 %v101, %v1653
    %v1662 = vadd.f32 %v102, %v1658
    %v1663 = vsel %vm143, %v1661, 0.0
    %1664 = vadd.xlane.f32.xlu0 %v1663
    %v1665 = vpop.xlane.xlu0 %1664
    %v1666 = vsel %vm143, %v1662, 0.0
    %1667 = vadd.xlane.f32.xlu0 %v1666
    %v1668 = vpop.xlane.xlu0 %1667
    %v1669 = vrcp.pop 32.0
    %v1670 = vmul.f32 %v1665, %v1669
    %v1671 = vmul.f32 %v1668, %v1669
    %v1672 = vsub.f32 %v1661, %v1670
    %v1673 = vsub.f32 %v1662, %v1671
    %v1674 = vmul.f32 %v1672, %v1672
    %v1675 = vmul.f32 %v1673, %v1673
    %v1676 = vsel %vm143, %v1674, 0.0
    %1677 = vadd.xlane.f32.xlu0 %v1676
    %v1678 = vpop.xlane.xlu0 %1677
    %v1679 = vsel %vm143, %v1675, 0.0
    %1680 = vadd.xlane.f32.xlu0 %v1679
    %v1681 = vpop.xlane.xlu0 %1680
    %v1682 = vmul.f32 %v1678, %v1669
    %v1683 = vmul.f32 %v1681, %v1669
    %v1684 = vadd.f32 %v1682, 1e-05
    %v1685 = vadd.f32 %v1683, 1e-05
    %v1686 = vrsqrt.pop %v1684
    %v1687 = vrsqrt.pop %v1685
    %v1688 = vmul.f32 %v1672, %v1686
    %v1689 = vmul.f32 %v1673, %v1687
    %v1690 = vlaneseq
    %v1691 = vshrl.u32 %v1690, 7
    %v1692 = vsub.s32 0, %v1691
    %v1693 = vrot.slane %v133, %v1692
    %v1694 = vmul.f32 %v1688, %v1693
    %v1695 = vmul.f32 %v1689, %v1693
    %v1696 = vlaneseq
    %v1697 = vshrl.u32 %v1696, 7
    %v1698 = vsub.s32 0, %v1697
    %v1699 = vrot.slane %v134, %v1698
    %v1700 = vadd.f32 %v1694, %v1699
    %v1701 = vadd.f32 %v1695, %v1699
    %v1702 = vlaneseq
    %v1703 = vshrl.u32 %v1702, 7
    %v1704 = vsub.s32 0, %v1703
    %v1705 = vrot.slane %v135, %v1704
    %v1707 = vsel %vm143, %v1700, 0
    %v1710 = vsel %vm143, %v1701, 0
    %1712 = vmatprep.subr.mxu0 0.0
    %1713 = vmatpush1.msra.mxu0 %v111
    %1714 = vmatprep.subr.mxu0 0.0
    %1715 = vmatpush1.msra.mxu0 %v112
    %1716 = vmatprep.subr.mxu0 0.0
    %1717 = vmatpush1.msra.mxu0 %v113
    %1718 = vmatprep.subr.mxu0 0.0
    %1719 = vmatpush1.msra.mxu0 %v114
    %1720 = vmatprep.subr.mxu0 0.0
    %1721 = vmatpush1.msra.mxu0 0.0
    %1722 = vmatprep.subr.mxu0 0.0
    %1723 = vmatpush1.msra.mxu0 0.0
    %1724 = vmatprep.subr.mxu0 0.0
    %1725 = vmatpush1.msra.mxu0 0.0
    %1726 = vmatprep.subr.mxu0 0.0
    %1727 = vmatpush1.msra.mxu0 0.0
    %1728 = vmatprep.subr.mxu0 0.0
    %1729 = vmatpush1.msra.mxu0 0.0
    %1730 = vmatprep.subr.mxu0 0.0
    %1731 = vmatpush1.msra.mxu0 0.0
    %1732 = vmatprep.subr.mxu0 0.0
    %1733 = vmatpush1.msra.mxu0 0.0
    %1734 = vmatprep.subr.mxu0 0.0
    %1735 = vmatpush1.msra.mxu0 0.0
    %1736 = vmatprep.subr.mxu0 0.0
    %1737 = vmatpush1.msra.mxu0 0.0
    %1738 = vmatprep.subr.mxu0 0.0
    %1739 = vmatpush1.msra.mxu0 0.0
    %1740 = vmatprep.subr.mxu0 0.0
    %1741 = vmatpush1.msra.mxu0 0.0
    %1742 = vmatprep.subr.mxu0 0.0
    %1743 = vmatpush1.msra.mxu0 0.0
    %1744 = vmatprep.subr.mxu0 0.0
    %1745 = vmatpush1.msra.mxu0 0.0
    %1746 = vmatprep.subr.mxu0 0.0
    %1747 = vmatpush1.msra.mxu0 0.0
    %1748 = vmatprep.subr.mxu0 0.0
    %1749 = vmatpush1.msra.mxu0 0.0
    %1750 = vmatprep.subr.mxu0 0.0
    %1751 = vmatpush1.msra.mxu0 0.0
    %1752 = vmatprep.subr.mxu0 0.0
    %1753 = vmatpush1.msra.mxu0 0.0
    %1754 = vmatprep.subr.mxu0 0.0
    %1755 = vmatpush1.msra.mxu0 0.0
    %1756 = vmatprep.subr.mxu0 0.0
    %1757 = vmatpush1.msra.mxu0 0.0
    %1758 = vmatprep.subr.mxu0 0.0
    %1759 = vmatpush1.msra.mxu0 0.0
    %1760 = vmatprep.subr.mxu0 0.0
    %1761 = vmatpush1.msra.mxu0 0.0
    %1762 = vmatprep.subr.mxu0 0.0
    %1763 = vmatpush1.msra.mxu0 0.0
    %1764 = vmatprep.subr.mxu0 0.0
    %1765 = vmatpush1.msra.mxu0 0.0
    %1766 = vmatprep.subr.mxu0 0.0
    %1767 = vmatpush1.msra.mxu0 0.0
    %1768 = vmatprep.subr.mxu0 0.0
    %1769 = vmatpush1.msra.mxu0 0.0
    %1770 = vmatprep.subr.mxu0 0.0
    %1771 = vmatpush1.msra.mxu0 0.0
    %1772 = vmatprep.subr.mxu0 0.0
    %1773 = vmatpush1.msra.mxu0 0.0
    %1774 = vmatprep.subr.mxu0 0.0
    %1775 = vmatpush1.msra.mxu0 0.0
    %1776 = vmatprep.mubr.f32.mxu0 0.0
    %1777 = vmatmul.mubr.f32.gmra.mrb[0].mxu0 %v1707
    %v1778 = vpop.f32.mrb[0].mxu0
    %v1779 = vadd.f32 %v1705, %v1778
    %v1780 = vpop.f32.mrb[0].mxu0
    %1781 = vmatprep.mubr.f32.mxu0 0.0
    %1782 = vmatmul.mubr.f32.gmra.mrb[0].mxu0 %v1710
    %v1783 = vpop.f32.mrb[0].mxu0
    %v1784 = vadd.f32 %v1705, %v1783
    %v1785 = vpop.f32.mrb[0].mxu0
    %1786 = vdwg.mxu0
    %v1787 = vmax.f32 %v1779, 0.0
    %v1788 = vmax.f32 %v1784, 0.0
    %v1789 = vlaneseq
    %v1790 = vshrl.u32 %v1789, 7
    %v1791 = vsub.s32 0, %v1790
    %v1792 = vrot.slane %v136, %v1791
    %1793 = vmatprep.subr.mxu0 0.0
    %1794 = vmatpush1.msra.mxu0 %v115
    %1795 = vmatprep.subr.mxu0 0.0
    %1796 = vmatpush1.msra.mxu0 %v116
    %1797 = vmatprep.subr.mxu0 0.0
    %1798 = vmatpush1.msra.mxu0 %v117
    %1799 = vmatprep.subr.mxu0 0.0
    %1800 = vmatpush1.msra.mxu0 %v118
    %1801 = vmatprep.subr.mxu0 0.0
    %1802 = vmatpush1.msra.mxu0 %v119
    %1803 = vmatprep.subr.mxu0 0.0
    %1804 = vmatpush1.msra.mxu0 %v120
    %1805 = vmatprep.subr.mxu0 0.0
    %1806 = vmatpush1.msra.mxu0 %v121
    %1807 = vmatprep.subr.mxu0 0.0
    %1808 = vmatpush1.msra.mxu0 %v122
    %1809 = vmatprep.subr.mxu0 0.0
    %1810 = vmatpush1.msra.mxu0 %v123
    %1811 = vmatprep.subr.mxu0 0.0
    %1812 = vmatpush1.msra.mxu0 %v124
    %1813 = vmatprep.subr.mxu0 0.0
    %1814 = vmatpush1.msra.mxu0 %v125
    %1815 = vmatprep.subr.mxu0 0.0
    %1816 = vmatpush1.msra.mxu0 %v126
    %1817 = vmatprep.subr.mxu0 0.0
    %1818 = vmatpush1.msra.mxu0 %v127
    %1819 = vmatprep.subr.mxu0 0.0
    %1820 = vmatpush1.msra.mxu0 %v128
    %1821 = vmatprep.subr.mxu0 0.0
    %1822 = vmatpush1.msra.mxu0 %v129
    %1823 = vmatprep.subr.mxu0 0.0
    %1824 = vmatpush1.msra.mxu0 %v130
    %1825 = vmatprep.subr.mxu0 0.0
    %1826 = vmatpush1.msra.mxu0 0.0
    %1827 = vmatprep.subr.mxu0 0.0
    %1828 = vmatpush1.msra.mxu0 0.0
    %1829 = vmatprep.subr.mxu0 0.0
    %1830 = vmatpush1.msra.mxu0 0.0
    %1831 = vmatprep.subr.mxu0 0.0
    %1832 = vmatpush1.msra.mxu0 0.0
    %1833 = vmatprep.subr.mxu0 0.0
    %1834 = vmatpush1.msra.mxu0 0.0
    %1835 = vmatprep.subr.mxu0 0.0
    %1836 = vmatpush1.msra.mxu0 0.0
    %1837 = vmatprep.subr.mxu0 0.0
    %1838 = vmatpush1.msra.mxu0 0.0
    %1839 = vmatprep.subr.mxu0 0.0
    %1840 = vmatpush1.msra.mxu0 0.0
    %1841 = vmatprep.subr.mxu0 0.0
    %1842 = vmatpush1.msra.mxu0 0.0
    %1843 = vmatprep.subr.mxu0 0.0
    %1844 = vmatpush1.msra.mxu0 0.0
    %1845 = vmatprep.subr.mxu0 0.0
    %1846 = vmatpush1.msra.mxu0 0.0
    %1847 = vmatprep.subr.mxu0 0.0
    %1848 = vmatpush1.msra.mxu0 0.0
    %1849 = vmatprep.subr.mxu0 0.0
    %1850 = vmatpush1.msra.mxu0 0.0
    %1851 = vmatprep.subr.mxu0 0.0
    %1852 = vmatpush1.msra.mxu0 0.0
    %1853 = vmatprep.subr.mxu0 0.0
    %1854 = vmatpush1.msra.mxu0 0.0
    %1855 = vmatprep.subr.mxu0 0.0
    %1856 = vmatpush1.msra.mxu0 0.0
    %1857 = vmatprep.mubr.f32.mxu0 0.0
    %1858 = vmatmul.mubr.f32.gmra.mrb[0].mxu0 %v1787
    %v1859 = vpop.f32.mrb[0].mxu0
    %v1860 = vadd.f32 %v1792, %v1859
    %v1861 = vpop.f32.mrb[0].mxu0
    %1862 = vmatprep.mubr.f32.mxu0 0.0
    %1863 = vmatmul.mubr.f32.gmra.mrb[0].mxu0 %v1788
    %v1864 = vpop.f32.mrb[0].mxu0
    %v1865 = vadd.f32 %v1792, %v1864
    %v1866 = vpop.f32.mrb[0].mxu0
    %1867 = vdwg.mxu0
    %v1868 = vadd.f32 %v1700, %v1860
    %v1869 = vadd.f32 %v1701, %v1865
    %v1870 = vsel %vm143, %v1868, 0.0
    %1871 = vadd.xlane.f32.xlu0 %v1870
    %v1872 = vpop.xlane.xlu0 %1871
    %v1873 = vsel %vm143, %v1869, 0.0
    %1874 = vadd.xlane.f32.xlu0 %v1873
    %v1875 = vpop.xlane.xlu0 %1874
    %v1876 = vmul.f32 %v1872, %v1669
    %v1877 = vmul.f32 %v1875, %v1669
    %v1878 = vsub.f32 %v1868, %v1876
    %v1879 = vsub.f32 %v1869, %v1877
    %v1880 = vmul.f32 %v1878, %v1878
    %v1881 = vmul.f32 %v1879, %v1879
    %v1882 = vsel %vm143, %v1880, 0.0
    %1883 = vadd.xlane.f32.xlu0 %v1882
    %v1884 = vpop.xlane.xlu0 %1883
    %v1885 = vsel %vm143, %v1881, 0.0
    %1886 = vadd.xlane.f32.xlu0 %v1885
    %v1887 = vpop.xlane.xlu0 %1886
    %v1888 = vmul.f32 %v1884, %v1669
    %v1889 = vmul.f32 %v1887, %v1669
    %v1890 = vadd.f32 %v1888, 1e-05
    %v1891 = vadd.f32 %v1889, 1e-05
    %v1892 = vrsqrt.pop %v1890
    %v1893 = vrsqrt.pop %v1891
    %v1894 = vmul.f32 %v1878, %v1892
    %v1895 = vmul.f32 %v1879, %v1893
    %v1896 = vlaneseq
    %v1897 = vshrl.u32 %v1896, 7
    %v1898 = vsub.s32 0, %v1897
    %v1899 = vrot.slane %v137, %v1898
    %v1900 = vmul.f32 %v1894, %v1899
    %v1901 = vmul.f32 %v1895, %v1899
    %v1902 = vlaneseq
    %v1903 = vshrl.u32 %v1902, 7
    %v1904 = vsub.s32 0, %v1903
    %v1905 = vrot.slane %v138, %v1904
    %v1906 = vadd.f32 %v1900, %v1905
    %v1907 = vadd.f32 %v1901, %v1905
    %v1908 = vmul.f32 %v1906, %v97
    %v1909 = vmul.f32 %v1907, %v98
    %v1910 = vld [vmem:[#allocation7 + $0x18] sm:$0xff]
    %v1911 = vld [vmem:[#allocation7 + $0x50] sm:$0xff]
    %v1912 = vld [vmem:[#allocation7 + $0x88] sm:$0xff]
    %v1913 = vld [vmem:[#allocation7 + $0xc0] sm:$0xff]
    %v1914 = vld [vmem:[#allocation7 + $0x20] sm:$0xff]
    %v1915 = vld [vmem:[#allocation7 + $0x58] sm:$0xff]
    %v1916 = vld [vmem:[#allocation7 + $0x90] sm:$0xff]
    %v1917 = vld [vmem:[#allocation7 + $0xc8] sm:$0xff]
    %v1918 = vld [vmem:[#allocation7 + $0x28] sm:$0xff]
    %v1919 = vld [vmem:[#allocation7 + $0x60] sm:$0xff]
    %v1920 = vld [vmem:[#allocation7 + $0x98] sm:$0xff]
    %v1921 = vld [vmem:[#allocation7 + $0xd0] sm:$0xff]
    %v1922 = vld [vmem:[#allocation9 + $0x8] sm:$0xff]
    %v1923 = vld [vmem:[#allocation9 + $0x18] sm:$0xff]
    %v1924 = vld [vmem:[#allocation9 + $0x28] sm:$0xff]
    %v1925 = vld [vmem:[#allocation9 + $0x38] sm:$0xff]
    %v1926 = vld [vmem:[#allocation9 + $0x48] sm:$0xff]
    %v1927 = vld [vmem:[#allocation9 + $0x58] sm:$0xff]
    %v1928 = vld [vmem:[#allocation9 + $0x68] sm:$0xff]
    %v1929 = vld [vmem:[#allocation9 + $0x78] sm:$0xff]
    %v1930 = vld [vmem:[#allocation9 + $0x88] sm:$0xff]
    %v1931 = vld [vmem:[#allocation9 + $0x98] sm:$0xff]
    %v1932 = vld [vmem:[#allocation9 + $0xa8] sm:$0xff]
    %v1933 = vld [vmem:[#allocation9 + $0xb8] sm:$0xff]
    %v1934 = vld [vmem:[#allocation9 + $0xc8] sm:$0xff]
    %v1935 = vld [vmem:[#allocation9 + $0xd8] sm:$0xff]
    %v1936 = vld [vmem:[#allocation9 + $0xe8] sm:$0xff]
    %v1937 = vld [vmem:[#allocation9 + $0xf8] sm:$0xff]
    %v1938 = vld [vmem:[#allocation10 + $0x8] sm:$0x1]
    %v1939 = vld [vmem:[#allocation10 + $0x9] sm:$0x1]
    %v1940 = vld [vmem:[#allocation10 + $0xa] sm:$0x1]
    %v1941 = vld [vmem:[#allocation10 + $0xb] sm:$0x1]
    %v1942 = vld [vmem:[#allocation10 + $0xc] sm:$0x1]
    %v1943 = vld [vmem:[#allocation10 + $0xd] sm:$0x1]
    %v1944 = vld [vmem:[#allocation10 + $0xe] sm:$0x1]
    %v1945 = vld [vmem:[#allocation10 + $0xf] sm:$0x1]
    %v1946 = vlaneseq
    %v1947 = vshrl.u32 %v1946, 7
    %v1948 = vsub.s32 0, %v1947
    %v1949 = vrot.slane %v1938, %v1948
    %v1951 = vsel %vm143, %v1908, 0
    %v1954 = vsel %vm143, %v1909, 0
    %1956 = vmatprep.subr.mxu0 0.0
    %1957 = vmatpush1.msra.mxu0 %v1910
    %1958 = vmatprep.subr.mxu0 0.0
    %1959 = vmatpush1.msra.mxu0 %v1911
    %1960 = vmatprep.subr.mxu0 0.0
    %1961 = vmatpush1.msra.mxu0 %v1912
    %1962 = vmatprep.subr.mxu0 0.0
    %1963 = vmatpush1.msra.mxu0 %v1913
    %1964 = vmatprep.subr.mxu0 0.0
    %1965 = vmatpush1.msra.mxu0 0.0
    %1966 = vmatprep.subr.mxu0 0.0
    %1967 = vmatpush1.msra.mxu0 0.0
    %1968 = vmatprep.subr.mxu0 0.0
    %1969 = vmatpush1.msra.mxu0 0.0
    %1970 = vmatprep.subr.mxu0 0.0
    %1971 = vmatpush1.msra.mxu0 0.0
    %1972 = vmatprep.subr.mxu0 0.0
    %1973 = vmatpush1.msra.mxu0 0.0
    %1974 = vmatprep.subr.mxu0 0.0
    %1975 = vmatpush1.msra.mxu0 0.0
    %1976 = vmatprep.subr.mxu0 0.0
    %1977 = vmatpush1.msra.mxu0 0.0
    %1978 = vmatprep.subr.mxu0 0.0
    %1979 = vmatpush1.msra.mxu0 0.0
    %1980 = vmatprep.subr.mxu0 0.0
    %1981 = vmatpush1.msra.mxu0 0.0
    %1982 = vmatprep.subr.mxu0 0.0
    %1983 = vmatpush1.msra.mxu0 0.0
    %1984 = vmatprep.subr.mxu0 0.0
    %1985 = vmatpush1.msra.mxu0 0.0
    %1986 = vmatprep.subr.mxu0 0.0
    %1987 = vmatpush1.msra.mxu0 0.0
    %1988 = vmatprep.subr.mxu0 0.0
    %1989 = vmatpush1.msra.mxu0 0.0
    %1990 = vmatprep.subr.mxu0 0.0
    %1991 = vmatpush1.msra.mxu0 0.0
    %1992 = vmatprep.subr.mxu0 0.0
    %1993 = vmatpush1.msra.mxu0 0.0
    %1994 = vmatprep.subr.mxu0 0.0
    %1995 = vmatpush1.msra.mxu0 0.0
    %1996 = vmatprep.subr.mxu0 0.0
    %1997 = vmatpush1.msra.mxu0 0.0
    %1998 = vmatprep.subr.mxu0 0.0
    %1999 = vmatpush1.msra.mxu0 0.0
    %2000 = vmatprep.subr.mxu0 0.0
    %2001 = vmatpush1.msra.mxu0 0.0
    %2002 = vmatprep.subr.mxu0 0.0
    %2003 = vmatpush1.msra.mxu0 0.0
    %2004 = vmatprep.subr.mxu0 0.0
    %2005 = vmatpush1.msra.mxu0 0.0
    %2006 = vmatprep.subr.mxu0 0.0
    %2007 = vmatpush1.msra.mxu0 0.0
    %2008 = vmatprep.subr.mxu0 0.0
    %2009 = vmatpush1.msra.mxu0 0.0
    %2010 = vmatprep.subr.mxu0 0.0
    %2011 = vmatpush1.msra.mxu0 0.0
    %2012 = vmatprep.subr.mxu0 0.0
    %2013 = vmatpush1.msra.mxu0 0.0
    %2014 = vmatprep.subr.mxu0 0.0
    %2015 = vmatpush1.msra.mxu0 0.0
    %2016 = vmatprep.subr.mxu0 0.0
    %2017 = vmatpush1.msra.mxu0 0.0
    %2018 = vmatprep.subr.mxu0 0.0
    %2019 = vmatpush1.msra.mxu0 0.0
    %2020 = vmatprep.mubr.f32.mxu0 0.0
    %2021 = vmatmul.mubr.f32.gmra.mrb[0].mxu0 %v1951
    %v2022 = vpop.f32.mrb[0].mxu0
    %v2023 = vadd.f32 %v1949, %v2022
    %v2024 = vpop.f32.mrb[0].mxu0
    %2025 = vmatprep.mubr.f32.mxu0 0.0
    %2026 = vmatmul.mubr.f32.gmra.mrb[0].mxu0 %v1954
    %v2027 = vpop.f32.mrb[0].mxu0
    %v2028 = vadd.f32 %v1949, %v2027
    %v2029 = vpop.f32.mrb[0].mxu0
    %2030 = vdwg.mxu0
    %2033 = vrot.lane.b32.xlu0 %v2023, 120
    %v2034 = vpop.permute.xlu0 %2033
    %2035 = vrot.lane.b32.xlu0 %v2028, 120
    %v2036 = vpop.permute.xlu0 %2035
    %2037 = vrot.lane.b32.xlu0 %v2023, 112
    %v2038 = vpop.permute.xlu0 %2037
    %2039 = vrot.lane.b32.xlu0 %v2028, 112
    %v2040 = vpop.permute.xlu0 %2039
    %2041 = vrot.lane.b32.xlu0 %v2023, 104
    %v2042 = vpop.permute.xlu0 %2041
    %2043 = vrot.lane.b32.xlu0 %v2028, 104
    %v2044 = vpop.permute.xlu0 %2043
    %2045 = vrot.lane.b32.xlu0 %v2023, 96
    %v2046 = vpop.permute.xlu0 %2045
    %v2047 = vsel %vm241, %v2023, 0
    %v2049 = vsel %vm241, %v2046, 0
    %2051 = vmatprep.subr.mxu0 0.0
    %2052 = vmatpush1.xpose.msra.mxu0 %v2049
    %2053 = vmatprep.subr.mxu0 0.0
    %2054 = vmatpush1.xpose.msra.mxu0 0.0
    %2055 = vmatprep.subr.mxu0 0.0
    %2056 = vmatpush1.xpose.msra.mxu0 0.0
    %2057 = vmatprep.subr.mxu0 0.0
    %2058 = vmatpush1.xpose.msra.mxu0 0.0
    %2059 = vmatprep.subr.mxu0 0.0
    %2060 = vmatpush1.xpose.msra.mxu0 0.0
    %2061 = vmatprep.subr.mxu0 0.0
    %2062 = vmatpush1.xpose.msra.mxu0 0.0
    %2063 = vmatprep.subr.mxu0 0.0
    %2064 = vmatpush1.xpose.msra.mxu0 0.0
    %2065 = vmatprep.subr.mxu0 0.0
    %2066 = vmatpush1.xpose.msra.mxu0 0.0
    %2067 = vmatprep.subr.mxu0 0.0
    %2068 = vmatpush1.xpose.msra.mxu0 0.0
    %2069 = vmatprep.subr.mxu0 0.0
    %2070 = vmatpush1.xpose.msra.mxu0 0.0
    %2071 = vmatprep.subr.mxu0 0.0
    %2072 = vmatpush1.xpose.msra.mxu0 0.0
    %2073 = vmatprep.subr.mxu0 0.0
    %2074 = vmatpush1.xpose.msra.mxu0 0.0
    %2075 = vmatprep.subr.mxu0 0.0
    %2076 = vmatpush1.xpose.msra.mxu0 0.0
    %2077 = vmatprep.subr.mxu0 0.0
    %2078 = vmatpush1.xpose.msra.mxu0 0.0
    %2079 = vmatprep.subr.mxu0 0.0
    %2080 = vmatpush1.xpose.msra.mxu0 0.0
    %2081 = vmatprep.subr.mxu0 0.0
    %2082 = vmatpush1.xpose.msra.mxu0 0.0
    %2083 = vmatprep.subr.mxu0 0.0
    %2084 = vmatpush1.xpose.msra.mxu0 0.0
    %2085 = vmatprep.subr.mxu0 0.0
    %2086 = vmatpush1.xpose.msra.mxu0 0.0
    %2087 = vmatprep.subr.mxu0 0.0
    %2088 = vmatpush1.xpose.msra.mxu0 0.0
    %2089 = vmatprep.subr.mxu0 0.0
    %2090 = vmatpush1.xpose.msra.mxu0 0.0
    %2091 = vmatprep.subr.mxu0 0.0
    %2092 = vmatpush1.xpose.msra.mxu0 0.0
    %2093 = vmatprep.subr.mxu0 0.0
    %2094 = vmatpush1.xpose.msra.mxu0 0.0
    %2095 = vmatprep.subr.mxu0 0.0
    %2096 = vmatpush1.xpose.msra.mxu0 0.0
    %2097 = vmatprep.subr.mxu0 0.0
    %2098 = vmatpush1.xpose.msra.mxu0 0.0
    %2099 = vmatprep.subr.mxu0 0.0
    %2100 = vmatpush1.xpose.msra.mxu0 0.0
    %2101 = vmatprep.subr.mxu0 0.0
    %2102 = vmatpush1.xpose.msra.mxu0 0.0
    %2103 = vmatprep.subr.mxu0 0.0
    %2104 = vmatpush1.xpose.msra.mxu0 0.0
    %2105 = vmatprep.subr.mxu0 0.0
    %2106 = vmatpush1.xpose.msra.mxu0 0.0
    %2107 = vmatprep.subr.mxu0 0.0
    %2108 = vmatpush1.xpose.msra.mxu0 0.0
    %2109 = vmatprep.subr.mxu0 0.0
    %2110 = vmatpush1.xpose.msra.mxu0 0.0
    %2111 = vmatprep.subr.mxu0 0.0
    %2112 = vmatpush1.xpose.msra.mxu0 0.0
    %2113 = vmatprep.subr.mxu0 0.0
    %2114 = vmatpush1.xpose.msra.mxu0 0.0
    %2115 = vmatprep.mubr.f32.mxu0 0.0
    %2116 = vmatmul.mubr.f32.gmra.mrb[0].mxu0 %v2047
    %v2117 = vpop.f32.mrb[0].mxu0
    %v2118 = vadd.f32 0.0, %v2117
    %v2119 = vpop.f32.mrb[0].mxu0
    %2120 = vdwg.mxu0
    %2121 = vrot.lane.b32.xlu0 %v2028, 96
    %v2122 = vpop.permute.xlu0 %2121
    %v2123 = vsel %vm241, %v2028, 0
    %v2125 = vsel %vm241, %v2122, 0
    %2127 = vmatprep.subr.mxu0 0.0
    %2128 = vmatpush1.xpose.msra.mxu0 %v2125
    %2129 = vmatprep.subr.mxu0 0.0
    %2130 = vmatpush1.xpose.msra.mxu0 0.0
    %2131 = vmatprep.subr.mxu0 0.0
    %2132 = vmatpush1.xpose.msra.mxu0 0.0
    %2133 = vmatprep.subr.mxu0 0.0
    %2134 = vmatpush1.xpose.msra.mxu0 0.0
    %2135 = vmatprep.subr.mxu0 0.0
    %2136 = vmatpush1.xpose.msra.mxu0 0.0
    %2137 = vmatprep.subr.mxu0 0.0
    %2138 = vmatpush1.xpose.msra.mxu0 0.0
    %2139 = vmatprep.subr.mxu0 0.0
    %2140 = vmatpush1.xpose.msra.mxu0 0.0
    %2141 = vmatprep.subr.mxu0 0.0
    %2142 = vmatpush1.xpose.msra.mxu0 0.0
    %2143 = vmatprep.subr.mxu0 0.0
    %2144 = vmatpush1.xpose.msra.mxu0 0.0
    %2145 = vmatprep.subr.mxu0 0.0
    %2146 = vmatpush1.xpose.msra.mxu0 0.0
    %2147 = vmatprep.subr.mxu0 0.0
    %2148 = vmatpush1.xpose.msra.mxu0 0.0
    %2149 = vmatprep.subr.mxu0 0.0
    %2150 = vmatpush1.xpose.msra.mxu0 0.0
    %2151 = vmatprep.subr.mxu0 0.0
    %2152 = vmatpush1.xpose.msra.mxu0 0.0
    %2153 = vmatprep.subr.mxu0 0.0
    %2154 = vmatpush1.xpose.msra.mxu0 0.0
    %2155 = vmatprep.subr.mxu0 0.0
    %2156 = vmatpush1.xpose.msra.mxu0 0.0
    %2157 = vmatprep.subr.mxu0 0.0
    %2158 = vmatpush1.xpose.msra.mxu0 0.0
    %2159 = vmatprep.subr.mxu0 0.0
    %2160 = vmatpush1.xpose.msra.mxu0 0.0
    %2161 = vmatprep.subr.mxu0 0.0
    %2162 = vmatpush1.xpose.msra.mxu0 0.0
    %2163 = vmatprep.subr.mxu0 0.0
    %2164 = vmatpush1.xpose.msra.mxu0 0.0
    %2165 = vmatprep.subr.mxu0 0.0
    %2166 = vmatpush1.xpose.msra.mxu0 0.0
    %2167 = vmatprep.subr.mxu0 0.0
    %2168 = vmatpush1.xpose.msra.mxu0 0.0
    %2169 = vmatprep.subr.mxu0 0.0
    %2170 = vmatpush1.xpose.msra.mxu0 0.0
    %2171 = vmatprep.subr.mxu0 0.0
    %2172 = vmatpush1.xpose.msra.mxu0 0.0
    %2173 = vmatprep.subr.mxu0 0.0
    %2174 = vmatpush1.xpose.msra.mxu0 0.0
    %2175 = vmatprep.subr.mxu0 0.0
    %2176 = vmatpush1.xpose.msra.mxu0 0.0
    %2177 = vmatprep.subr.mxu0 0.0
    %2178 = vmatpush1.xpose.msra.mxu0 0.0
    %2179 = vmatprep.subr.mxu0 0.0
    %2180 = vmatpush1.xpose.msra.mxu0 0.0
    %2181 = vmatprep.subr.mxu0 0.0
    %2182 = vmatpush1.xpose.msra.mxu0 0.0
    %2183 = vmatprep.subr.mxu0 0.0
    %2184 = vmatpush1.xpose.msra.mxu0 0.0
    %2185 = vmatprep.subr.mxu0 0.0
    %2186 = vmatpush1.xpose.msra.mxu0 0.0
    %2187 = vmatprep.subr.mxu0 0.0
    %2188 = vmatpush1.xpose.msra.mxu0 0.0
    %2189 = vmatprep.subr.mxu0 0.0
    %2190 = vmatpush1.xpose.msra.mxu0 0.0
    %2191 = vmatprep.mubr.f32.mxu0 0.0
    %2192 = vmatmul.mubr.f32.gmra.mrb[0].mxu0 %v2123
    %v2193 = vpop.f32.mrb[0].mxu0
    %v2194 = vadd.f32 0.0, %v2193
    %v2195 = vpop.f32.mrb[0].mxu0
    %2196 = vdwg.mxu0
    %2197 = vrot.lane.b32.xlu0 %v2034, 96
    %v2198 = vpop.permute.xlu0 %2197
    %v2199 = vsel %vm241, %v2034, 0
    %v2201 = vsel %vm241, %v2198, 0
    %2203 = vmatprep.subr.mxu0 0.0
    %2204 = vmatpush1.xpose.msra.mxu0 %v2201
    %2205 = vmatprep.subr.mxu0 0.0
    %2206 = vmatpush1.xpose.msra.mxu0 0.0
    %2207 = vmatprep.subr.mxu0 0.0
    %2208 = vmatpush1.xpose.msra.mxu0 0.0
    %2209 = vmatprep.subr.mxu0 0.0
    %2210 = vmatpush1.xpose.msra.mxu0 0.0
    %2211 = vmatprep.subr.mxu0 0.0
    %2212 = vmatpush1.xpose.msra.mxu0 0.0
    %2213 = vmatprep.subr.mxu0 0.0
    %2214 = vmatpush1.xpose.msra.mxu0 0.0
    %2215 = vmatprep.subr.mxu0 0.0
    %2216 = vmatpush1.xpose.msra.mxu0 0.0
    %2217 = vmatprep.subr.mxu0 0.0
    %2218 = vmatpush1.xpose.msra.mxu0 0.0
    %2219 = vmatprep.subr.mxu0 0.0
    %2220 = vmatpush1.xpose.msra.mxu0 0.0
    %2221 = vmatprep.subr.mxu0 0.0
    %2222 = vmatpush1.xpose.msra.mxu0 0.0
    %2223 = vmatprep.subr.mxu0 0.0
    %2224 = vmatpush1.xpose.msra.mxu0 0.0
    %2225 = vmatprep.subr.mxu0 0.0
    %2226 = vmatpush1.xpose.msra.mxu0 0.0
    %2227 = vmatprep.subr.mxu0 0.0
    %2228 = vmatpush1.xpose.msra.mxu0 0.0
    %2229 = vmatprep.subr.mxu0 0.0
    %2230 = vmatpush1.xpose.msra.mxu0 0.0
    %2231 = vmatprep.subr.mxu0 0.0
    %2232 = vmatpush1.xpose.msra.mxu0 0.0
    %2233 = vmatprep.subr.mxu0 0.0
    %2234 = vmatpush1.xpose.msra.mxu0 0.0
    %2235 = vmatprep.subr.mxu0 0.0
    %2236 = vmatpush1.xpose.msra.mxu0 0.0
    %2237 = vmatprep.subr.mxu0 0.0
    %2238 = vmatpush1.xpose.msra.mxu0 0.0
    %2239 = vmatprep.subr.mxu0 0.0
    %2240 = vmatpush1.xpose.msra.mxu0 0.0
    %2241 = vmatprep.subr.mxu0 0.0
    %2242 = vmatpush1.xpose.msra.mxu0 0.0
    %2243 = vmatprep.subr.mxu0 0.0
    %2244 = vmatpush1.xpose.msra.mxu0 0.0
    %2245 = vmatprep.subr.mxu0 0.0
    %2246 = vmatpush1.xpose.msra.mxu0 0.0
    %2247 = vmatprep.subr.mxu0 0.0
    %2248 = vmatpush1.xpose.msra.mxu0 0.0
    %2249 = vmatprep.subr.mxu0 0.0
    %2250 = vmatpush1.xpose.msra.mxu0 0.0
    %2251 = vmatprep.subr.mxu0 0.0
    %2252 = vmatpush1.xpose.msra.mxu0 0.0
    %2253 = vmatprep.subr.mxu0 0.0
    %2254 = vmatpush1.xpose.msra.mxu0 0.0
    %2255 = vmatprep.subr.mxu0 0.0
    %2256 = vmatpush1.xpose.msra.mxu0 0.0
    %2257 = vmatprep.subr.mxu0 0.0
    %2258 = vmatpush1.xpose.msra.mxu0 0.0
    %2259 = vmatprep.subr.mxu0 0.0
    %2260 = vmatpush1.xpose.msra.mxu0 0.0
    %2261 = vmatprep.subr.mxu0 0.0
    %2262 = vmatpush1.xpose.msra.mxu0 0.0
    %2263 = vmatprep.subr.mxu0 0.0
    %2264 = vmatpush1.xpose.msra.mxu0 0.0
    %2265 = vmatprep.subr.mxu0 0.0
    %2266 = vmatpush1.xpose.msra.mxu0 0.0
    %2267 = vmatprep.mubr.f32.mxu0 0.0
    %2268 = vmatmul.mubr.f32.gmra.mrb[0].mxu0 %v2199
    %v2269 = vpop.f32.mrb[0].mxu0
    %v2270 = vadd.f32 0.0, %v2269
    %v2271 = vpop.f32.mrb[0].mxu0
    %2272 = vdwg.mxu0
    %2273 = vrot.lane.b32.xlu0 %v2036, 96
    %v2274 = vpop.permute.xlu0 %2273
    %v2275 = vsel %vm241, %v2036, 0
    %v2277 = vsel %vm241, %v2274, 0
    %2279 = vmatprep.subr.mxu0 0.0
    %2280 = vmatpush1.xpose.msra.mxu0 %v2277
    %2281 = vmatprep.subr.mxu0 0.0
    %2282 = vmatpush1.xpose.msra.mxu0 0.0
    %2283 = vmatprep.subr.mxu0 0.0
    %2284 = vmatpush1.xpose.msra.mxu0 0.0
    %2285 = vmatprep.subr.mxu0 0.0
    %2286 = vmatpush1.xpose.msra.mxu0 0.0
    %2287 = vmatprep.subr.mxu0 0.0
    %2288 = vmatpush1.xpose.msra.mxu0 0.0
    %2289 = vmatprep.subr.mxu0 0.0
    %2290 = vmatpush1.xpose.msra.mxu0 0.0
    %2291 = vmatprep.subr.mxu0 0.0
    %2292 = vmatpush1.xpose.msra.mxu0 0.0
    %2293 = vmatprep.subr.mxu0 0.0
    %2294 = vmatpush1.xpose.msra.mxu0 0.0
    %2295 = vmatprep.subr.mxu0 0.0
    %2296 = vmatpush1.xpose.msra.mxu0 0.0
    %2297 = vmatprep.subr.mxu0 0.0
    %2298 = vmatpush1.xpose.msra.mxu0 0.0
    %2299 = vmatprep.subr.mxu0 0.0
    %2300 = vmatpush1.xpose.msra.mxu0 0.0
    %2301 = vmatprep.subr.mxu0 0.0
    %2302 = vmatpush1.xpose.msra.mxu0 0.0
    %2303 = vmatprep.subr.mxu0 0.0
    %2304 = vmatpush1.xpose.msra.mxu0 0.0
    %2305 = vmatprep.subr.mxu0 0.0
    %2306 = vmatpush1.xpose.msra.mxu0 0.0
    %2307 = vmatprep.subr.mxu0 0.0
    %2308 = vmatpush1.xpose.msra.mxu0 0.0
    %2309 = vmatprep.subr.mxu0 0.0
    %2310 = vmatpush1.xpose.msra.mxu0 0.0
    %2311 = vmatprep.subr.mxu0 0.0
    %2312 = vmatpush1.xpose.msra.mxu0 0.0
    %2313 = vmatprep.subr.mxu0 0.0
    %2314 = vmatpush1.xpose.msra.mxu0 0.0
    %2315 = vmatprep.subr.mxu0 0.0
    %2316 = vmatpush1.xpose.msra.mxu0 0.0
    %2317 = vmatprep.subr.mxu0 0.0
    %2318 = vmatpush1.xpose.msra.mxu0 0.0
    %2319 = vmatprep.subr.mxu0 0.0
    %2320 = vmatpush1.xpose.msra.mxu0 0.0
    %2321 = vmatprep.subr.mxu0 0.0
    %2322 = vmatpush1.xpose.msra.mxu0 0.0
    %2323 = vmatprep.subr.mxu0 0.0
    %2324 = vmatpush1.xpose.msra.mxu0 0.0
    %2325 = vmatprep.subr.mxu0 0.0
    %2326 = vmatpush1.xpose.msra.mxu0 0.0
    %2327 = vmatprep.subr.mxu0 0.0
    %2328 = vmatpush1.xpose.msra.mxu0 0.0
    %2329 = vmatprep.subr.mxu0 0.0
    %2330 = vmatpush1.xpose.msra.mxu0 0.0
    %2331 = vmatprep.subr.mxu0 0.0
    %2332 = vmatpush1.xpose.msra.mxu0 0.0
    %2333 = vmatprep.subr.mxu0 0.0
    %2334 = vmatpush1.xpose.msra.mxu0 0.0
    %2335 = vmatprep.subr.mxu0 0.0
    %2336 = vmatpush1.xpose.msra.mxu0 0.0
    %2337 = vmatprep.subr.mxu0 0.0
    %2338 = vmatpush1.xpose.msra.mxu0 0.0
    %2339 = vmatprep.subr.mxu0 0.0
    %2340 = vmatpush1.xpose.msra.mxu0 0.0
    %2341 = vmatprep.subr.mxu0 0.0
    %2342 = vmatpush1.xpose.msra.mxu0 0.0
    %2343 = vmatprep.mubr.f32.mxu0 0.0
    %2344 = vmatmul.mubr.f32.gmra.mrb[0].mxu0 %v2275
    %v2345 = vpop.f32.mrb[0].mxu0
    %v2346 = vadd.f32 0.0, %v2345
    %v2347 = vpop.f32.mrb[0].mxu0
    %2348 = vdwg.mxu0
    %2349 = vrot.lane.b32.xlu0 %v2038, 96
    %v2350 = vpop.permute.xlu0 %2349
    %v2351 = vsel %vm241, %v2038, 0
    %v2353 = vsel %vm241, %v2350, 0
    %2355 = vmatprep.subr.mxu0 0.0
    %2356 = vmatpush1.xpose.msra.mxu0 %v2353
    %2357 = vmatprep.subr.mxu0 0.0
    %2358 = vmatpush1.xpose.msra.mxu0 0.0
    %2359 = vmatprep.subr.mxu0 0.0
    %2360 = vmatpush1.xpose.msra.mxu0 0.0
    %2361 = vmatprep.subr.mxu0 0.0
    %2362 = vmatpush1.xpose.msra.mxu0 0.0
    %2363 = vmatprep.subr.mxu0 0.0
    %2364 = vmatpush1.xpose.msra.mxu0 0.0
    %2365 = vmatprep.subr.mxu0 0.0
    %2366 = vmatpush1.xpose.msra.mxu0 0.0
    %2367 = vmatprep.subr.mxu0 0.0
    %2368 = vmatpush1.xpose.msra.mxu0 0.0
    %2369 = vmatprep.subr.mxu0 0.0
    %2370 = vmatpush1.xpose.msra.mxu0 0.0
    %2371 = vmatprep.subr.mxu0 0.0
    %2372 = vmatpush1.xpose.msra.mxu0 0.0
    %2373 = vmatprep.subr.mxu0 0.0
    %2374 = vmatpush1.xpose.msra.mxu0 0.0
    %2375 = vmatprep.subr.mxu0 0.0
    %2376 = vmatpush1.xpose.msra.mxu0 0.0
    %2377 = vmatprep.subr.mxu0 0.0
    %2378 = vmatpush1.xpose.msra.mxu0 0.0
    %2379 = vmatprep.subr.mxu0 0.0
    %2380 = vmatpush1.xpose.msra.mxu0 0.0
    %2381 = vmatprep.subr.mxu0 0.0
    %2382 = vmatpush1.xpose.msra.mxu0 0.0
    %2383 = vmatprep.subr.mxu0 0.0
    %2384 = vmatpush1.xpose.msra.mxu0 0.0
    %2385 = vmatprep.subr.mxu0 0.0
    %2386 = vmatpush1.xpose.msra.mxu0 0.0
    %2387 = vmatprep.subr.mxu0 0.0
    %2388 = vmatpush1.xpose.msra.mxu0 0.0
    %2389 = vmatprep.subr.mxu0 0.0
    %2390 = vmatpush1.xpose.msra.mxu0 0.0
    %2391 = vmatprep.subr.mxu0 0.0
    %2392 = vmatpush1.xpose.msra.mxu0 0.0
    %2393 = vmatprep.subr.mxu0 0.0
    %2394 = vmatpush1.xpose.msra.mxu0 0.0
    %2395 = vmatprep.subr.mxu0 0.0
    %2396 = vmatpush1.xpose.msra.mxu0 0.0
    %2397 = vmatprep.subr.mxu0 0.0
    %2398 = vmatpush1.xpose.msra.mxu0 0.0
    %2399 = vmatprep.subr.mxu0 0.0
    %2400 = vmatpush1.xpose.msra.mxu0 0.0
    %2401 = vmatprep.subr.mxu0 0.0
    %2402 = vmatpush1.xpose.msra.mxu0 0.0
    %2403 = vmatprep.subr.mxu0 0.0
    %2404 = vmatpush1.xpose.msra.mxu0 0.0
    %2405 = vmatprep.subr.mxu0 0.0
    %2406 = vmatpush1.xpose.msra.mxu0 0.0
    %2407 = vmatprep.subr.mxu0 0.0
    %2408 = vmatpush1.xpose.msra.mxu0 0.0
    %2409 = vmatprep.subr.mxu0 0.0
    %2410 = vmatpush1.xpose.msra.mxu0 0.0
    %2411 = vmatprep.subr.mxu0 0.0
    %2412 = vmatpush1.xpose.msra.mxu0 0.0
    %2413 = vmatprep.subr.mxu0 0.0
    %2414 = vmatpush1.xpose.msra.mxu0 0.0
    %2415 = vmatprep.subr.mxu0 0.0
    %2416 = vmatpush1.xpose.msra.mxu0 0.0
    %2417 = vmatprep.subr.mxu0 0.0
    %2418 = vmatpush1.xpose.msra.mxu0 0.0
    %2419 = vmatprep.mubr.f32.mxu0 0.0
    %2420 = vmatmul.mubr.f32.gmra.mrb[0].mxu0 %v2351
    %v2421 = vpop.f32.mrb[0].mxu0
    %v2422 = vadd.f32 0.0, %v2421
    %v2423 = vpop.f32.mrb[0].mxu0
    %2424 = vdwg.mxu0
    %2425 = vrot.lane.b32.xlu0 %v2040, 96
    %v2426 = vpop.permute.xlu0 %2425
    %v2427 = vsel %vm241, %v2040, 0
    %v2429 = vsel %vm241, %v2426, 0
    %2431 = vmatprep.subr.mxu0 0.0
    %2432 = vmatpush1.xpose.msra.mxu0 %v2429
    %2433 = vmatprep.subr.mxu0 0.0
    %2434 = vmatpush1.xpose.msra.mxu0 0.0
    %2435 = vmatprep.subr.mxu0 0.0
    %2436 = vmatpush1.xpose.msra.mxu0 0.0
    %2437 = vmatprep.subr.mxu0 0.0
    %2438 = vmatpush1.xpose.msra.mxu0 0.0
    %2439 = vmatprep.subr.mxu0 0.0
    %2440 = vmatpush1.xpose.msra.mxu0 0.0
    %2441 = vmatprep.subr.mxu0 0.0
    %2442 = vmatpush1.xpose.msra.mxu0 0.0
    %2443 = vmatprep.subr.mxu0 0.0
    %2444 = vmatpush1.xpose.msra.mxu0 0.0
    %2445 = vmatprep.subr.mxu0 0.0
    %2446 = vmatpush1.xpose.msra.mxu0 0.0
    %2447 = vmatprep.subr.mxu0 0.0
    %2448 = vmatpush1.xpose.msra.mxu0 0.0
    %2449 = vmatprep.subr.mxu0 0.0
    %2450 = vmatpush1.xpose.msra.mxu0 0.0
    %2451 = vmatprep.subr.mxu0 0.0
    %2452 = vmatpush1.xpose.msra.mxu0 0.0
    %2453 = vmatprep.subr.mxu0 0.0
    %2454 = vmatpush1.xpose.msra.mxu0 0.0
    %2455 = vmatprep.subr.mxu0 0.0
    %2456 = vmatpush1.xpose.msra.mxu0 0.0
    %2457 = vmatprep.subr.mxu0 0.0
    %2458 = vmatpush1.xpose.msra.mxu0 0.0
    %2459 = vmatprep.subr.mxu0 0.0
    %2460 = vmatpush1.xpose.msra.mxu0 0.0
    %2461 = vmatprep.subr.mxu0 0.0
    %2462 = vmatpush1.xpose.msra.mxu0 0.0
    %2463 = vmatprep.subr.mxu0 0.0
    %2464 = vmatpush1.xpose.msra.mxu0 0.0
    %2465 = vmatprep.subr.mxu0 0.0
    %2466 = vmatpush1.xpose.msra.mxu0 0.0
    %2467 = vmatprep.subr.mxu0 0.0
    %2468 = vmatpush1.xpose.msra.mxu0 0.0
    %2469 = vmatprep.subr.mxu0 0.0
    %2470 = vmatpush1.xpose.msra.mxu0 0.0
    %2471 = vmatprep.subr.mxu0 0.0
    %2472 = vmatpush1.xpose.msra.mxu0 0.0
    %2473 = vmatprep.subr.mxu0 0.0
    %2474 = vmatpush1.xpose.msra.mxu0 0.0
    %2475 = vmatprep.subr.mxu0 0.0
    %2476 = vmatpush1.xpose.msra.mxu0 0.0
    %2477 = vmatprep.subr.mxu0 0.0
    %2478 = vmatpush1.xpose.msra.mxu0 0.0
    %2479 = vmatprep.subr.mxu0 0.0
    %2480 = vmatpush1.xpose.msra.mxu0 0.0
    %2481 = vmatprep.subr.mxu0 0.0
    %2482 = vmatpush1.xpose.msra.mxu0 0.0
    %2483 = vmatprep.subr.mxu0 0.0
    %2484 = vmatpush1.xpose.msra.mxu0 0.0
    %2485 = vmatprep.subr.mxu0 0.0
    %2486 = vmatpush1.xpose.msra.mxu0 0.0
    %2487 = vmatprep.subr.mxu0 0.0
    %2488 = vmatpush1.xpose.msra.mxu0 0.0
    %2489 = vmatprep.subr.mxu0 0.0
    %2490 = vmatpush1.xpose.msra.mxu0 0.0
    %2491 = vmatprep.subr.mxu0 0.0
    %2492 = vmatpush1.xpose.msra.mxu0 0.0
    %2493 = vmatprep.subr.mxu0 0.0
    %2494 = vmatpush1.xpose.msra.mxu0 0.0
    %2495 = vmatprep.mubr.f32.mxu0 0.0
    %2496 = vmatmul.mubr.f32.gmra.mrb[0].mxu0 %v2427
    %v2497 = vpop.f32.mrb[0].mxu0
    %v2498 = vadd.f32 0.0, %v2497
    %v2499 = vpop.f32.mrb[0].mxu0
    %2500 = vdwg.mxu0
    %2501 = vrot.lane.b32.xlu0 %v2042, 96
    %v2502 = vpop.permute.xlu0 %2501
    %v2503 = vsel %vm241, %v2042, 0
    %v2505 = vsel %vm241, %v2502, 0
    %2507 = vmatprep.subr.mxu0 0.0
    %2508 = vmatpush1.xpose.msra.mxu0 %v2505
    %2509 = vmatprep.subr.mxu0 0.0
    %2510 = vmatpush1.xpose.msra.mxu0 0.0
    %2511 = vmatprep.subr.mxu0 0.0
    %2512 = vmatpush1.xpose.msra.mxu0 0.0
    %2513 = vmatprep.subr.mxu0 0.0
    %2514 = vmatpush1.xpose.msra.mxu0 0.0
    %2515 = vmatprep.subr.mxu0 0.0
    %2516 = vmatpush1.xpose.msra.mxu0 0.0
    %2517 = vmatprep.subr.mxu0 0.0
    %2518 = vmatpush1.xpose.msra.mxu0 0.0
    %2519 = vmatprep.subr.mxu0 0.0
    %2520 = vmatpush1.xpose.msra.mxu0 0.0
    %2521 = vmatprep.subr.mxu0 0.0
    %2522 = vmatpush1.xpose.msra.mxu0 0.0
    %2523 = vmatprep.subr.mxu0 0.0
    %2524 = vmatpush1.xpose.msra.mxu0 0.0
    %2525 = vmatprep.subr.mxu0 0.0
    %2526 = vmatpush1.xpose.msra.mxu0 0.0
    %2527 = vmatprep.subr.mxu0 0.0
    %2528 = vmatpush1.xpose.msra.mxu0 0.0
    %2529 = vmatprep.subr.mxu0 0.0
    %2530 = vmatpush1.xpose.msra.mxu0 0.0
    %2531 = vmatprep.subr.mxu0 0.0
    %2532 = vmatpush1.xpose.msra.mxu0 0.0
    %2533 = vmatprep.subr.mxu0 0.0
    %2534 = vmatpush1.xpose.msra.mxu0 0.0
    %2535 = vmatprep.subr.mxu0 0.0
    %2536 = vmatpush1.xpose.msra.mxu0 0.0
    %2537 = vmatprep.subr.mxu0 0.0
    %2538 = vmatpush1.xpose.msra.mxu0 0.0
    %2539 = vmatprep.subr.mxu0 0.0
    %2540 = vmatpush1.xpose.msra.mxu0 0.0
    %2541 = vmatprep.subr.mxu0 0.0
    %2542 = vmatpush1.xpose.msra.mxu0 0.0
    %2543 = vmatprep.subr.mxu0 0.0
    %2544 = vmatpush1.xpose.msra.mxu0 0.0
    %2545 = vmatprep.subr.mxu0 0.0
    %2546 = vmatpush1.xpose.msra.mxu0 0.0
    %2547 = vmatprep.subr.mxu0 0.0
    %2548 = vmatpush1.xpose.msra.mxu0 0.0
    %2549 = vmatprep.subr.mxu0 0.0
    %2550 = vmatpush1.xpose.msra.mxu0 0.0
    %2551 = vmatprep.subr.mxu0 0.0
    %2552 = vmatpush1.xpose.msra.mxu0 0.0
    %2553 = vmatprep.subr.mxu0 0.0
    %2554 = vmatpush1.xpose.msra.mxu0 0.0
    %2555 = vmatprep.subr.mxu0 0.0
    %2556 = vmatpush1.xpose.msra.mxu0 0.0
    %2557 = vmatprep.subr.mxu0 0.0
    %2558 = vmatpush1.xpose.msra.mxu0 0.0
    %2559 = vmatprep.subr.mxu0 0.0
    %2560 = vmatpush1.xpose.msra.mxu0 0.0
    %2561 = vmatprep.subr.mxu0 0.0
    %2562 = vmatpush1.xpose.msra.mxu0 0.0
    %2563 = vmatprep.subr.mxu0 0.0
    %2564 = vmatpush1.xpose.msra.mxu0 0.0
    %2565 = vmatprep.subr.mxu0 0.0
    %2566 = vmatpush1.xpose.msra.mxu0 0.0
    %2567 = vmatprep.subr.mxu0 0.0
    %2568 = vmatpush1.xpose.msra.mxu0 0.0
    %2569 = vmatprep.subr.mxu0 0.0
    %2570 = vmatpush1.xpose.msra.mxu0 0.0
    %2571 = vmatprep.mubr.f32.mxu0 0.0
    %2572 = vmatmul.mubr.f32.gmra.mrb[0].mxu0 %v2503
    %v2573 = vpop.f32.mrb[0].mxu0
    %v2574 = vadd.f32 0.0, %v2573
    %v2575 = vpop.f32.mrb[0].mxu0
    %2576 = vdwg.mxu0
    %2577 = vrot.lane.b32.xlu0 %v2044, 96
    %v2578 = vpop.permute.xlu0 %2577
    %v2579 = vsel %vm241, %v2044, 0
    %v2581 = vsel %vm241, %v2578, 0
    %2583 = vmatprep.subr.mxu0 0.0
    %2584 = vmatpush1.xpose.msra.mxu0 %v2581
    %2585 = vmatprep.subr.mxu0 0.0
    %2586 = vmatpush1.xpose.msra.mxu0 0.0
    %2587 = vmatprep.subr.mxu0 0.0
    %2588 = vmatpush1.xpose.msra.mxu0 0.0
    %2589 = vmatprep.subr.mxu0 0.0
    %2590 = vmatpush1.xpose.msra.mxu0 0.0
    %2591 = vmatprep.subr.mxu0 0.0
    %2592 = vmatpush1.xpose.msra.mxu0 0.0
    %2593 = vmatprep.subr.mxu0 0.0
    %2594 = vmatpush1.xpose.msra.mxu0 0.0
    %2595 = vmatprep.subr.mxu0 0.0
    %2596 = vmatpush1.xpose.msra.mxu0 0.0
    %2597 = vmatprep.subr.mxu0 0.0
    %2598 = vmatpush1.xpose.msra.mxu0 0.0
    %2599 = vmatprep.subr.mxu0 0.0
    %2600 = vmatpush1.xpose.msra.mxu0 0.0
    %2601 = vmatprep.subr.mxu0 0.0
    %2602 = vmatpush1.xpose.msra.mxu0 0.0
    %2603 = vmatprep.subr.mxu0 0.0
    %2604 = vmatpush1.xpose.msra.mxu0 0.0
    %2605 = vmatprep.subr.mxu0 0.0
    %2606 = vmatpush1.xpose.msra.mxu0 0.0
    %2607 = vmatprep.subr.mxu0 0.0
    %2608 = vmatpush1.xpose.msra.mxu0 0.0
    %2609 = vmatprep.subr.mxu0 0.0
    %2610 = vmatpush1.xpose.msra.mxu0 0.0
    %2611 = vmatprep.subr.mxu0 0.0
    %2612 = vmatpush1.xpose.msra.mxu0 0.0
    %2613 = vmatprep.subr.mxu0 0.0
    %2614 = vmatpush1.xpose.msra.mxu0 0.0
    %2615 = vmatprep.subr.mxu0 0.0
    %2616 = vmatpush1.xpose.msra.mxu0 0.0
    %2617 = vmatprep.subr.mxu0 0.0
    %2618 = vmatpush1.xpose.msra.mxu0 0.0
    %2619 = vmatprep.subr.mxu0 0.0
    %2620 = vmatpush1.xpose.msra.mxu0 0.0
    %2621 = vmatprep.subr.mxu0 0.0
    %2622 = vmatpush1.xpose.msra.mxu0 0.0
    %2623 = vmatprep.subr.mxu0 0.0
    %2624 = vmatpush1.xpose.msra.mxu0 0.0
    %2625 = vmatprep.subr.mxu0 0.0
    %2626 = vmatpush1.xpose.msra.mxu0 0.0
    %2627 = vmatprep.subr.mxu0 0.0
    %2628 = vmatpush1.xpose.msra.mxu0 0.0
    %2629 = vmatprep.subr.mxu0 0.0
    %2630 = vmatpush1.xpose.msra.mxu0 0.0
    %2631 = vmatprep.subr.mxu0 0.0
    %2632 = vmatpush1.xpose.msra.mxu0 0.0
    %2633 = vmatprep.subr.mxu0 0.0
    %2634 = vmatpush1.xpose.msra.mxu0 0.0
    %2635 = vmatprep.subr.mxu0 0.0
    %2636 = vmatpush1.xpose.msra.mxu0 0.0
    %2637 = vmatprep.subr.mxu0 0.0
    %2638 = vmatpush1.xpose.msra.mxu0 0.0
    %2639 = vmatprep.subr.mxu0 0.0
    %2640 = vmatpush1.xpose.msra.mxu0 0.0
    %2641 = vmatprep.subr.mxu0 0.0
    %2642 = vmatpush1.xpose.msra.mxu0 0.0
    %2643 = vmatprep.subr.mxu0 0.0
    %2644 = vmatpush1.xpose.msra.mxu0 0.0
    %2645 = vmatprep.subr.mxu0 0.0
    %2646 = vmatpush1.xpose.msra.mxu0 0.0
    %2647 = vmatprep.mubr.f32.mxu0 0.0
    %2648 = vmatmul.mubr.f32.gmra.mrb[0].mxu0 %v2579
    %v2649 = vpop.f32.mrb[0].mxu0
    %v2650 = vadd.f32 0.0, %v2649
    %v2651 = vpop.f32.mrb[0].mxu0
    %2652 = vdwg.mxu0
    %v2653 = vsel %vm241, %v2118, -inf
    %2654 = vmax.xlane.f32.xlu0 %v2653
    %v2655 = vpop.xlane.xlu0 %2654
    %v2656 = vsel %vm241, %v2194, -inf
    %2657 = vmax.xlane.f32.xlu0 %v2656
    %v2658 = vpop.xlane.xlu0 %2657
    %v2659 = vsel %vm241, %v2270, -inf
    %2660 = vmax.xlane.f32.xlu0 %v2659
    %v2661 = vpop.xlane.xlu0 %2660
    %v2662 = vsel %vm241, %v2346, -inf
    %2663 = vmax.xlane.f32.xlu0 %v2662
    %v2664 = vpop.xlane.xlu0 %2663
    %v2665 = vsel %vm241, %v2422, -inf
    %2666 = vmax.xlane.f32.xlu0 %v2665
    %v2667 = vpop.xlane.xlu0 %2666
    %v2668 = vsel %vm241, %v2498, -inf
    %2669 = vmax.xlane.f32.xlu0 %v2668
    %v2670 = vpop.xlane.xlu0 %2669
    %v2671 = vsel %vm241, %v2574, -inf
    %2672 = vmax.xlane.f32.xlu0 %v2671
    %v2673 = vpop.xlane.xlu0 %2672
    %v2674 = vsel %vm241, %v2650, -inf
    %2675 = vmax.xlane.f32.xlu0 %v2674
    %v2676 = vpop.xlane.xlu0 %2675
    %v2677 = vsub.f32 %v2118, %v2655
    %v2678 = vsub.f32 %v2194, %v2658
    %v2679 = vsub.f32 %v2270, %v2661
    %v2680 = vsub.f32 %v2346, %v2664
    %v2681 = vsub.f32 %v2422, %v2667
    %v2682 = vsub.f32 %v2498, %v2670
    %v2683 = vsub.f32 %v2574, %v2673
    %v2684 = vsub.f32 %v2650, %v2676
    %v2685 = vmul.f32 %v2677, 1.442695
    %v2686 = vpow.pop %v2685
    %v2687 = vmul.f32 %v2678, 1.442695
    %v2688 = vpow.pop %v2687
    %v2689 = vmul.f32 %v2679, 1.442695
    %v2690 = vpow.pop %v2689
    %v2691 = vmul.f32 %v2680, 1.442695
    %v2692 = vpow.pop %v2691
    %v2693 = vmul.f32 %v2681, 1.442695
    %v2694 = vpow.pop %v2693
    %v2695 = vmul.f32 %v2682, 1.442695
    %v2696 = vpow.pop %v2695
    %v2697 = vmul.f32 %v2683, 1.442695
    %v2698 = vpow.pop %v2697
    %v2699 = vmul.f32 %v2684, 1.442695
    %v2700 = vpow.pop %v2699
    %v2701 = vsel %vm241, %v2686, 0.0
    %2702 = vadd.xlane.f32.xlu0 %v2701
    %v2703 = vpop.xlane.xlu0 %2702
    %v2704 = vsel %vm241, %v2688, 0.0
    %2705 = vadd.xlane.f32.xlu0 %v2704
    %v2706 = vpop.xlane.xlu0 %2705
    %v2707 = vsel %vm241, %v2690, 0.0
    %2708 = vadd.xlane.f32.xlu0 %v2707
    %v2709 = vpop.xlane.xlu0 %2708
    %v2710 = vsel %vm241, %v2692, 0.0
    %2711 = vadd.xlane.f32.xlu0 %v2710
    %v2712 = vpop.xlane.xlu0 %2711
    %v2713 = vsel %vm241, %v2694, 0.0
    %2714 = vadd.xlane.f32.xlu0 %v2713
    %v2715 = vpop.xlane.xlu0 %2714
    %v2716 = vsel %vm241, %v2696, 0.0
    %2717 = vadd.xlane.f32.xlu0 %v2716
    %v2718 = vpop.xlane.xlu0 %2717
    %v2719 = vsel %vm241, %v2698, 0.0
    %2720 = vadd.xlane.f32.xlu0 %v2719
    %v2721 = vpop.xlane.xlu0 %2720
    %v2722 = vsel %vm241, %v2700, 0.0
    %2723 = vadd.xlane.f32.xlu0 %v2722
    %v2724 = vpop.xlane.xlu0 %2723
    %v2725 = vrcp.pop %v2703
    %v2726 = vrcp.pop %v2706
    %v2727 = vrcp.pop %v2709
    %v2728 = vrcp.pop %v2712
    %v2729 = vrcp.pop %v2715
    %v2730 = vrcp.pop %v2718
    %v2731 = vrcp.pop %v2721
    %v2732 = vrcp.pop %v2724
    %v2733 = vmul.f32 %v2686, %v2725
    %v2734 = vmul.f32 %v2688, %v2726
    %v2735 = vmul.f32 %v2690, %v2727
    %v2736 = vmul.f32 %v2692, %v2728
    %v2737 = vmul.f32 %v2694, %v2729
    %v2738 = vmul.f32 %v2696, %v2730
    %v2739 = vmul.f32 %v2698, %v2731
    %v2740 = vmul.f32 %v2700, %v2732
    %2741 = vrot.lane.b32.xlu0 %v2023, 64
    %v2742 = vpop.permute.xlu0 %2741
    %v2745 = vsel %vm241, %v2733, 0
    %2747 = vmatprep.subr.mxu0 0.0
    %2748 = vmatpush1.msra.mxu0 %v2742
    %2749 = vmatprep.subr.mxu0 0.0
    %2750 = vmatpush1.msra.mxu0 0.0
    %2751 = vmatprep.subr.mxu0 0.0
    %2752 = vmatpush1.msra.mxu0 0.0
    %2753 = vmatprep.subr.mxu0 0.0
    %2754 = vmatpush1.msra.mxu0 0.0
    %2755 = vmatprep.subr.mxu0 0.0
    %2756 = vmatpush1.msra.mxu0 0.0
    %2757 = vmatprep.subr.mxu0 0.0
    %2758 = vmatpush1.msra.mxu0 0.0
    %2759 = vmatprep.subr.mxu0 0.0
    %2760 = vmatpush1.msra.mxu0 0.0
    %2761 = vmatprep.subr.mxu0 0.0
    %2762 = vmatpush1.msra.mxu0 0.0
    %2763 = vmatprep.subr.mxu0 0.0
    %2764 = vmatpush1.msra.mxu0 0.0
    %2765 = vmatprep.subr.mxu0 0.0
    %2766 = vmatpush1.msra.mxu0 0.0
    %2767 = vmatprep.subr.mxu0 0.0
    %2768 = vmatpush1.msra.mxu0 0.0
    %2769 = vmatprep.subr.mxu0 0.0
    %2770 = vmatpush1.msra.mxu0 0.0
    %2771 = vmatprep.subr.mxu0 0.0
    %2772 = vmatpush1.msra.mxu0 0.0
    %2773 = vmatprep.subr.mxu0 0.0
    %2774 = vmatpush1.msra.mxu0 0.0
    %2775 = vmatprep.subr.mxu0 0.0
    %2776 = vmatpush1.msra.mxu0 0.0
    %2777 = vmatprep.subr.mxu0 0.0
    %2778 = vmatpush1.msra.mxu0 0.0
    %2779 = vmatprep.subr.mxu0 0.0
    %2780 = vmatpush1.msra.mxu0 0.0
    %2781 = vmatprep.subr.mxu0 0.0
    %2782 = vmatpush1.msra.mxu0 0.0
    %2783 = vmatprep.subr.mxu0 0.0
    %2784 = vmatpush1.msra.mxu0 0.0
    %2785 = vmatprep.subr.mxu0 0.0
    %2786 = vmatpush1.msra.mxu0 0.0
    %2787 = vmatprep.subr.mxu0 0.0
    %2788 = vmatpush1.msra.mxu0 0.0
    %2789 = vmatprep.subr.mxu0 0.0
    %2790 = vmatpush1.msra.mxu0 0.0
    %2791 = vmatprep.subr.mxu0 0.0
    %2792 = vmatpush1.msra.mxu0 0.0
    %2793 = vmatprep.subr.mxu0 0.0
    %2794 = vmatpush1.msra.mxu0 0.0
    %2795 = vmatprep.subr.mxu0 0.0
    %2796 = vmatpush1.msra.mxu0 0.0
    %2797 = vmatprep.subr.mxu0 0.0
    %2798 = vmatpush1.msra.mxu0 0.0
    %2799 = vmatprep.subr.mxu0 0.0
    %2800 = vmatpush1.msra.mxu0 0.0
    %2801 = vmatprep.subr.mxu0 0.0
    %2802 = vmatpush1.msra.mxu0 0.0
    %2803 = vmatprep.subr.mxu0 0.0
    %2804 = vmatpush1.msra.mxu0 0.0
    %2805 = vmatprep.subr.mxu0 0.0
    %2806 = vmatpush1.msra.mxu0 0.0
    %2807 = vmatprep.subr.mxu0 0.0
    %2808 = vmatpush1.msra.mxu0 0.0
    %2809 = vmatprep.subr.mxu0 0.0
    %2810 = vmatpush1.msra.mxu0 0.0
    %2811 = vmatprep.mubr.f32.mxu0 0.0
    %2812 = vmatmul.mubr.f32.gmra.mrb[0].mxu0 %v2745
    %v2813 = vpop.f32.mrb[0].mxu0
    %v2814 = vadd.f32 0.0, %v2813
    %v2815 = vpop.f32.mrb[0].mxu0
    %2816 = vdwg.mxu0
    %2817 = vrot.lane.b32.xlu0 %v2028, 64
    %v2818 = vpop.permute.xlu0 %2817
    %v2821 = vsel %vm241, %v2734, 0
    %2823 = vmatprep.subr.mxu0 0.0
    %2824 = vmatpush1.msra.mxu0 %v2818
    %2825 = vmatprep.subr.mxu0 0.0
    %2826 = vmatpush1.msra.mxu0 0.0
    %2827 = vmatprep.subr.mxu0 0.0
    %2828 = vmatpush1.msra.mxu0 0.0
    %2829 = vmatprep.subr.mxu0 0.0
    %2830 = vmatpush1.msra.mxu0 0.0
    %2831 = vmatprep.subr.mxu0 0.0
    %2832 = vmatpush1.msra.mxu0 0.0
    %2833 = vmatprep.subr.mxu0 0.0
    %2834 = vmatpush1.msra.mxu0 0.0
    %2835 = vmatprep.subr.mxu0 0.0
    %2836 = vmatpush1.msra.mxu0 0.0
    %2837 = vmatprep.subr.mxu0 0.0
    %2838 = vmatpush1.msra.mxu0 0.0
    %2839 = vmatprep.subr.mxu0 0.0
    %2840 = vmatpush1.msra.mxu0 0.0
    %2841 = vmatprep.subr.mxu0 0.0
    %2842 = vmatpush1.msra.mxu0 0.0
    %2843 = vmatprep.subr.mxu0 0.0
    %2844 = vmatpush1.msra.mxu0 0.0
    %2845 = vmatprep.subr.mxu0 0.0
    %2846 = vmatpush1.msra.mxu0 0.0
    %2847 = vmatprep.subr.mxu0 0.0
    %2848 = vmatpush1.msra.mxu0 0.0
    %2849 = vmatprep.subr.mxu0 0.0
    %2850 = vmatpush1.msra.mxu0 0.0
    %2851 = vmatprep.subr.mxu0 0.0
    %2852 = vmatpush1.msra.mxu0 0.0
    %2853 = vmatprep.subr.mxu0 0.0
    %2854 = vmatpush1.msra.mxu0 0.0
    %2855 = vmatprep.subr.mxu0 0.0
    %2856 = vmatpush1.msra.mxu0 0.0
    %2857 = vmatprep.subr.mxu0 0.0
    %2858 = vmatpush1.msra.mxu0 0.0
    %2859 = vmatprep.subr.mxu0 0.0
    %2860 = vmatpush1.msra.mxu0 0.0
    %2861 = vmatprep.subr.mxu0 0.0
    %2862 = vmatpush1.msra.mxu0 0.0
    %2863 = vmatprep.subr.mxu0 0.0
    %2864 = vmatpush1.msra.mxu0 0.0
    %2865 = vmatprep.subr.mxu0 0.0
    %2866 = vmatpush1.msra.mxu0 0.0
    %2867 = vmatprep.subr.mxu0 0.0
    %2868 = vmatpush1.msra.mxu0 0.0
    %2869 = vmatprep.subr.mxu0 0.0
    %2870 = vmatpush1.msra.mxu0 0.0
    %2871 = vmatprep.subr.mxu0 0.0
    %2872 = vmatpush1.msra.mxu0 0.0
    %2873 = vmatprep.subr.mxu0 0.0
    %2874 = vmatpush1.msra.mxu0 0.0
    %2875 = vmatprep.subr.mxu0 0.0
    %2876 = vmatpush1.msra.mxu0 0.0
    %2877 = vmatprep.subr.mxu0 0.0
    %2878 = vmatpush1.msra.mxu0 0.0
    %2879 = vmatprep.subr.mxu0 0.0
    %2880 = vmatpush1.msra.mxu0 0.0
    %2881 = vmatprep.subr.mxu0 0.0
    %2882 = vmatpush1.msra.mxu0 0.0
    %2883 = vmatprep.subr.mxu0 0.0
    %2884 = vmatpush1.msra.mxu0 0.0
    %2885 = vmatprep.subr.mxu0 0.0
    %2886 = vmatpush1.msra.mxu0 0.0
    %2887 = vmatprep.mubr.f32.mxu0 0.0
    %2888 = vmatmul.mubr.f32.gmra.mrb[0].mxu0 %v2821
    %v2889 = vpop.f32.mrb[0].mxu0
    %v2890 = vadd.f32 0.0, %v2889
    %v2891 = vpop.f32.mrb[0].mxu0
    %2892 = vdwg.mxu0
    %2893 = vrot.lane.b32.xlu0 %v2034, 64
    %v2894 = vpop.permute.xlu0 %2893
    %v2897 = vsel %vm241, %v2735, 0
    %2899 = vmatprep.subr.mxu0 0.0
    %2900 = vmatpush1.msra.mxu0 %v2894
    %2901 = vmatprep.subr.mxu0 0.0
    %2902 = vmatpush1.msra.mxu0 0.0
    %2903 = vmatprep.subr.mxu0 0.0
    %2904 = vmatpush1.msra.mxu0 0.0
    %2905 = vmatprep.subr.mxu0 0.0
    %2906 = vmatpush1.msra.mxu0 0.0
    %2907 = vmatprep.subr.mxu0 0.0
    %2908 = vmatpush1.msra.mxu0 0.0
    %2909 = vmatprep.subr.mxu0 0.0
    %2910 = vmatpush1.msra.mxu0 0.0
    %2911 = vmatprep.subr.mxu0 0.0
    %2912 = vmatpush1.msra.mxu0 0.0
    %2913 = vmatprep.subr.mxu0 0.0
    %2914 = vmatpush1.msra.mxu0 0.0
    %2915 = vmatprep.subr.mxu0 0.0
    %2916 = vmatpush1.msra.mxu0 0.0
    %2917 = vmatprep.subr.mxu0 0.0
    %2918 = vmatpush1.msra.mxu0 0.0
    %2919 = vmatprep.subr.mxu0 0.0
    %2920 = vmatpush1.msra.mxu0 0.0
    %2921 = vmatprep.subr.mxu0 0.0
    %2922 = vmatpush1.msra.mxu0 0.0
    %2923 = vmatprep.subr.mxu0 0.0
    %2924 = vmatpush1.msra.mxu0 0.0
    %2925 = vmatprep.subr.mxu0 0.0
    %2926 = vmatpush1.msra.mxu0 0.0
    %2927 = vmatprep.subr.mxu0 0.0
    %2928 = vmatpush1.msra.mxu0 0.0
    %2929 = vmatprep.subr.mxu0 0.0
    %2930 = vmatpush1.msra.mxu0 0.0
    %2931 = vmatprep.subr.mxu0 0.0
    %2932 = vmatpush1.msra.mxu0 0.0
    %2933 = vmatprep.subr.mxu0 0.0
    %2934 = vmatpush1.msra.mxu0 0.0
    %2935 = vmatprep.subr.mxu0 0.0
    %2936 = vmatpush1.msra.mxu0 0.0
    %2937 = vmatprep.subr.mxu0 0.0
    %2938 = vmatpush1.msra.mxu0 0.0
    %2939 = vmatprep.subr.mxu0 0.0
    %2940 = vmatpush1.msra.mxu0 0.0
    %2941 = vmatprep.subr.mxu0 0.0
    %2942 = vmatpush1.msra.mxu0 0.0
    %2943 = vmatprep.subr.mxu0 0.0
    %2944 = vmatpush1.msra.mxu0 0.0
    %2945 = vmatprep.subr.mxu0 0.0
    %2946 = vmatpush1.msra.mxu0 0.0
    %2947 = vmatprep.subr.mxu0 0.0
    %2948 = vmatpush1.msra.mxu0 0.0
    %2949 = vmatprep.subr.mxu0 0.0
    %2950 = vmatpush1.msra.mxu0 0.0
    %2951 = vmatprep.subr.mxu0 0.0
    %2952 = vmatpush1.msra.mxu0 0.0
    %2953 = vmatprep.subr.mxu0 0.0
    %2954 = vmatpush1.msra.mxu0 0.0
    %2955 = vmatprep.subr.mxu0 0.0
    %2956 = vmatpush1.msra.mxu0 0.0
    %2957 = vmatprep.subr.mxu0 0.0
    %2958 = vmatpush1.msra.mxu0 0.0
    %2959 = vmatprep.subr.mxu0 0.0
    %2960 = vmatpush1.msra.mxu0 0.0
    %2961 = vmatprep.subr.mxu0 0.0
    %2962 = vmatpush1.msra.mxu0 0.0
    %2963 = vmatprep.mubr.f32.mxu0 0.0
    %2964 = vmatmul.mubr.f32.gmra.mrb[0].mxu0 %v2897
    %v2965 = vpop.f32.mrb[0].mxu0
    %v2966 = vadd.f32 0.0, %v2965
    %v2967 = vpop.f32.mrb[0].mxu0
    %2968 = vdwg.mxu0
    %2969 = vrot.lane.b32.xlu0 %v2036, 64
    %v2970 = vpop.permute.xlu0 %2969
    %v2973 = vsel %vm241, %v2736, 0
    %2975 = vmatprep.subr.mxu0 0.0
    %2976 = vmatpush1.msra.mxu0 %v2970
    %2977 = vmatprep.subr.mxu0 0.0
    %2978 = vmatpush1.msra.mxu0 0.0
    %2979 = vmatprep.subr.mxu0 0.0
    %2980 = vmatpush1.msra.mxu0 0.0
    %2981 = vmatprep.subr.mxu0 0.0
    %2982 = vmatpush1.msra.mxu0 0.0
    %2983 = vmatprep.subr.mxu0 0.0
    %2984 = vmatpush1.msra.mxu0 0.0
    %2985 = vmatprep.subr.mxu0 0.0
    %2986 = vmatpush1.msra.mxu0 0.0
    %2987 = vmatprep.subr.mxu0 0.0
    %2988 = vmatpush1.msra.mxu0 0.0
    %2989 = vmatprep.subr.mxu0 0.0
    %2990 = vmatpush1.msra.mxu0 0.0
    %2991 = vmatprep.subr.mxu0 0.0
    %2992 = vmatpush1.msra.mxu0 0.0
    %2993 = vmatprep.subr.mxu0 0.0
    %2994 = vmatpush1.msra.mxu0 0.0
    %2995 = vmatprep.subr.mxu0 0.0
    %2996 = vmatpush1.msra.mxu0 0.0
    %2997 = vmatprep.subr.mxu0 0.0
    %2998 = vmatpush1.msra.mxu0 0.0
    %2999 = vmatprep.subr.mxu0 0.0
    %3000 = vmatpush1.msra.mxu0 0.0
    %3001 = vmatprep.subr.mxu0 0.0
    %3002 = vmatpush1.msra.mxu0 0.0
    %3003 = vmatprep.subr.mxu0 0.0
    %3004 = vmatpush1.msra.mxu0 0.0
    %3005 = vmatprep.subr.mxu0 0.0
    %3006 = vmatpush1.msra.mxu0 0.0
    %3007 = vmatprep.subr.mxu0 0.0
    %3008 = vmatpush1.msra.mxu0 0.0
    %3009 = vmatprep.subr.mxu0 0.0
    %3010 = vmatpush1.msra.mxu0 0.0
    %3011 = vmatprep.subr.mxu0 0.0
    %3012 = vmatpush1.msra.mxu0 0.0
    %3013 = vmatprep.subr.mxu0 0.0
    %3014 = vmatpush1.msra.mxu0 0.0
    %3015 = vmatprep.subr.mxu0 0.0
    %3016 = vmatpush1.msra.mxu0 0.0
    %3017 = vmatprep.subr.mxu0 0.0
    %3018 = vmatpush1.msra.mxu0 0.0
    %3019 = vmatprep.subr.mxu0 0.0
    %3020 = vmatpush1.msra.mxu0 0.0
    %3021 = vmatprep.subr.mxu0 0.0
    %3022 = vmatpush1.msra.mxu0 0.0
    %3023 = vmatprep.subr.mxu0 0.0
    %3024 = vmatpush1.msra.mxu0 0.0
    %3025 = vmatprep.subr.mxu0 0.0
    %3026 = vmatpush1.msra.mxu0 0.0
    %3027 = vmatprep.subr.mxu0 0.0
    %3028 = vmatpush1.msra.mxu0 0.0
    %3029 = vmatprep.subr.mxu0 0.0
    %3030 = vmatpush1.msra.mxu0 0.0
    %3031 = vmatprep.subr.mxu0 0.0
    %3032 = vmatpush1.msra.mxu0 0.0
    %3033 = vmatprep.subr.mxu0 0.0
    %3034 = vmatpush1.msra.mxu0 0.0
    %3035 = vmatprep.subr.mxu0 0.0
    %3036 = vmatpush1.msra.mxu0 0.0
    %3037 = vmatprep.subr.mxu0 0.0
    %3038 = vmatpush1.msra.mxu0 0.0
    %3039 = vmatprep.mubr.f32.mxu0 0.0
    %3040 = vmatmul.mubr.f32.gmra.mrb[0].mxu0 %v2973
    %v3041 = vpop.f32.mrb[0].mxu0
    %v3042 = vadd.f32 0.0, %v3041
    %v3043 = vpop.f32.mrb[0].mxu0
    %3044 = vdwg.mxu0
    %3045 = vrot.lane.b32.xlu0 %v2038, 64
    %v3046 = vpop.permute.xlu0 %3045
    %v3049 = vsel %vm241, %v2737, 0
    %3051 = vmatprep.subr.mxu0 0.0
    %3052 = vmatpush1.msra.mxu0 %v3046
    %3053 = vmatprep.subr.mxu0 0.0
    %3054 = vmatpush1.msra.mxu0 0.0
    %3055 = vmatprep.subr.mxu0 0.0
    %3056 = vmatpush1.msra.mxu0 0.0
    %3057 = vmatprep.subr.mxu0 0.0
    %3058 = vmatpush1.msra.mxu0 0.0
    %3059 = vmatprep.subr.mxu0 0.0
    %3060 = vmatpush1.msra.mxu0 0.0
    %3061 = vmatprep.subr.mxu0 0.0
    %3062 = vmatpush1.msra.mxu0 0.0
    %3063 = vmatprep.subr.mxu0 0.0
    %3064 = vmatpush1.msra.mxu0 0.0
    %3065 = vmatprep.subr.mxu0 0.0
    %3066 = vmatpush1.msra.mxu0 0.0
    %3067 = vmatprep.subr.mxu0 0.0
    %3068 = vmatpush1.msra.mxu0 0.0
    %3069 = vmatprep.subr.mxu0 0.0
    %3070 = vmatpush1.msra.mxu0 0.0
    %3071 = vmatprep.subr.mxu0 0.0
    %3072 = vmatpush1.msra.mxu0 0.0
    %3073 = vmatprep.subr.mxu0 0.0
    %3074 = vmatpush1.msra.mxu0 0.0
    %3075 = vmatprep.subr.mxu0 0.0
    %3076 = vmatpush1.msra.mxu0 0.0
    %3077 = vmatprep.subr.mxu0 0.0
    %3078 = vmatpush1.msra.mxu0 0.0
    %3079 = vmatprep.subr.mxu0 0.0
    %3080 = vmatpush1.msra.mxu0 0.0
    %3081 = vmatprep.subr.mxu0 0.0
    %3082 = vmatpush1.msra.mxu0 0.0
    %3083 = vmatprep.subr.mxu0 0.0
    %3084 = vmatpush1.msra.mxu0 0.0
    %3085 = vmatprep.subr.mxu0 0.0
    %3086 = vmatpush1.msra.mxu0 0.0
    %3087 = vmatprep.subr.mxu0 0.0
    %3088 = vmatpush1.msra.mxu0 0.0
    %3089 = vmatprep.subr.mxu0 0.0
    %3090 = vmatpush1.msra.mxu0 0.0
    %3091 = vmatprep.subr.mxu0 0.0
    %3092 = vmatpush1.msra.mxu0 0.0
    %3093 = vmatprep.subr.mxu0 0.0
    %3094 = vmatpush1.msra.mxu0 0.0
    %3095 = vmatprep.subr.mxu0 0.0
    %3096 = vmatpush1.msra.mxu0 0.0
    %3097 = vmatprep.subr.mxu0 0.0
    %3098 = vmatpush1.msra.mxu0 0.0
    %3099 = vmatprep.subr.mxu0 0.0
    %3100 = vmatpush1.msra.mxu0 0.0
    %3101 = vmatprep.subr.mxu0 0.0
    %3102 = vmatpush1.msra.mxu0 0.0
    %3103 = vmatprep.subr.mxu0 0.0
    %3104 = vmatpush1.msra.mxu0 0.0
    %3105 = vmatprep.subr.mxu0 0.0
    %3106 = vmatpush1.msra.mxu0 0.0
    %3107 = vmatprep.subr.mxu0 0.0
    %3108 = vmatpush1.msra.mxu0 0.0
    %3109 = vmatprep.subr.mxu0 0.0
    %3110 = vmatpush1.msra.mxu0 0.0
    %3111 = vmatprep.subr.mxu0 0.0
    %3112 = vmatpush1.msra.mxu0 0.0
    %3113 = vmatprep.subr.mxu0 0.0
    %3114 = vmatpush1.msra.mxu0 0.0
    %3115 = vmatprep.mubr.f32.mxu0 0.0
    %3116 = vmatmul.mubr.f32.gmra.mrb[0].mxu0 %v3049
    %v3117 = vpop.f32.mrb[0].mxu0
    %v3118 = vadd.f32 0.0, %v3117
    %v3119 = vpop.f32.mrb[0].mxu0
    %3120 = vdwg.mxu0
    %3121 = vrot.lane.b32.xlu0 %v2040, 64
    %v3122 = vpop.permute.xlu0 %3121
    %v3125 = vsel %vm241, %v2738, 0
    %3127 = vmatprep.subr.mxu0 0.0
    %3128 = vmatpush1.msra.mxu0 %v3122
    %3129 = vmatprep.subr.mxu0 0.0
    %3130 = vmatpush1.msra.mxu0 0.0
    %3131 = vmatprep.subr.mxu0 0.0
    %3132 = vmatpush1.msra.mxu0 0.0
    %3133 = vmatprep.subr.mxu0 0.0
    %3134 = vmatpush1.msra.mxu0 0.0
    %3135 = vmatprep.subr.mxu0 0.0
    %3136 = vmatpush1.msra.mxu0 0.0
    %3137 = vmatprep.subr.mxu0 0.0
    %3138 = vmatpush1.msra.mxu0 0.0
    %3139 = vmatprep.subr.mxu0 0.0
    %3140 = vmatpush1.msra.mxu0 0.0
    %3141 = vmatprep.subr.mxu0 0.0
    %3142 = vmatpush1.msra.mxu0 0.0
    %3143 = vmatprep.subr.mxu0 0.0
    %3144 = vmatpush1.msra.mxu0 0.0
    %3145 = vmatprep.subr.mxu0 0.0
    %3146 = vmatpush1.msra.mxu0 0.0
    %3147 = vmatprep.subr.mxu0 0.0
    %3148 = vmatpush1.msra.mxu0 0.0
    %3149 = vmatprep.subr.mxu0 0.0
    %3150 = vmatpush1.msra.mxu0 0.0
    %3151 = vmatprep.subr.mxu0 0.0
    %3152 = vmatpush1.msra.mxu0 0.0
    %3153 = vmatprep.subr.mxu0 0.0
    %3154 = vmatpush1.msra.mxu0 0.0
    %3155 = vmatprep.subr.mxu0 0.0
    %3156 = vmatpush1.msra.mxu0 0.0
    %3157 = vmatprep.subr.mxu0 0.0
    %3158 = vmatpush1.msra.mxu0 0.0
    %3159 = vmatprep.subr.mxu0 0.0
    %3160 = vmatpush1.msra.mxu0 0.0
    %3161 = vmatprep.subr.mxu0 0.0
    %3162 = vmatpush1.msra.mxu0 0.0
    %3163 = vmatprep.subr.mxu0 0.0
    %3164 = vmatpush1.msra.mxu0 0.0
    %3165 = vmatprep.subr.mxu0 0.0
    %3166 = vmatpush1.msra.mxu0 0.0
    %3167 = vmatprep.subr.mxu0 0.0
    %3168 = vmatpush1.msra.mxu0 0.0
    %3169 = vmatprep.subr.mxu0 0.0
    %3170 = vmatpush1.msra.mxu0 0.0
    %3171 = vmatprep.subr.mxu0 0.0
    %3172 = vmatpush1.msra.mxu0 0.0
    %3173 = vmatprep.subr.mxu0 0.0
    %3174 = vmatpush1.msra.mxu0 0.0
    %3175 = vmatprep.subr.mxu0 0.0
    %3176 = vmatpush1.msra.mxu0 0.0
    %3177 = vmatprep.subr.mxu0 0.0
    %3178 = vmatpush1.msra.mxu0 0.0
    %3179 = vmatprep.subr.mxu0 0.0
    %3180 = vmatpush1.msra.mxu0 0.0
    %3181 = vmatprep.subr.mxu0 0.0
    %3182 = vmatpush1.msra.mxu0 0.0
    %3183 = vmatprep.subr.mxu0 0.0
    %3184 = vmatpush1.msra.mxu0 0.0
    %3185 = vmatprep.subr.mxu0 0.0
    %3186 = vmatpush1.msra.mxu0 0.0
    %3187 = vmatprep.subr.mxu0 0.0
    %3188 = vmatpush1.msra.mxu0 0.0
    %3189 = vmatprep.subr.mxu0 0.0
    %3190 = vmatpush1.msra.mxu0 0.0
    %3191 = vmatprep.mubr.f32.mxu0 0.0
    %3192 = vmatmul.mubr.f32.gmra.mrb[0].mxu0 %v3125
    %v3193 = vpop.f32.mrb[0].mxu0
    %v3194 = vadd.f32 0.0, %v3193
    %v3195 = vpop.f32.mrb[0].mxu0
    %3196 = vdwg.mxu0
    %3197 = vrot.lane.b32.xlu0 %v2042, 64
    %v3198 = vpop.permute.xlu0 %3197
    %v3201 = vsel %vm241, %v2739, 0
    %3203 = vmatprep.subr.mxu0 0.0
    %3204 = vmatpush1.msra.mxu0 %v3198
    %3205 = vmatprep.subr.mxu0 0.0
    %3206 = vmatpush1.msra.mxu0 0.0
    %3207 = vmatprep.subr.mxu0 0.0
    %3208 = vmatpush1.msra.mxu0 0.0
    %3209 = vmatprep.subr.mxu0 0.0
    %3210 = vmatpush1.msra.mxu0 0.0
    %3211 = vmatprep.subr.mxu0 0.0
    %3212 = vmatpush1.msra.mxu0 0.0
    %3213 = vmatprep.subr.mxu0 0.0
    %3214 = vmatpush1.msra.mxu0 0.0
    %3215 = vmatprep.subr.mxu0 0.0
    %3216 = vmatpush1.msra.mxu0 0.0
    %3217 = vmatprep.subr.mxu0 0.0
    %3218 = vmatpush1.msra.mxu0 0.0
    %3219 = vmatprep.subr.mxu0 0.0
    %3220 = vmatpush1.msra.mxu0 0.0
    %3221 = vmatprep.subr.mxu0 0.0
    %3222 = vmatpush1.msra.mxu0 0.0
    %3223 = vmatprep.subr.mxu0 0.0
    %3224 = vmatpush1.msra.mxu0 0.0
    %3225 = vmatprep.subr.mxu0 0.0
    %3226 = vmatpush1.msra.mxu0 0.0
    %3227 = vmatprep.subr.mxu0 0.0
    %3228 = vmatpush1.msra.mxu0 0.0
    %3229 = vmatprep.subr.mxu0 0.0
    %3230 = vmatpush1.msra.mxu0 0.0
    %3231 = vmatprep.subr.mxu0 0.0
    %3232 = vmatpush1.msra.mxu0 0.0
    %3233 = vmatprep.subr.mxu0 0.0
    %3234 = vmatpush1.msra.mxu0 0.0
    %3235 = vmatprep.subr.mxu0 0.0
    %3236 = vmatpush1.msra.mxu0 0.0
    %3237 = vmatprep.subr.mxu0 0.0
    %3238 = vmatpush1.msra.mxu0 0.0
    %3239 = vmatprep.subr.mxu0 0.0
    %3240 = vmatpush1.msra.mxu0 0.0
    %3241 = vmatprep.subr.mxu0 0.0
    %3242 = vmatpush1.msra.mxu0 0.0
    %3243 = vmatprep.subr.mxu0 0.0
    %3244 = vmatpush1.msra.mxu0 0.0
    %3245 = vmatprep.subr.mxu0 0.0
    %3246 = vmatpush1.msra.mxu0 0.0
    %3247 = vmatprep.subr.mxu0 0.0
    %3248 = vmatpush1.msra.mxu0 0.0
    %3249 = vmatprep.subr.mxu0 0.0
    %3250 = vmatpush1.msra.mxu0 0.0
    %3251 = vmatprep.subr.mxu0 0.0
    %3252 = vmatpush1.msra.mxu0 0.0
    %3253 = vmatprep.subr.mxu0 0.0
    %3254 = vmatpush1.msra.mxu0 0.0
    %3255 = vmatprep.subr.mxu0 0.0
    %3256 = vmatpush1.msra.mxu0 0.0
    %3257 = vmatprep.subr.mxu0 0.0
    %3258 = vmatpush1.msra.mxu0 0.0
    %3259 = vmatprep.subr.mxu0 0.0
    %3260 = vmatpush1.msra.mxu0 0.0
    %3261 = vmatprep.subr.mxu0 0.0
    %3262 = vmatpush1.msra.mxu0 0.0
    %3263 = vmatprep.subr.mxu0 0.0
    %3264 = vmatpush1.msra.mxu0 0.0
    %3265 = vmatprep.subr.mxu0 0.0
    %3266 = vmatpush1.msra.mxu0 0.0
    %3267 = vmatprep.mubr.f32.mxu0 0.0
    %3268 = vmatmul.mubr.f32.gmra.mrb[0].mxu0 %v3201
    %v3269 = vpop.f32.mrb[0].mxu0
    %v3270 = vadd.f32 0.0, %v3269
    %v3271 = vpop.f32.mrb[0].mxu0
    %3272 = vdwg.mxu0
    %3273 = vrot.lane.b32.xlu0 %v2044, 64
    %v3274 = vpop.permute.xlu0 %3273
    %v3277 = vsel %vm241, %v2740, 0
    %3279 = vmatprep.subr.mxu0 0.0
    %3280 = vmatpush1.msra.mxu0 %v3274
    %3281 = vmatprep.subr.mxu0 0.0
    %3282 = vmatpush1.msra.mxu0 0.0
    %3283 = vmatprep.subr.mxu0 0.0
    %3284 = vmatpush1.msra.mxu0 0.0
    %3285 = vmatprep.subr.mxu0 0.0
    %3286 = vmatpush1.msra.mxu0 0.0
    %3287 = vmatprep.subr.mxu0 0.0
    %3288 = vmatpush1.msra.mxu0 0.0
    %3289 = vmatprep.subr.mxu0 0.0
    %3290 = vmatpush1.msra.mxu0 0.0
    %3291 = vmatprep.subr.mxu0 0.0
    %3292 = vmatpush1.msra.mxu0 0.0
    %3293 = vmatprep.subr.mxu0 0.0
    %3294 = vmatpush1.msra.mxu0 0.0
    %3295 = vmatprep.subr.mxu0 0.0
    %3296 = vmatpush1.msra.mxu0 0.0
    %3297 = vmatprep.subr.mxu0 0.0
    %3298 = vmatpush1.msra.mxu0 0.0
    %3299 = vmatprep.subr.mxu0 0.0
    %3300 = vmatpush1.msra.mxu0 0.0
    %3301 = vmatprep.subr.mxu0 0.0
    %3302 = vmatpush1.msra.mxu0 0.0
    %3303 = vmatprep.subr.mxu0 0.0
    %3304 = vmatpush1.msra.mxu0 0.0
    %3305 = vmatprep.subr.mxu0 0.0
    %3306 = vmatpush1.msra.mxu0 0.0
    %3307 = vmatprep.subr.mxu0 0.0
    %3308 = vmatpush1.msra.mxu0 0.0
    %3309 = vmatprep.subr.mxu0 0.0
    %3310 = vmatpush1.msra.mxu0 0.0
    %3311 = vmatprep.subr.mxu0 0.0
    %3312 = vmatpush1.msra.mxu0 0.0
    %3313 = vmatprep.subr.mxu0 0.0
    %3314 = vmatpush1.msra.mxu0 0.0
    %3315 = vmatprep.subr.mxu0 0.0
    %3316 = vmatpush1.msra.mxu0 0.0
    %3317 = vmatprep.subr.mxu0 0.0
    %3318 = vmatpush1.msra.mxu0 0.0
    %3319 = vmatprep.subr.mxu0 0.0
    %3320 = vmatpush1.msra.mxu0 0.0
    %3321 = vmatprep.subr.mxu0 0.0
    %3322 = vmatpush1.msra.mxu0 0.0
    %3323 = vmatprep.subr.mxu0 0.0
    %3324 = vmatpush1.msra.mxu0 0.0
    %3325 = vmatprep.subr.mxu0 0.0
    %3326 = vmatpush1.msra.mxu0 0.0
    %3327 = vmatprep.subr.mxu0 0.0
    %3328 = vmatpush1.msra.mxu0 0.0
    %3329 = vmatprep.subr.mxu0 0.0
    %3330 = vmatpush1.msra.mxu0 0.0
    %3331 = vmatprep.subr.mxu0 0.0
    %3332 = vmatpush1.msra.mxu0 0.0
    %3333 = vmatprep.subr.mxu0 0.0
    %3334 = vmatpush1.msra.mxu0 0.0
    %3335 = vmatprep.subr.mxu0 0.0
    %3336 = vmatpush1.msra.mxu0 0.0
    %3337 = vmatprep.subr.mxu0 0.0
    %3338 = vmatpush1.msra.mxu0 0.0
    %3339 = vmatprep.subr.mxu0 0.0
    %3340 = vmatpush1.msra.mxu0 0.0
    %3341 = vmatprep.subr.mxu0 0.0
    %3342 = vmatpush1.msra.mxu0 0.0
    %3343 = vmatprep.mubr.f32.mxu0 0.0
    %3344 = vmatmul.mubr.f32.gmra.mrb[0].mxu0 %v3277
    %v3345 = vpop.f32.mrb[0].mxu0
    %v3346 = vadd.f32 0.0, %v3345
    %v3347 = vpop.f32.mrb[0].mxu0
    %3348 = vdwg.mxu0
    %3351 = vrot.lane.b32.xlu0 %v2966, 8
    %v3352 = vpop.permute.xlu0 %3351
    %3353 = vrot.lane.b32.xlu0 %v3042, 8
    %v3354 = vpop.permute.xlu0 %3353
    %3359 = vrot.lane.b32.xlu0 %v3118, 16
    %v3360 = vpop.permute.xlu0 %3359
    %3361 = vrot.lane.b32.xlu0 %v3194, 16
    %v3362 = vpop.permute.xlu0 %3361
    %3367 = vrot.lane.b32.xlu0 %v3270, 24
    %v3368 = vpop.permute.xlu0 %3367
    %3369 = vrot.lane.b32.xlu0 %v3346, 24
    %v3370 = vpop.permute.xlu0 %3369
    %v3373 = vsel %vm241, %v2814, %v3352
    %v3374 = vsel %vm241, %v2890, %v3354
    %v3375 = vsel %vm1570, %v3373, %v3360
    %v3376 = vsel %vm1570, %v3374, %v3362
    %v3377 = vsel %vm1573, %v3375, %v3368
    %v3378 = vsel %vm1573, %v3376, %v3370
    %v3379 = vlaneseq
    %v3380 = vshrl.u32 %v3379, 7
    %v3381 = vsub.s32 0, %v3380
    %v3382 = vrot.slane %v1939, %v3381
    %v3384 = vsel %vm143, %v3377, 0
    %v3387 = vsel %vm143, %v3378, 0
    %3389 = vmatprep.subr.mxu0 0.0
    %3390 = vmatpush1.msra.mxu0 %v1914
    %3391 = vmatprep.subr.mxu0 0.0
    %3392 = vmatpush1.msra.mxu0 %v1915
    %3393 = vmatprep.subr.mxu0 0.0
    %3394 = vmatpush1.msra.mxu0 %v1916
    %3395 = vmatprep.subr.mxu0 0.0
    %3396 = vmatpush1.msra.mxu0 %v1917
    %3397 = vmatprep.subr.mxu0 0.0
    %3398 = vmatpush1.msra.mxu0 0.0
    %3399 = vmatprep.subr.mxu0 0.0
    %3400 = vmatpush1.msra.mxu0 0.0
    %3401 = vmatprep.subr.mxu0 0.0
    %3402 = vmatpush1.msra.mxu0 0.0
    %3403 = vmatprep.subr.mxu0 0.0
    %3404 = vmatpush1.msra.mxu0 0.0
    %3405 = vmatprep.subr.mxu0 0.0
    %3406 = vmatpush1.msra.mxu0 0.0
    %3407 = vmatprep.subr.mxu0 0.0
    %3408 = vmatpush1.msra.mxu0 0.0
    %3409 = vmatprep.subr.mxu0 0.0
    %3410 = vmatpush1.msra.mxu0 0.0
    %3411 = vmatprep.subr.mxu0 0.0
    %3412 = vmatpush1.msra.mxu0 0.0
    %3413 = vmatprep.subr.mxu0 0.0
    %3414 = vmatpush1.msra.mxu0 0.0
    %3415 = vmatprep.subr.mxu0 0.0
    %3416 = vmatpush1.msra.mxu0 0.0
    %3417 = vmatprep.subr.mxu0 0.0
    %3418 = vmatpush1.msra.mxu0 0.0
    %3419 = vmatprep.subr.mxu0 0.0
    %3420 = vmatpush1.msra.mxu0 0.0
    %3421 = vmatprep.subr.mxu0 0.0
    %3422 = vmatpush1.msra.mxu0 0.0
    %3423 = vmatprep.subr.mxu0 0.0
    %3424 = vmatpush1.msra.mxu0 0.0
    %3425 = vmatprep.subr.mxu0 0.0
    %3426 = vmatpush1.msra.mxu0 0.0
    %3427 = vmatprep.subr.mxu0 0.0
    %3428 = vmatpush1.msra.mxu0 0.0
    %3429 = vmatprep.subr.mxu0 0.0
    %3430 = vmatpush1.msra.mxu0 0.0
    %3431 = vmatprep.subr.mxu0 0.0
    %3432 = vmatpush1.msra.mxu0 0.0
    %3433 = vmatprep.subr.mxu0 0.0
    %3434 = vmatpush1.msra.mxu0 0.0
    %3435 = vmatprep.subr.mxu0 0.0
    %3436 = vmatpush1.msra.mxu0 0.0
    %3437 = vmatprep.subr.mxu0 0.0
    %3438 = vmatpush1.msra.mxu0 0.0
    %3439 = vmatprep.subr.mxu0 0.0
    %3440 = vmatpush1.msra.mxu0 0.0
    %3441 = vmatprep.subr.mxu0 0.0
    %3442 = vmatpush1.msra.mxu0 0.0
    %3443 = vmatprep.subr.mxu0 0.0
    %3444 = vmatpush1.msra.mxu0 0.0
    %3445 = vmatprep.subr.mxu0 0.0
    %3446 = vmatpush1.msra.mxu0 0.0
    %3447 = vmatprep.subr.mxu0 0.0
    %3448 = vmatpush1.msra.mxu0 0.0
    %3449 = vmatprep.subr.mxu0 0.0
    %3450 = vmatpush1.msra.mxu0 0.0
    %3451 = vmatprep.subr.mxu0 0.0
    %3452 = vmatpush1.msra.mxu0 0.0
    %3453 = vmatprep.mubr.f32.mxu0 0.0
    %3454 = vmatmul.mubr.f32.gmra.mrb[0].mxu0 %v3384
    %v3455 = vpop.f32.mrb[0].mxu0
    %v3456 = vadd.f32 %v3382, %v3455
    %v3457 = vpop.f32.mrb[0].mxu0
    %3458 = vmatprep.mubr.f32.mxu0 0.0
    %3459 = vmatmul.mubr.f32.gmra.mrb[0].mxu0 %v3387
    %v3460 = vpop.f32.mrb[0].mxu0
    %v3461 = vadd.f32 %v3382, %v3460
    %v3462 = vpop.f32.mrb[0].mxu0
    %3463 = vdwg.mxu0
    %v3464 = vadd.f32 %v1908, %v3456
    %v3465 = vadd.f32 %v1909, %v3461
    %v3466 = vsel %vm143, %v3464, 0.0
    %3467 = vadd.xlane.f32.xlu0 %v3466
    %v3468 = vpop.xlane.xlu0 %3467
    %v3469 = vsel %vm143, %v3465, 0.0
    %3470 = vadd.xlane.f32.xlu0 %v3469
    %v3471 = vpop.xlane.xlu0 %3470
    %v3472 = vmul.f32 %v3468, %v1669
    %v3473 = vmul.f32 %v3471, %v1669
    %v3474 = vsub.f32 %v3464, %v3472
    %v3475 = vsub.f32 %v3465, %v3473
    %v3476 = vmul.f32 %v3474, %v3474
    %v3477 = vmul.f32 %v3475, %v3475
    %v3478 = vsel %vm143, %v3476, 0.0
    %3479 = vadd.xlane.f32.xlu0 %v3478
    %v3480 = vpop.xlane.xlu0 %3479
    %v3481 = vsel %vm143, %v3477, 0.0
    %3482 = vadd.xlane.f32.xlu0 %v3481
    %v3483 = vpop.xlane.xlu0 %3482
    %v3484 = vmul.f32 %v3480, %v1669
    %v3485 = vmul.f32 %v3483, %v1669
    %v3486 = vadd.f32 %v3484, 1e-05
    %v3487 = vadd.f32 %v3485, 1e-05
    %v3488 = vrsqrt.pop %v3486
    %v3489 = vrsqrt.pop %v3487
    %v3490 = vmul.f32 %v3474, %v3488
    %v3491 = vmul.f32 %v3475, %v3489
    %v3492 = vlaneseq
    %v3493 = vshrl.u32 %v3492, 7
    %v3494 = vsub.s32 0, %v3493
    %v3495 = vrot.slane %v1940, %v3494
    %v3496 = vmul.f32 %v3490, %v3495
    %v3497 = vmul.f32 %v3491, %v3495
    %v3498 = vlaneseq
    %v3499 = vshrl.u32 %v3498, 7
    %v3500 = vsub.s32 0, %v3499
    %v3501 = vrot.slane %v1941, %v3500
    %v3502 = vadd.f32 %v3496, %v3501
    %v3503 = vadd.f32 %v3497, %v3501
    %v3504 = vlaneseq
    %v3505 = vshrl.u32 %v3504, 7
    %v3506 = vsub.s32 0, %v3505
    %v3507 = vrot.slane %v1942, %v3506
    %v3509 = vsel %vm143, %v3502, 0
    %v3512 = vsel %vm143, %v3503, 0
    %3514 = vmatprep.subr.mxu0 0.0
    %3515 = vmatpush1.msra.mxu0 %v1918
    %3516 = vmatprep.subr.mxu0 0.0
    %3517 = vmatpush1.msra.mxu0 %v1919
    %3518 = vmatprep.subr.mxu0 0.0
    %3519 = vmatpush1.msra.mxu0 %v1920
    %3520 = vmatprep.subr.mxu0 0.0
    %3521 = vmatpush1.msra.mxu0 %v1921
    %3522 = vmatprep.subr.mxu0 0.0
    %3523 = vmatpush1.msra.mxu0 0.0
    %3524 = vmatprep.subr.mxu0 0.0
    %3525 = vmatpush1.msra.mxu0 0.0
    %3526 = vmatprep.subr.mxu0 0.0
    %3527 = vmatpush1.msra.mxu0 0.0
    %3528 = vmatprep.subr.mxu0 0.0
    %3529 = vmatpush1.msra.mxu0 0.0
    %3530 = vmatprep.subr.mxu0 0.0
    %3531 = vmatpush1.msra.mxu0 0.0
    %3532 = vmatprep.subr.mxu0 0.0
    %3533 = vmatpush1.msra.mxu0 0.0
    %3534 = vmatprep.subr.mxu0 0.0
    %3535 = vmatpush1.msra.mxu0 0.0
    %3536 = vmatprep.subr.mxu0 0.0
    %3537 = vmatpush1.msra.mxu0 0.0
    %3538 = vmatprep.subr.mxu0 0.0
    %3539 = vmatpush1.msra.mxu0 0.0
    %3540 = vmatprep.subr.mxu0 0.0
    %3541 = vmatpush1.msra.mxu0 0.0
    %3542 = vmatprep.subr.mxu0 0.0
    %3543 = vmatpush1.msra.mxu0 0.0
    %3544 = vmatprep.subr.mxu0 0.0
    %3545 = vmatpush1.msra.mxu0 0.0
    %3546 = vmatprep.subr.mxu0 0.0
    %3547 = vmatpush1.msra.mxu0 0.0
    %3548 = vmatprep.subr.mxu0 0.0
    %3549 = vmatpush1.msra.mxu0 0.0
    %3550 = vmatprep.subr.mxu0 0.0
    %3551 = vmatpush1.msra.mxu0 0.0
    %3552 = vmatprep.subr.mxu0 0.0
    %3553 = vmatpush1.msra.mxu0 0.0
    %3554 = vmatprep.subr.mxu0 0.0
    %3555 = vmatpush1.msra.mxu0 0.0
    %3556 = vmatprep.subr.mxu0 0.0
    %3557 = vmatpush1.msra.mxu0 0.0
    %3558 = vmatprep.subr.mxu0 0.0
    %3559 = vmatpush1.msra.mxu0 0.0
    %3560 = vmatprep.subr.mxu0 0.0
    %3561 = vmatpush1.msra.mxu0 0.0
    %3562 = vmatprep.subr.mxu0 0.0
    %3563 = vmatpush1.msra.mxu0 0.0
    %3564 = vmatprep.subr.mxu0 0.0
    %3565 = vmatpush1.msra.mxu0 0.0
    %3566 = vmatprep.subr.mxu0 0.0
    %3567 = vmatpush1.msra.mxu0 0.0
    %3568 = vmatprep.subr.mxu0 0.0
    %3569 = vmatpush1.msra.mxu0 0.0
    %3570 = vmatprep.subr.mxu0 0.0
    %3571 = vmatpush1.msra.mxu0 0.0
    %3572 = vmatprep.subr.mxu0 0.0
    %3573 = vmatpush1.msra.mxu0 0.0
    %3574 = vmatprep.subr.mxu0 0.0
    %3575 = vmatpush1.msra.mxu0 0.0
    %3576 = vmatprep.subr.mxu0 0.0
    %3577 = vmatpush1.msra.mxu0 0.0
    %3578 = vmatprep.mubr.f32.mxu0 0.0
    %3579 = vmatmul.mubr.f32.gmra.mrb[0].mxu0 %v3509
    %v3580 = vpop.f32.mrb[0].mxu0
    %v3581 = vadd.f32 %v3507, %v3580
    %v3582 = vpop.f32.mrb[0].mxu0
    %3583 = vmatprep.mubr.f32.mxu0 0.0
    %3584 = vmatmul.mubr.f32.gmra.mrb[0].mxu0 %v3512
    %v3585 = vpop.f32.mrb[0].mxu0
    %v3586 = vadd.f32 %v3507, %v3585
    %v3587 = vpop.f32.mrb[0].mxu0
    %3588 = vdwg.mxu0
    %v3589 = vmax.f32 %v3581, 0.0
    %v3590 = vmax.f32 %v3586, 0.0
    %v3591 = vlaneseq
    %v3592 = vshrl.u32 %v3591, 7
    %v3593 = vsub.s32 0, %v3592
    %v3594 = vrot.slane %v1943, %v3593
    %3595 = vmatprep.subr.mxu0 0.0
    %3596 = vmatpush1.msra.mxu0 %v1922
    %3597 = vmatprep.subr.mxu0 0.0
    %3598 = vmatpush1.msra.mxu0 %v1923
    %3599 = vmatprep.subr.mxu0 0.0
    %3600 = vmatpush1.msra.mxu0 %v1924
    %3601 = vmatprep.subr.mxu0 0.0
    %3602 = vmatpush1.msra.mxu0 %v1925
    %3603 = vmatprep.subr.mxu0 0.0
    %3604 = vmatpush1.msra.mxu0 %v1926
    %3605 = vmatprep.subr.mxu0 0.0
    %3606 = vmatpush1.msra.mxu0 %v1927
    %3607 = vmatprep.subr.mxu0 0.0
    %3608 = vmatpush1.msra.mxu0 %v1928
    %3609 = vmatprep.subr.mxu0 0.0
    %3610 = vmatpush1.msra.mxu0 %v1929
    %3611 = vmatprep.subr.mxu0 0.0
    %3612 = vmatpush1.msra.mxu0 %v1930
    %3613 = vmatprep.subr.mxu0 0.0
    %3614 = vmatpush1.msra.mxu0 %v1931
    %3615 = vmatprep.subr.mxu0 0.0
    %3616 = vmatpush1.msra.mxu0 %v1932
    %3617 = vmatprep.subr.mxu0 0.0
    %3618 = vmatpush1.msra.mxu0 %v1933
    %3619 = vmatprep.subr.mxu0 0.0
    %3620 = vmatpush1.msra.mxu0 %v1934
    %3621 = vmatprep.subr.mxu0 0.0
    %3622 = vmatpush1.msra.mxu0 %v1935
    %3623 = vmatprep.subr.mxu0 0.0
    %3624 = vmatpush1.msra.mxu0 %v1936
    %3625 = vmatprep.subr.mxu0 0.0
    %3626 = vmatpush1.msra.mxu0 %v1937
    %3627 = vmatprep.subr.mxu0 0.0
    %3628 = vmatpush1.msra.mxu0 0.0
    %3629 = vmatprep.subr.mxu0 0.0
    %3630 = vmatpush1.msra.mxu0 0.0
    %3631 = vmatprep.subr.mxu0 0.0
    %3632 = vmatpush1.msra.mxu0 0.0
    %3633 = vmatprep.subr.mxu0 0.0
    %3634 = vmatpush1.msra.mxu0 0.0
    %3635 = vmatprep.subr.mxu0 0.0
    %3636 = vmatpush1.msra.mxu0 0.0
    %3637 = vmatprep.subr.mxu0 0.0
    %3638 = vmatpush1.msra.mxu0 0.0
    %3639 = vmatprep.subr.mxu0 0.0
    %3640 = vmatpush1.msra.mxu0 0.0
    %3641 = vmatprep.subr.mxu0 0.0
    %3642 = vmatpush1.msra.mxu0 0.0
    %3643 = vmatprep.subr.mxu0 0.0
    %3644 = vmatpush1.msra.mxu0 0.0
    %3645 = vmatprep.subr.mxu0 0.0
    %3646 = vmatpush1.msra.mxu0 0.0
    %3647 = vmatprep.subr.mxu0 0.0
    %3648 = vmatpush1.msra.mxu0 0.0
    %3649 = vmatprep.subr.mxu0 0.0
    %3650 = vmatpush1.msra.mxu0 0.0
    %3651 = vmatprep.subr.mxu0 0.0
    %3652 = vmatpush1.msra.mxu0 0.0
    %3653 = vmatprep.subr.mxu0 0.0
    %3654 = vmatpush1.msra.mxu0 0.0
    %3655 = vmatprep.subr.mxu0 0.0
    %3656 = vmatpush1.msra.mxu0 0.0
    %3657 = vmatprep.subr.mxu0 0.0
    %3658 = vmatpush1.msra.mxu0 0.0
    %3659 = vmatprep.mubr.f32.mxu0 0.0
    %3660 = vmatmul.mubr.f32.gmra.mrb[0].mxu0 %v3589
    %v3661 = vpop.f32.mrb[0].mxu0
    %v3662 = vadd.f32 %v3594, %v3661
    %v3663 = vpop.f32.mrb[0].mxu0
    %3664 = vmatprep.mubr.f32.mxu0 0.0
    %3665 = vmatmul.mubr.f32.gmra.mrb[0].mxu0 %v3590
    %v3666 = vpop.f32.mrb[0].mxu0
    %v3667 = vadd.f32 %v3594, %v3666
    %v3668 = vpop.f32.mrb[0].mxu0
    %3669 = vdwg.mxu0
    %v3670 = vadd.f32 %v3502, %v3662
    %v3671 = vadd.f32 %v3503, %v3667
    %v3672 = vsel %vm143, %v3670, 0.0
    %3673 = vadd.xlane.f32.xlu0 %v3672
    %v3674 = vpop.xlane.xlu0 %3673
    %v3675 = vsel %vm143, %v3671, 0.0
    %3676 = vadd.xlane.f32.xlu0 %v3675
    %v3677 = vpop.xlane.xlu0 %3676
    %v3678 = vmul.f32 %v3674, %v1669
    %v3679 = vmul.f32 %v3677, %v1669
    %v3680 = vsub.f32 %v3670, %v3678
    %v3681 = vsub.f32 %v3671, %v3679
    %v3682 = vmul.f32 %v3680, %v3680
    %v3683 = vmul.f32 %v3681, %v3681
    %v3684 = vsel %vm143, %v3682, 0.0
    %3685 = vadd.xlane.f32.xlu0 %v3684
    %v3686 = vpop.xlane.xlu0 %3685
    %v3687 = vsel %vm143, %v3683, 0.0
    %3688 = vadd.xlane.f32.xlu0 %v3687
    %v3689 = vpop.xlane.xlu0 %3688
    %v3690 = vmul.f32 %v3686, %v1669
    %v3691 = vmul.f32 %v3689, %v1669
    %v3692 = vadd.f32 %v3690, 1e-05
    %v3693 = vadd.f32 %v3691, 1e-05
    %v3694 = vrsqrt.pop %v3692
    %v3695 = vrsqrt.pop %v3693
    %v3696 = vmul.f32 %v3680, %v3694
    %v3697 = vmul.f32 %v3681, %v3695
    %v3698 = vlaneseq
    %v3699 = vshrl.u32 %v3698, 7
    %v3700 = vsub.s32 0, %v3699
    %v3701 = vrot.slane %v1944, %v3700
    %v3702 = vmul.f32 %v3696, %v3701
    %v3703 = vmul.f32 %v3697, %v3701
    %v3704 = vlaneseq
    %v3705 = vshrl.u32 %v3704, 7
    %v3706 = vsub.s32 0, %v3705
    %v3707 = vrot.slane %v1945, %v3706
    %v3708 = vadd.f32 %v3702, %v3707
    %v3709 = vadd.f32 %v3703, %v3707
    %v3710 = vmul.f32 %v3708, %v97
    %v3711 = vmul.f32 %v3709, %v98
    %v3712 = vld [vmem:[#allocation7 + $0x30] sm:$0xff]
    %v3713 = vld [vmem:[#allocation7 + $0x68] sm:$0xff]
    %v3714 = vld [vmem:[#allocation7 + $0xa0] sm:$0xff]
    %v3715 = vld [vmem:[#allocation7 + $0xd8] sm:$0xff]
    %v3716 = vld [vmem:[#allocation10 + $0x10] sm:$0x1]
    %v3717 = vlaneseq
    %v3718 = vshrl.u32 %v3717, 7
    %v3719 = vsub.s32 0, %v3718
    %v3720 = vrot.slane %v3716, %v3719
    %v3722 = vsel %vm143, %v3710, 0
    %v3725 = vsel %vm143, %v3711, 0
    %3727 = vmatprep.subr.mxu0 0.0
    %3728 = vmatpush1.msra.mxu0 %v3712
    %3729 = vmatprep.subr.mxu0 0.0
    %3730 = vmatpush1.msra.mxu0 %v3713
    %3731 = vmatprep.subr.mxu0 0.0
    %3732 = vmatpush1.msra.mxu0 %v3714
    %3733 = vmatprep.subr.mxu0 0.0
    %3734 = vmatpush1.msra.mxu0 %v3715
    %3735 = vmatprep.subr.mxu0 0.0
    %3736 = vmatpush1.msra.mxu0 0.0
    %3737 = vmatprep.subr.mxu0 0.0
    %3738 = vmatpush1.msra.mxu0 0.0
    %3739 = vmatprep.subr.mxu0 0.0
    %3740 = vmatpush1.msra.mxu0 0.0
    %3741 = vmatprep.subr.mxu0 0.0
    %3742 = vmatpush1.msra.mxu0 0.0
    %3743 = vmatprep.subr.mxu0 0.0
    %3744 = vmatpush1.msra.mxu0 0.0
    %3745 = vmatprep.subr.mxu0 0.0
    %3746 = vmatpush1.msra.mxu0 0.0
    %3747 = vmatprep.subr.mxu0 0.0
    %3748 = vmatpush1.msra.mxu0 0.0
    %3749 = vmatprep.subr.mxu0 0.0
    %3750 = vmatpush1.msra.mxu0 0.0
    %3751 = vmatprep.subr.mxu0 0.0
    %3752 = vmatpush1.msra.mxu0 0.0
    %3753 = vmatprep.subr.mxu0 0.0
    %3754 = vmatpush1.msra.mxu0 0.0
    %3755 = vmatprep.subr.mxu0 0.0
    %3756 = vmatpush1.msra.mxu0 0.0
    %3757 = vmatprep.subr.mxu0 0.0
    %3758 = vmatpush1.msra.mxu0 0.0
    %3759 = vmatprep.subr.mxu0 0.0
    %3760 = vmatpush1.msra.mxu0 0.0
    %3761 = vmatprep.subr.mxu0 0.0
    %3762 = vmatpush1.msra.mxu0 0.0
    %3763 = vmatprep.subr.mxu0 0.0
    %3764 = vmatpush1.msra.mxu0 0.0
    %3765 = vmatprep.subr.mxu0 0.0
    %3766 = vmatpush1.msra.mxu0 0.0
    %3767 = vmatprep.subr.mxu0 0.0
    %3768 = vmatpush1.msra.mxu0 0.0
    %3769 = vmatprep.subr.mxu0 0.0
    %3770 = vmatpush1.msra.mxu0 0.0
    %3771 = vmatprep.subr.mxu0 0.0
    %3772 = vmatpush1.msra.mxu0 0.0
    %3773 = vmatprep.subr.mxu0 0.0
    %3774 = vmatpush1.msra.mxu0 0.0
    %3775 = vmatprep.subr.mxu0 0.0
    %3776 = vmatpush1.msra.mxu0 0.0
    %3777 = vmatprep.subr.mxu0 0.0
    %3778 = vmatpush1.msra.mxu0 0.0
    %3779 = vmatprep.subr.mxu0 0.0
    %3780 = vmatpush1.msra.mxu0 0.0
    %3781 = vmatprep.subr.mxu0 0.0
    %3782 = vmatpush1.msra.mxu0 0.0
    %3783 = vmatprep.subr.mxu0 0.0
    %3784 = vmatpush1.msra.mxu0 0.0
    %3785 = vmatprep.subr.mxu0 0.0
    %3786 = vmatpush1.msra.mxu0 0.0
    %3787 = vmatprep.subr.mxu0 0.0
    %3788 = vmatpush1.msra.mxu0 0.0
    %3789 = vmatprep.subr.mxu0 0.0
    %3790 = vmatpush1.msra.mxu0 0.0
    %3791 = vmatprep.mubr.f32.mxu0 0.0
    %3792 = vmatmul.mubr.f32.gmra.mrb[0].mxu0 %v3722
    %v3793 = vpop.f32.mrb[0].mxu0
    %v3794 = vadd.f32 %v3720, %v3793
    %v3795 = vpop.f32.mrb[0].mxu0
    %3796 = vmatprep.mubr.f32.mxu0 0.0
    %3797 = vmatmul.mubr.f32.gmra.mrb[0].mxu0 %v3725
    %v3798 = vpop.f32.mrb[0].mxu0
    %v3799 = vadd.f32 %v3720, %v3798
    %v3800 = vpop.f32.mrb[0].mxu0
    %3801 = vdwg.mxu0
    %v3802 = vmul.f32 %v3794, %v97
    %v3803 = vmul.f32 %v3799, %v98
    %3804 = vst.msk [vmem:[#allocation12] sm:$0xff] %vm143, %v3802
    %3805 = vst.msk [vmem:[#allocation12 + $0x8] sm:$0xff] %vm143, %v3803
    // Predicated region
    $region42: #{tpu_custom_call.1} parent=1 // pred_check
      _
    $region43: #{tpu_custom_call.1} parent=1 // pred_check_branch
      %3807 = sbr.rel (0) target = $region45
    $region44: #{tpu_custom_call.1} parent=1 // pred_region
      %s3809 = ssub.s32 256, 256
      %3810 = vsyncadd [#allocation4], %s3809
      %s3811 = sshll.u32 [#allocation12], 4
      %s3812 = int_to_ptr.vmem [resolvable:$true] %s3811
      %3817 = dma.vmem_to_hbm [thread:$0]  %s3812, 256, %s5, [#allocation4], 128, 128, 8
    $region45: #{tpu_custom_call.1} parent=1 // pred_fallthru
      _
    // Predicated region
    $region46: #{tpu_custom_call.1} parent=1 // pred_check
      _
    $region47: #{tpu_custom_call.1} parent=1 // pred_check_branch
      %3819 = sbr.rel (0) target = $region49
    $region48: #{tpu_custom_call.1} parent=1 // pred_region
      %3820 = dma.done [#allocation4], 256
    $region49: #{tpu_custom_call.1} parent=1 // pred_fallthru
      _
    %3821 = vsyncpa [#allocation3], 1
    %3822 = vsyncpa [#allocation8], 1
    %3823 = vsyncpa [#allocation11], 1
    %3824 = vsyncpa [#allocation4], 1
    %3825 = vsyncpa [#allocation5], 1

</llo_original>
